<compile_context>
chip_gen: v5e
topology: v5e:2x2
jax: 0.10.0
libtpu: 0.0.40
codegen_flags: <defaults>
</compile_context>

<pallas_src>
import jax
import jax.numpy as jnp
from jax.experimental import pallas as pl
from jax.experimental.pallas import tpu as pltpu

# ----------------------------- model config (small) -----------------------------
B = 2          # batch
C = 4          # input channels
IMG = 16       # H = W
PATCH = 4      # patch size  -> 16 patches
D = 32         # embed dim
HEADS = 4
HEAD_DIM = D // HEADS
MLP_H = 64     # transformer MLP hidden
DEPTH = 2      # transformer blocks
PROJ_H = 64    # projector hidden
PROJ_OUT = 16  # projector (embedding) output dim
N_PATCH = (IMG // PATCH) ** 2        # 16
N_TOK = N_PATCH + 1                  # 17 (cls + patches)
NT_PAD = 24                          # tokens padded to a multiple of 8 sublanes
PATCH_DIM = C * PATCH * PATCH        # 64
SCALE = 1.0 / (HEAD_DIM ** 0.5)
OUT_PAD = 128                        # packed lane-dense output: [h1 | emb | zeros]


# --------------------------- in-kernel helper functions ---------------------------
def _gelu_tanh(x):
    # TODO(synk): PyTorch nn.GELU defaults to the exact erf formulation; the tanh
    # approximation is kept for a guaranteed EUP lowering (~1e-3 max deviation).
    x2 = x * x
    return 0.5 * x * (1.0 + jnp.tanh(0.7978845608028654 * x * (1.0 + 0.044715 * x2)))


def _layernorm(x, g, b):
    mu = jnp.mean(x, axis=-1, keepdims=True)
    xc = x - mu
    var = jnp.mean(xc * xc, axis=-1, keepdims=True)
    return xc * jax.lax.rsqrt(var + 1e-5) * g + b


def _matmul_bias(x, w_bf16, bias_f32):
    # bf16 MXU operands, f32 accumulation; elementwise math stays f32.
    return jnp.dot(x.astype(jnp.bfloat16), w_bf16,
                   preferred_element_type=jnp.float32) + bias_f32


# ---------------------------------- fused kernel ----------------------------------
def _make_kernel(G):
    """G = images processed per grid step (stacked along the sublane axis)."""

    def kernel(
        patches_ref, pos_ref, pw_ref, pb_ref,
        ln1g_ref, ln1b_ref, qkvw_ref, qkvb_ref, projw_ref, projb_ref,
        ln2g_ref, ln2b_ref, fc1w_ref, fc1b_ref, fc2w_ref, fc2b_ref,
        lnfg_ref, lnfb_ref, p1w_ref, p1b_ref, p2w_ref, p2b_ref,
        out_ref,
    ):
        # --- patch embed over host-assembled rows: tokens come out directly ---
        # (row 0 per image is a zero cls placeholder; trailing rows are zero pad;
        #  cls / patch-bias corrections were folded into pos on the host.)
        tok = _matmul_bias(patches_ref[0], pw_ref[...], pb_ref[...])   # (G*NT_PAD, D)
        x = tok + pos_ref[...]                                         # (G*NT_PAD, D)

        # key mask for padded token columns (hoisted out of all loops)
        col = jax.lax.broadcasted_iota(jnp.int32, (1, NT_PAD), 1)
        key_bias = jnp.where(col < N_TOK, 0.0, -1e30).astype(jnp.float32)

        # ------------------------------ transformer blocks ------------------------------
        for d in range(DEPTH):                                         # static unroll
            # --- attention sub-block ---
            h = _layernorm(x, ln1g_ref[d], ln1b_ref[d])
            qkv = _matmul_bias(h, qkvw_ref[d], qkvb_ref[d])            # (G*NT_PAD, 3D)
            q = qkv[:, 0:D] * SCALE                                    # scale q, not scores
            k = qkv[:, D:2 * D]
            v = qkv[:, 2 * D:3 * D]
            attn_imgs = []
            for g in range(G):                                         # per-image attention
                r0 = g * NT_PAD                                        # 8-sublane aligned
                qg = q[r0:r0 + NT_PAD, :]
                kTg = k[r0:r0 + NT_PAD, :].T                           # 1 transpose/image/block
                vg = v[r0:r0 + NT_PAD, :].astype(jnp.bfloat16)
                heads = []
                for hh in range(HEADS):
                    lo = hh * HEAD_DIM                                 # aligned sublane slice of kT
                    qh = qg[:, lo:lo + HEAD_DIM].astype(jnp.bfloat16)
                    kTh = kTg[lo:lo + HEAD_DIM, :].astype(jnp.bfloat16)
                    s = jnp.dot(qh, kTh, preferred_element_type=jnp.float32)
                    s = s + key_bias
                    m = jnp.max(s, axis=-1, keepdims=True)
                    p = jnp.exp(s - m)
                    p = p * pl.reciprocal(jnp.sum(p, axis=-1, keepdims=True), approx=True)
                    heads.append(jnp.dot(p.astype(jnp.bfloat16), vg[:, lo:lo + HEAD_DIM],
                                         preferred_element_type=jnp.float32))
                attn_imgs.append(jnp.concatenate(heads, axis=-1))      # stays in vregs
            attn = attn_imgs[0] if G == 1 else jnp.concatenate(attn_imgs, axis=0)
            x = x + _matmul_bias(attn, projw_ref[d], projb_ref[d])     # residual (fused)

            # --- MLP sub-block ---
            h2 = _layernorm(x, ln2g_ref[d], ln2b_ref[d])
            h2 = _gelu_tanh(_matmul_bias(h2, fc1w_ref[d], fc1b_ref[d]))
            x = x + _matmul_bias(h2, fc2w_ref[d], fc2b_ref[d])         # residual (fused)

        # --------------- final LN (cls rows only) + projector ---------------
        if G == 1:
            cls_rows = x[0:1, :]
        else:
            cls_rows = jnp.concatenate(
                [x[g * NT_PAD:g * NT_PAD + 1, :] for g in range(G)], axis=0)
        cls_tok = _layernorm(cls_rows, lnfg_ref[...], lnfb_ref[...])   # (G, D)
        h1 = _gelu_tanh(_matmul_bias(cls_tok, p1w_ref[...], p1b_ref[...]))   # (G, PROJ_H)
        emb = _matmul_bias(h1, p2w_ref[...], p2b_ref[...])                   # (G, PROJ_OUT)
        # single lane-dense store: [h1 | emb | zero pad] -> 128 lanes
        out_ref[0] = jnp.concatenate(
            [h1, emb, jnp.zeros((G, OUT_PAD - PROJ_H - PROJ_OUT), jnp.float32)], axis=-1)

    return kernel


# ------------------------------------ wrapper --------------------------------------
def _default_images_per_step(batch):
    # v7x has 2 TensorCores sharded over "parallel" grid axes -> keep >= 2 grid steps.
    # v5e/v6e have 1 TC -> the grid is purely serial, so fold the whole batch.
    try:
        kind = jax.devices()[0].device_kind.lower()
        if "v7" in kind:
            return max(1, batch // 2)
    except Exception:
        pass
    return batch


def vit_mlp_pallas(patches, params, images_per_step=None):
    """patches: (B, N_PATCH, PATCH_DIM) f32 -> (emb (B,PROJ_OUT), h1 (B,PROJ_H))."""
    Bb = patches.shape[0]
    G = images_per_step if images_per_step is not None else _default_images_per_step(Bb)
    if G < 1 or Bb % G != 0:
        G = 1
    steps = Bb // G

    # host-side layout glue: pad each image to NT_PAD token rows
    # (1 leading zero row = cls placeholder, 7 trailing zero rows = sublane pad)
    patches_pad = jnp.pad(patches.astype(jnp.float32),
                          ((0, 0), (1, NT_PAD - N_TOK), (0, 0)))        # (B, NT_PAD, PATCH_DIM)
    patches_pad = patches_pad.reshape(steps, G * NT_PAD, PATCH_DIM)

    # fold cls token and patch-bias corrections into the positional table (host, once):
    #   row 0     : x0 = patch_b + (pos0 + cls - patch_b) = cls + pos0
    #   rows 1..16: x  = patch_embed + pos
    #   pad rows  : x  = patch_b + (-patch_b) = 0
    pos_img = jnp.concatenate([
        params["pos"][0:1] + params["cls"] - params["patch_b"],
        params["pos"][1:N_TOK],
        -jnp.tile(params["patch_b"], (NT_PAD - N_TOK, 1)),
    ], axis=0)                                                          # (NT_PAD, D)
    pos_full = jnp.tile(pos_img, (G, 1))                                # (G*NT_PAD, D)

    def full2(shape):
        return pl.BlockSpec(shape, lambda s: (0, 0))

    def full3(shape):
        return pl.BlockSpec(shape, lambda s: (0, 0, 0))

    # NOTE: the 21 constant-index weight/bias inputs are grid-invariant; default
    # double-buffering of them is negligible at this size, so no pipeline_mode tweak.
    in_specs = [
        pl.BlockSpec((1, G * NT_PAD, PATCH_DIM), lambda s: (s, 0, 0)),  # patches (per step)
        full2((G * NT_PAD, D)),           # pos (cls/bias folded, tiled G times)
        full2((PATCH_DIM, D)),            # patch_w (bf16)
        full2((1, D)),                    # patch_b
        full3((DEPTH, 1, D)),             # ln1_g
        full3((DEPTH, 1, D)),             # ln1_b
        full3((DEPTH, D, 3 * D)),         # qkv_w (bf16)
        full3((DEPTH, 1, 3 * D)),         # qkv_b
        full3((DEPTH, D, D)),             # proj_w (bf16)
        full3((DEPTH, 1, D)),             # proj_b
        full3((DEPTH, 1, D)),             # ln2_g
        full3((DEPTH, 1, D)),             # ln2_b
        full3((DEPTH, D, MLP_H)),         # fc1_w (bf16)
        full3((DEPTH, 1, MLP_H)),         # fc1_b
        full3((DEPTH, MLP_H, D)),         # fc2_w (bf16)
        full3((DEPTH, 1, D)),             # fc2_b
        full2((1, D)),                    # lnf_g
        full2((1, D)),                    # lnf_b
        full2((D, PROJ_H)),               # p1_w (bf16)
        full2((1, PROJ_H)),               # p1_b
        full2((PROJ_H, PROJ_OUT)),        # p2_w (bf16)
        full2((1, PROJ_OUT)),             # p2_b
    ]
    out_specs = pl.BlockSpec((1, G, OUT_PAD), lambda s: (s, 0, 0))
    out_shape = jax.ShapeDtypeStruct((steps, G, OUT_PAD), jnp.float32)

    packed = pl.pallas_call(
        _make_kernel(G),
        out_shape=out_shape,
        grid=(steps,),
        in_specs=in_specs,
        out_specs=out_specs,
        compiler_params=pltpu.CompilerParams(
            dimension_semantics=("parallel",),   # shards steps across v7x's 2 TCs
        ),
    )(
        patches_pad, pos_full, params["patch_w"], params["patch_b"],
        params["ln1_g"], params["ln1_b"], params["qkv_w"], params["qkv_b"],
        params["proj_w"], params["proj_b"], params["ln2_g"], params["ln2_b"],
        params["fc1_w"], params["fc1_b"], params["fc2_w"], params["fc2_b"],
        params["lnf_g"], params["lnf_b"], params["p1_w"], params["p1_b"],
        params["p2_w"], params["p2_b"],
    )
    packed = packed.reshape(Bb, OUT_PAD)
    h1 = packed[:, :PROJ_H]
    emb = packed[:, PROJ_H:PROJ_H + PROJ_OUT]
    return emb, h1


# ----------------------------- parameter initialization ---------------------------
def init_params(key):
    keys = iter(jax.random.split(key, 32))

    def nrm(shape, dtype=jnp.float32, scale=0.02):
        return (scale * jax.random.normal(next(keys), shape)).astype(dtype)

    bf16 = jnp.bfloat16
    return {
        "patch_w": nrm((PATCH_DIM, D), bf16),
        "patch_b": jnp.zeros((1, D), jnp.float32),
        "cls": nrm((1, D)),
        "pos": nrm((N_TOK, D)),
        "ln1_g": jnp.ones((DEPTH, 1, D), jnp.float32),
        "ln1_b": jnp.zeros((DEPTH, 1, D), jnp.float32),
        "qkv_w": nrm((DEPTH, D, 3 * D), bf16),
        "qkv_b": jnp.zeros((DEPTH, 1, 3 * D), jnp.float32),
        "proj_w": nrm((DEPTH, D, D), bf16),
        "proj_b": jnp.zeros((DEPTH, 1, D), jnp.float32),
        "ln2_g": jnp.ones((DEPTH, 1, D), jnp.float32),
        "ln2_b": jnp.zeros((DEPTH, 1, D), jnp.float32),
        "fc1_w": nrm((DEPTH, D, MLP_H), bf16),
        "fc1_b": jnp.zeros((DEPTH, 1, MLP_H), jnp.float32),
        "fc2_w": nrm((DEPTH, MLP_H, D), bf16),
        "fc2_b": jnp.zeros((DEPTH, 1, D), jnp.float32),
        "lnf_g": jnp.ones((1, D), jnp.float32),
        "lnf_b": jnp.zeros((1, D), jnp.float32),
        "p1_w": nrm((D, PROJ_H), bf16),
        "p1_b": jnp.zeros((1, PROJ_H), jnp.float32),
        "p2_w": nrm((PROJ_H, PROJ_OUT), bf16),
        "p2_b": jnp.zeros((1, PROJ_OUT), jnp.float32),
    }


# ------------------------------------ forward -------------------------------------
def vit_mlp_forward(x_nchw, params, return_layer_outputs=False, images_per_step=None):
    """Mirrors ViTMLP.forward: backbone -> projector(..., return_layer_outputs=True)."""
    Bb, Cc, H, W = x_nchw.shape
    nH, nW = H // PATCH, W // PATCH
    # patch unfold: layout-only glue; everything else runs inside the fused kernel.
    patches = (
        x_nchw.reshape(Bb, Cc, nH, PATCH, nW, PATCH)
        .transpose(0, 2, 4, 1, 3, 5)
        .reshape(Bb, nH * nW, Cc * PATCH * PATCH)
    )
    embeddings, h1 = vit_mlp_pallas(patches, params, images_per_step)
    layer_outputs = [h1, embeddings]
    if return_layer_outputs:
        return embeddings, layer_outputs
    return embeddings


# -------------------------------------- main ---------------------------------------
if __name__ == "__main__":
    key = jax.random.PRNGKey(0)
    k_x, k_p = jax.random.split(key)
    x = jax.random.normal(k_x, (B, C, IMG, IMG), dtype=jnp.float32)   # NCHW
    params = init_params(k_p)

    embeddings, layer_outputs = vit_mlp_forward(x, params, return_layer_outputs=True)
    jax.block_until_ready(embeddings)
    jax.block_until_ready(layer_outputs)

    assert embeddings.shape == (B, PROJ_OUT)
    assert layer_outputs[0].shape == (B, PROJ_H)
    assert layer_outputs[1].shape == (B, PROJ_OUT)
    assert bool(jnp.all(jnp.isfinite(embeddings)))
    assert bool(jnp.all(jnp.isfinite(layer_outputs[0])))

    # also exercise the embeddings-only path and the explicit per-image grid path
    emb_only = vit_mlp_forward(x, params, return_layer_outputs=False)
    jax.block_until_ready(emb_only)
    assert emb_only.shape == (B, PROJ_OUT)

    emb_grid = vit_mlp_forward(x, params, return_layer_outputs=False, images_per_step=1)
    jax.block_until_ready(emb_grid)
    assert bool(jnp.allclose(emb_grid, emb_only, atol=1e-5, rtol=1e-5))

    print("KERNEL_OK")
</pallas_src>

<mosaic_0001>
module attributes {stable_mosaic.version = 11 : i64} {
  func.func @kernel(%arg0: i32, %arg1: memref<1x48x64xf32, #tpu.memory_space<vmem>>, %arg2: memref<48x32xf32, #tpu.memory_space<vmem>>, %arg3: memref<64x32xbf16, #tpu.memory_space<vmem>>, %arg4: memref<1x32xf32, #tpu.memory_space<vmem>>, %arg5: memref<2x1x32xf32, #tpu.memory_space<vmem>>, %arg6: memref<2x1x32xf32, #tpu.memory_space<vmem>>, %arg7: memref<2x32x96xbf16, #tpu.memory_space<vmem>>, %arg8: memref<2x1x96xf32, #tpu.memory_space<vmem>>, %arg9: memref<2x32x32xbf16, #tpu.memory_space<vmem>>, %arg10: memref<2x1x32xf32, #tpu.memory_space<vmem>>, %arg11: memref<2x1x32xf32, #tpu.memory_space<vmem>>, %arg12: memref<2x1x32xf32, #tpu.memory_space<vmem>>, %arg13: memref<2x32x64xbf16, #tpu.memory_space<vmem>>, %arg14: memref<2x1x64xf32, #tpu.memory_space<vmem>>, %arg15: memref<2x64x32xbf16, #tpu.memory_space<vmem>>, %arg16: memref<2x1x32xf32, #tpu.memory_space<vmem>>, %arg17: memref<1x32xf32, #tpu.memory_space<vmem>>, %arg18: memref<1x32xf32, #tpu.memory_space<vmem>>, %arg19: memref<32x64xbf16, #tpu.memory_space<vmem>>, %arg20: memref<1x64xf32, #tpu.memory_space<vmem>>, %arg21: memref<64x16xbf16, #tpu.memory_space<vmem>>, %arg22: memref<1x16xf32, #tpu.memory_space<vmem>>, %arg23: memref<1x2x128xf32, #tpu.memory_space<vmem>>) attributes {dimension_semantics = [#tpu.dimension_semantics<parallel>], iteration_bounds = array<i64: 1>, scalar_prefetch = 0 : i64, scratch_operands = 0 : i64, tpu.core_type = #tpu.core_type<tc>, window_params = [{transform_indices = @transform_0, window_bounds = array<i64: 1, 48, 64>}, {pipeline_mode = #tpu.pipeline_mode<synchronous>, transform_indices = @transform_1, window_bounds = array<i64: 48, 32>}, {pipeline_mode = #tpu.pipeline_mode<synchronous>, transform_indices = @transform_2, window_bounds = array<i64: 64, 32>}, {pipeline_mode = #tpu.pipeline_mode<synchronous>, transform_indices = @transform_3, window_bounds = array<i64: 1, 32>}, {pipeline_mode = #tpu.pipeline_mode<synchronous>, transform_indices = @transform_4, window_bounds = array<i64: 2, 1, 32>}, {pipeline_mode = #tpu.pipeline_mode<synchronous>, transform_indices = @transform_5, window_bounds = array<i64: 2, 1, 32>}, {pipeline_mode = #tpu.pipeline_mode<synchronous>, transform_indices = @transform_6, window_bounds = array<i64: 2, 32, 96>}, {pipeline_mode = #tpu.pipeline_mode<synchronous>, transform_indices = @transform_7, window_bounds = array<i64: 2, 1, 96>}, {pipeline_mode = #tpu.pipeline_mode<synchronous>, transform_indices = @transform_8, window_bounds = array<i64: 2, 32, 32>}, {pipeline_mode = #tpu.pipeline_mode<synchronous>, transform_indices = @transform_9, window_bounds = array<i64: 2, 1, 32>}, {pipeline_mode = #tpu.pipeline_mode<synchronous>, transform_indices = @transform_10, window_bounds = array<i64: 2, 1, 32>}, {pipeline_mode = #tpu.pipeline_mode<synchronous>, transform_indices = @transform_11, window_bounds = array<i64: 2, 1, 32>}, {pipeline_mode = #tpu.pipeline_mode<synchronous>, transform_indices = @transform_12, window_bounds = array<i64: 2, 32, 64>}, {pipeline_mode = #tpu.pipeline_mode<synchronous>, transform_indices = @transform_13, window_bounds = array<i64: 2, 1, 64>}, {pipeline_mode = #tpu.pipeline_mode<synchronous>, transform_indices = @transform_14, window_bounds = array<i64: 2, 64, 32>}, {pipeline_mode = #tpu.pipeline_mode<synchronous>, transform_indices = @transform_15, window_bounds = array<i64: 2, 1, 32>}, {pipeline_mode = #tpu.pipeline_mode<synchronous>, transform_indices = @transform_16, window_bounds = array<i64: 1, 32>}, {pipeline_mode = #tpu.pipeline_mode<synchronous>, transform_indices = @transform_17, window_bounds = array<i64: 1, 32>}, {pipeline_mode = #tpu.pipeline_mode<synchronous>, transform_indices = @transform_18, window_bounds = array<i64: 32, 64>}, {pipeline_mode = #tpu.pipeline_mode<synchronous>, transform_indices = @transform_19, window_bounds = array<i64: 1, 64>}, {pipeline_mode = #tpu.pipeline_mode<synchronous>, transform_indices = @transform_20, window_bounds = array<i64: 64, 16>}, {pipeline_mode = #tpu.pipeline_mode<synchronous>, transform_indices = @transform_21, window_bounds = array<i64: 1, 16>}, {transform_indices = @transform_22, window_bounds = array<i64: 1, 2, 128>}]} {
    %c0 = arith.constant 0 : index
    %c0_0 = arith.constant 0 : index
    %c0_1 = arith.constant 0 : index
    %0 = vector.load %arg1[%c0, %c0_0, %c0_1] : memref<1x48x64xf32, #tpu.memory_space<vmem>>, vector<1x48x64xf32>
    %1 = vector.shape_cast %0 : vector<1x48x64xf32> to vector<48x64xf32>
    %c0_2 = arith.constant 0 : index
    %c0_3 = arith.constant 0 : index
    %2 = vector.load %arg3[%c0_2, %c0_3] : memref<64x32xbf16, #tpu.memory_space<vmem>>, vector<64x32xbf16>
    %c0_4 = arith.constant 0 : index
    %c0_5 = arith.constant 0 : index
    %3 = vector.load %arg4[%c0_4, %c0_5] : memref<1x32xf32, #tpu.memory_space<vmem>>, vector<1x32xf32>
    %4 = arith.truncf %1 : vector<48x64xf32> to vector<48x64xbf16>
    %cst = arith.constant dense<0.000000e+00> : vector<48x32xf32>
    %5 = tpu.matmul %4, %2, %cst {dimension_numbers = #tpu.dot_dimension_numbers<[1], [0], [0], [1], [0, 0, 1, 1], [], []>} : vector<48x64xbf16>, vector<64x32xbf16>, vector<48x32xf32> -> vector<48x32xf32>
    %6 = vector.broadcast %3 : vector<1x32xf32> to vector<48x32xf32>
    %7 = arith.addf %5, %6 : vector<48x32xf32>
    %c0_6 = arith.constant 0 : index
    %c0_7 = arith.constant 0 : index
    %8 = vector.load %arg2[%c0_6, %c0_7] : memref<48x32xf32, #tpu.memory_space<vmem>>, vector<48x32xf32>
    %9 = arith.addf %7, %8 : vector<48x32xf32>
    %10 = tpu.iota {dimensions = array<i32: 1>} : vector<1x24xi32>
    %c17_i32 = arith.constant 17 : i32
    %11 = vector.broadcast %c17_i32 : i32 to vector<1x24xi32>
    %12 = arith.cmpi slt, %10, %11 : vector<1x24xi32>
    %cst_8 = arith.constant 0.000000e+00 : f32
    %cst_9 = arith.constant -1.000000e+30 : f32
    %13 = vector.broadcast %cst_8 : f32 to vector<1x24xf32>
    %14 = vector.broadcast %cst_9 : f32 to vector<1x24xf32>
    %15 = arith.select %12, %13, %14 : vector<1x24xi1>, vector<1x24xf32>
    %c0_10 = arith.constant 0 : index
    %c0_11 = arith.constant 0 : index
    %c0_12 = arith.constant 0 : index
    %16 = vector.load %arg5[%c0_10, %c0_11, %c0_12] : memref<2x1x32xf32, #tpu.memory_space<vmem>>, vector<1x1x32xf32>
    %17 = vector.shape_cast %16 : vector<1x1x32xf32> to vector<1x32xf32>
    %c0_13 = arith.constant 0 : index
    %c0_14 = arith.constant 0 : index
    %c0_15 = arith.constant 0 : index
    %18 = vector.load %arg6[%c0_13, %c0_14, %c0_15] : memref<2x1x32xf32, #tpu.memory_space<vmem>>, vector<1x1x32xf32>
    %19 = vector.shape_cast %18 : vector<1x1x32xf32> to vector<1x32xf32>
    %cst_16 = arith.constant dense<0.000000e+00> : vector<48xf32>
    %20 = vector.multi_reduction <add>, %9, %cst_16 [1] : vector<48x32xf32> to vector<48xf32>
    %21 = vector.shape_cast %20 : vector<48xf32> to vector<48x1xf32>
    %cst_17 = arith.constant 3.200000e+01 : f32
    %22 = vector.broadcast %cst_17 : f32 to vector<48x1xf32>
    %23 = arith.divf %21, %22 : vector<48x1xf32>
    %24 = vector.broadcast %23 : vector<48x1xf32> to vector<48x32xf32>
    %25 = arith.subf %9, %24 : vector<48x32xf32>
    %26 = arith.mulf %25, %25 : vector<48x32xf32>
    %cst_18 = arith.constant dense<0.000000e+00> : vector<48xf32>
    %27 = vector.multi_reduction <add>, %26, %cst_18 [1] : vector<48x32xf32> to vector<48xf32>
    %28 = vector.shape_cast %27 : vector<48xf32> to vector<48x1xf32>
    %cst_19 = arith.constant 3.200000e+01 : f32
    %29 = vector.broadcast %cst_19 : f32 to vector<48x1xf32>
    %30 = arith.divf %28, %29 : vector<48x1xf32>
    %cst_20 = arith.constant 9.99999974E-6 : f32
    %31 = vector.broadcast %cst_20 : f32 to vector<48x1xf32>
    %32 = arith.addf %30, %31 : vector<48x1xf32>
    %33 = math.rsqrt %32 : vector<48x1xf32>
    %34 = vector.broadcast %33 : vector<48x1xf32> to vector<48x32xf32>
    %35 = arith.mulf %25, %34 : vector<48x32xf32>
    %36 = vector.broadcast %17 : vector<1x32xf32> to vector<48x32xf32>
    %37 = arith.mulf %35, %36 : vector<48x32xf32>
    %38 = vector.broadcast %19 : vector<1x32xf32> to vector<48x32xf32>
    %39 = arith.addf %37, %38 : vector<48x32xf32>
    %c0_21 = arith.constant 0 : index
    %c0_22 = arith.constant 0 : index
    %c0_23 = arith.constant 0 : index
    %40 = vector.load %arg7[%c0_21, %c0_22, %c0_23] : memref<2x32x96xbf16, #tpu.memory_space<vmem>>, vector<1x32x96xbf16>
    %41 = vector.shape_cast %40 : vector<1x32x96xbf16> to vector<32x96xbf16>
    %c0_24 = arith.constant 0 : index
    %c0_25 = arith.constant 0 : index
    %c0_26 = arith.constant 0 : index
    %42 = vector.load %arg8[%c0_24, %c0_25, %c0_26] : memref<2x1x96xf32, #tpu.memory_space<vmem>>, vector<1x1x96xf32>
    %43 = vector.shape_cast %42 : vector<1x1x96xf32> to vector<1x96xf32>
    %44 = arith.truncf %39 : vector<48x32xf32> to vector<48x32xbf16>
    %cst_27 = arith.constant dense<0.000000e+00> : vector<48x96xf32>
    %45 = tpu.matmul %44, %41, %cst_27 {dimension_numbers = #tpu.dot_dimension_numbers<[1], [0], [0], [1], [0, 0, 1, 1], [], []>} : vector<48x32xbf16>, vector<32x96xbf16>, vector<48x96xf32> -> vector<48x96xf32>
    %46 = vector.broadcast %43 : vector<1x96xf32> to vector<48x96xf32>
    %47 = arith.addf %45, %46 : vector<48x96xf32>
    %48 = vector.extract_strided_slice %47 {offsets = [0, 0], sizes = [48, 32], strides = [1, 1]} : vector<48x96xf32> to vector<48x32xf32>
    %cst_28 = arith.constant 0.353553385 : f32
    %49 = vector.broadcast %cst_28 : f32 to vector<48x32xf32>
    %50 = arith.mulf %48, %49 : vector<48x32xf32>
    %51 = vector.extract_strided_slice %47 {offsets = [0, 32], sizes = [48, 32], strides = [1, 1]} : vector<48x96xf32> to vector<48x32xf32>
    %52 = vector.extract_strided_slice %47 {offsets = [0, 64], sizes = [48, 32], strides = [1, 1]} : vector<48x96xf32> to vector<48x32xf32>
    %53 = vector.extract_strided_slice %50 {offsets = [0, 0], sizes = [24, 32], strides = [1, 1]} : vector<48x32xf32> to vector<24x32xf32>
    %54 = vector.extract_strided_slice %51 {offsets = [0, 0], sizes = [24, 32], strides = [1, 1]} : vector<48x32xf32> to vector<24x32xf32>
    %55 = tpu.transpose %54, [1, 0] : vector<24x32xf32> -> vector<32x24xf32>
    %56 = vector.extract_strided_slice %52 {offsets = [0, 0], sizes = [24, 32], strides = [1, 1]} : vector<48x32xf32> to vector<24x32xf32>
    %57 = arith.truncf %56 : vector<24x32xf32> to vector<24x32xbf16>
    %58 = vector.extract_strided_slice %53 {offsets = [0, 0], sizes = [24, 8], strides = [1, 1]} : vector<24x32xf32> to vector<24x8xf32>
    %59 = arith.truncf %58 : vector<24x8xf32> to vector<24x8xbf16>
    %60 = vector.extract_strided_slice %55 {offsets = [0, 0], sizes = [8, 24], strides = [1, 1]} : vector<32x24xf32> to vector<8x24xf32>
    %61 = arith.truncf %60 : vector<8x24xf32> to vector<8x24xbf16>
    %cst_29 = arith.constant dense<0.000000e+00> : vector<24x24xf32>
    %62 = tpu.matmul %59, %61, %cst_29 {dimension_numbers = #tpu.dot_dimension_numbers<[1], [0], [0], [1], [0, 0, 1, 1], [], []>} : vector<24x8xbf16>, vector<8x24xbf16>, vector<24x24xf32> -> vector<24x24xf32>
    %63 = vector.broadcast %15 : vector<1x24xf32> to vector<24x24xf32>
    %64 = arith.addf %62, %63 : vector<24x24xf32>
    %cst_30 = arith.constant dense<0xFF800000> : vector<24xf32>
    %65 = vector.multi_reduction <maximumf>, %64, %cst_30 [1] : vector<24x24xf32> to vector<24xf32>
    %66 = vector.shape_cast %65 : vector<24xf32> to vector<24x1xf32>
    %67 = vector.broadcast %66 : vector<24x1xf32> to vector<24x24xf32>
    %68 = arith.subf %64, %67 : vector<24x24xf32>
    %69 = math.exp %68 : vector<24x24xf32>
    %cst_31 = arith.constant dense<0.000000e+00> : vector<24xf32>
    %70 = vector.multi_reduction <add>, %69, %cst_31 [1] : vector<24x24xf32> to vector<24xf32>
    %71 = vector.shape_cast %70 : vector<24xf32> to vector<24x1xf32>
    %72 = tpu.reciprocal %71 {approx = true} : vector<24x1xf32> -> vector<24x1xf32>
    %73 = vector.broadcast %72 : vector<24x1xf32> to vector<24x24xf32>
    %74 = arith.mulf %69, %73 : vector<24x24xf32>
    %75 = arith.truncf %74 : vector<24x24xf32> to vector<24x24xbf16>
    %76 = vector.extract_strided_slice %57 {offsets = [0, 0], sizes = [24, 8], strides = [1, 1]} : vector<24x32xbf16> to vector<24x8xbf16>
    %cst_32 = arith.constant dense<0.000000e+00> : vector<24x8xf32>
    %77 = tpu.matmul %75, %76, %cst_32 {dimension_numbers = #tpu.dot_dimension_numbers<[1], [0], [0], [1], [0, 0, 1, 1], [], []>} : vector<24x24xbf16>, vector<24x8xbf16>, vector<24x8xf32> -> vector<24x8xf32>
    %78 = vector.extract_strided_slice %53 {offsets = [0, 8], sizes = [24, 8], strides = [1, 1]} : vector<24x32xf32> to vector<24x8xf32>
    %79 = arith.truncf %78 : vector<24x8xf32> to vector<24x8xbf16>
    %80 = vector.extract_strided_slice %55 {offsets = [8, 0], sizes = [8, 24], strides = [1, 1]} : vector<32x24xf32> to vector<8x24xf32>
    %81 = arith.truncf %80 : vector<8x24xf32> to vector<8x24xbf16>
    %cst_33 = arith.constant dense<0.000000e+00> : vector<24x24xf32>
    %82 = tpu.matmul %79, %81, %cst_33 {dimension_numbers = #tpu.dot_dimension_numbers<[1], [0], [0], [1], [0, 0, 1, 1], [], []>} : vector<24x8xbf16>, vector<8x24xbf16>, vector<24x24xf32> -> vector<24x24xf32>
    %83 = vector.broadcast %15 : vector<1x24xf32> to vector<24x24xf32>
    %84 = arith.addf %82, %83 : vector<24x24xf32>
    %cst_34 = arith.constant dense<0xFF800000> : vector<24xf32>
    %85 = vector.multi_reduction <maximumf>, %84, %cst_34 [1] : vector<24x24xf32> to vector<24xf32>
    %86 = vector.shape_cast %85 : vector<24xf32> to vector<24x1xf32>
    %87 = vector.broadcast %86 : vector<24x1xf32> to vector<24x24xf32>
    %88 = arith.subf %84, %87 : vector<24x24xf32>
    %89 = math.exp %88 : vector<24x24xf32>
    %cst_35 = arith.constant dense<0.000000e+00> : vector<24xf32>
    %90 = vector.multi_reduction <add>, %89, %cst_35 [1] : vector<24x24xf32> to vector<24xf32>
    %91 = vector.shape_cast %90 : vector<24xf32> to vector<24x1xf32>
    %92 = tpu.reciprocal %91 {approx = true} : vector<24x1xf32> -> vector<24x1xf32>
    %93 = vector.broadcast %92 : vector<24x1xf32> to vector<24x24xf32>
    %94 = arith.mulf %89, %93 : vector<24x24xf32>
    %95 = arith.truncf %94 : vector<24x24xf32> to vector<24x24xbf16>
    %96 = vector.extract_strided_slice %57 {offsets = [0, 8], sizes = [24, 8], strides = [1, 1]} : vector<24x32xbf16> to vector<24x8xbf16>
    %cst_36 = arith.constant dense<0.000000e+00> : vector<24x8xf32>
    %97 = tpu.matmul %95, %96, %cst_36 {dimension_numbers = #tpu.dot_dimension_numbers<[1], [0], [0], [1], [0, 0, 1, 1], [], []>} : vector<24x24xbf16>, vector<24x8xbf16>, vector<24x8xf32> -> vector<24x8xf32>
    %98 = vector.extract_strided_slice %53 {offsets = [0, 16], sizes = [24, 8], strides = [1, 1]} : vector<24x32xf32> to vector<24x8xf32>
    %99 = arith.truncf %98 : vector<24x8xf32> to vector<24x8xbf16>
    %100 = vector.extract_strided_slice %55 {offsets = [16, 0], sizes = [8, 24], strides = [1, 1]} : vector<32x24xf32> to vector<8x24xf32>
    %101 = arith.truncf %100 : vector<8x24xf32> to vector<8x24xbf16>
    %cst_37 = arith.constant dense<0.000000e+00> : vector<24x24xf32>
    %102 = tpu.matmul %99, %101, %cst_37 {dimension_numbers = #tpu.dot_dimension_numbers<[1], [0], [0], [1], [0, 0, 1, 1], [], []>} : vector<24x8xbf16>, vector<8x24xbf16>, vector<24x24xf32> -> vector<24x24xf32>
    %103 = vector.broadcast %15 : vector<1x24xf32> to vector<24x24xf32>
    %104 = arith.addf %102, %103 : vector<24x24xf32>
    %cst_38 = arith.constant dense<0xFF800000> : vector<24xf32>
    %105 = vector.multi_reduction <maximumf>, %104, %cst_38 [1] : vector<24x24xf32> to vector<24xf32>
    %106 = vector.shape_cast %105 : vector<24xf32> to vector<24x1xf32>
    %107 = vector.broadcast %106 : vector<24x1xf32> to vector<24x24xf32>
    %108 = arith.subf %104, %107 : vector<24x24xf32>
    %109 = math.exp %108 : vector<24x24xf32>
    %cst_39 = arith.constant dense<0.000000e+00> : vector<24xf32>
    %110 = vector.multi_reduction <add>, %109, %cst_39 [1] : vector<24x24xf32> to vector<24xf32>
    %111 = vector.shape_cast %110 : vector<24xf32> to vector<24x1xf32>
    %112 = tpu.reciprocal %111 {approx = true} : vector<24x1xf32> -> vector<24x1xf32>
    %113 = vector.broadcast %112 : vector<24x1xf32> to vector<24x24xf32>
    %114 = arith.mulf %109, %113 : vector<24x24xf32>
    %115 = arith.truncf %114 : vector<24x24xf32> to vector<24x24xbf16>
    %116 = vector.extract_strided_slice %57 {offsets = [0, 16], sizes = [24, 8], strides = [1, 1]} : vector<24x32xbf16> to vector<24x8xbf16>
    %cst_40 = arith.constant dense<0.000000e+00> : vector<24x8xf32>
    %117 = tpu.matmul %115, %116, %cst_40 {dimension_numbers = #tpu.dot_dimension_numbers<[1], [0], [0], [1], [0, 0, 1, 1], [], []>} : vector<24x24xbf16>, vector<24x8xbf16>, vector<24x8xf32> -> vector<24x8xf32>
    %118 = vector.extract_strided_slice %53 {offsets = [0, 24], sizes = [24, 8], strides = [1, 1]} : vector<24x32xf32> to vector<24x8xf32>
    %119 = arith.truncf %118 : vector<24x8xf32> to vector<24x8xbf16>
    %120 = vector.extract_strided_slice %55 {offsets = [24, 0], sizes = [8, 24], strides = [1, 1]} : vector<32x24xf32> to vector<8x24xf32>
    %121 = arith.truncf %120 : vector<8x24xf32> to vector<8x24xbf16>
    %cst_41 = arith.constant dense<0.000000e+00> : vector<24x24xf32>
    %122 = tpu.matmul %119, %121, %cst_41 {dimension_numbers = #tpu.dot_dimension_numbers<[1], [0], [0], [1], [0, 0, 1, 1], [], []>} : vector<24x8xbf16>, vector<8x24xbf16>, vector<24x24xf32> -> vector<24x24xf32>
    %123 = vector.broadcast %15 : vector<1x24xf32> to vector<24x24xf32>
    %124 = arith.addf %122, %123 : vector<24x24xf32>
    %cst_42 = arith.constant dense<0xFF800000> : vector<24xf32>
    %125 = vector.multi_reduction <maximumf>, %124, %cst_42 [1] : vector<24x24xf32> to vector<24xf32>
    %126 = vector.shape_cast %125 : vector<24xf32> to vector<24x1xf32>
    %127 = vector.broadcast %126 : vector<24x1xf32> to vector<24x24xf32>
    %128 = arith.subf %124, %127 : vector<24x24xf32>
    %129 = math.exp %128 : vector<24x24xf32>
    %cst_43 = arith.constant dense<0.000000e+00> : vector<24xf32>
    %130 = vector.multi_reduction <add>, %129, %cst_43 [1] : vector<24x24xf32> to vector<24xf32>
    %131 = vector.shape_cast %130 : vector<24xf32> to vector<24x1xf32>
    %132 = tpu.reciprocal %131 {approx = true} : vector<24x1xf32> -> vector<24x1xf32>
    %133 = vector.broadcast %132 : vector<24x1xf32> to vector<24x24xf32>
    %134 = arith.mulf %129, %133 : vector<24x24xf32>
    %135 = arith.truncf %134 : vector<24x24xf32> to vector<24x24xbf16>
    %136 = vector.extract_strided_slice %57 {offsets = [0, 24], sizes = [24, 8], strides = [1, 1]} : vector<24x32xbf16> to vector<24x8xbf16>
    %cst_44 = arith.constant dense<0.000000e+00> : vector<24x8xf32>
    %137 = tpu.matmul %135, %136, %cst_44 {dimension_numbers = #tpu.dot_dimension_numbers<[1], [0], [0], [1], [0, 0, 1, 1], [], []>} : vector<24x24xbf16>, vector<24x8xbf16>, vector<24x8xf32> -> vector<24x8xf32>
    %138 = tpu.concatenate %77, %97, %117, %137 in 1 : vector<24x8xf32>, vector<24x8xf32>, vector<24x8xf32>, vector<24x8xf32> -> vector<24x32xf32>
    %139 = vector.extract_strided_slice %50 {offsets = [24, 0], sizes = [24, 32], strides = [1, 1]} : vector<48x32xf32> to vector<24x32xf32>
    %140 = vector.extract_strided_slice %51 {offsets = [24, 0], sizes = [24, 32], strides = [1, 1]} : vector<48x32xf32> to vector<24x32xf32>
    %141 = tpu.transpose %140, [1, 0] : vector<24x32xf32> -> vector<32x24xf32>
    %142 = vector.extract_strided_slice %52 {offsets = [24, 0], sizes = [24, 32], strides = [1, 1]} : vector<48x32xf32> to vector<24x32xf32>
    %143 = arith.truncf %142 : vector<24x32xf32> to vector<24x32xbf16>
    %144 = vector.extract_strided_slice %139 {offsets = [0, 0], sizes = [24, 8], strides = [1, 1]} : vector<24x32xf32> to vector<24x8xf32>
    %145 = arith.truncf %144 : vector<24x8xf32> to vector<24x8xbf16>
    %146 = vector.extract_strided_slice %141 {offsets = [0, 0], sizes = [8, 24], strides = [1, 1]} : vector<32x24xf32> to vector<8x24xf32>
    %147 = arith.truncf %146 : vector<8x24xf32> to vector<8x24xbf16>
    %cst_45 = arith.constant dense<0.000000e+00> : vector<24x24xf32>
    %148 = tpu.matmul %145, %147, %cst_45 {dimension_numbers = #tpu.dot_dimension_numbers<[1], [0], [0], [1], [0, 0, 1, 1], [], []>} : vector<24x8xbf16>, vector<8x24xbf16>, vector<24x24xf32> -> vector<24x24xf32>
    %149 = vector.broadcast %15 : vector<1x24xf32> to vector<24x24xf32>
    %150 = arith.addf %148, %149 : vector<24x24xf32>
    %cst_46 = arith.constant dense<0xFF800000> : vector<24xf32>
    %151 = vector.multi_reduction <maximumf>, %150, %cst_46 [1] : vector<24x24xf32> to vector<24xf32>
    %152 = vector.shape_cast %151 : vector<24xf32> to vector<24x1xf32>
    %153 = vector.broadcast %152 : vector<24x1xf32> to vector<24x24xf32>
    %154 = arith.subf %150, %153 : vector<24x24xf32>
    %155 = math.exp %154 : vector<24x24xf32>
    %cst_47 = arith.constant dense<0.000000e+00> : vector<24xf32>
    %156 = vector.multi_reduction <add>, %155, %cst_47 [1] : vector<24x24xf32> to vector<24xf32>
    %157 = vector.shape_cast %156 : vector<24xf32> to vector<24x1xf32>
    %158 = tpu.reciprocal %157 {approx = true} : vector<24x1xf32> -> vector<24x1xf32>
    %159 = vector.broadcast %158 : vector<24x1xf32> to vector<24x24xf32>
    %160 = arith.mulf %155, %159 : vector<24x24xf32>
    %161 = arith.truncf %160 : vector<24x24xf32> to vector<24x24xbf16>
    %162 = vector.extract_strided_slice %143 {offsets = [0, 0], sizes = [24, 8], strides = [1, 1]} : vector<24x32xbf16> to vector<24x8xbf16>
    %cst_48 = arith.constant dense<0.000000e+00> : vector<24x8xf32>
    %163 = tpu.matmul %161, %162, %cst_48 {dimension_numbers = #tpu.dot_dimension_numbers<[1], [0], [0], [1], [0, 0, 1, 1], [], []>} : vector<24x24xbf16>, vector<24x8xbf16>, vector<24x8xf32> -> vector<24x8xf32>
    %164 = vector.extract_strided_slice %139 {offsets = [0, 8], sizes = [24, 8], strides = [1, 1]} : vector<24x32xf32> to vector<24x8xf32>
    %165 = arith.truncf %164 : vector<24x8xf32> to vector<24x8xbf16>
    %166 = vector.extract_strided_slice %141 {offsets = [8, 0], sizes = [8, 24], strides = [1, 1]} : vector<32x24xf32> to vector<8x24xf32>
    %167 = arith.truncf %166 : vector<8x24xf32> to vector<8x24xbf16>
    %cst_49 = arith.constant dense<0.000000e+00> : vector<24x24xf32>
    %168 = tpu.matmul %165, %167, %cst_49 {dimension_numbers = #tpu.dot_dimension_numbers<[1], [0], [0], [1], [0, 0, 1, 1], [], []>} : vector<24x8xbf16>, vector<8x24xbf16>, vector<24x24xf32> -> vector<24x24xf32>
    %169 = vector.broadcast %15 : vector<1x24xf32> to vector<24x24xf32>
    %170 = arith.addf %168, %169 : vector<24x24xf32>
    %cst_50 = arith.constant dense<0xFF800000> : vector<24xf32>
    %171 = vector.multi_reduction <maximumf>, %170, %cst_50 [1] : vector<24x24xf32> to vector<24xf32>
    %172 = vector.shape_cast %171 : vector<24xf32> to vector<24x1xf32>
    %173 = vector.broadcast %172 : vector<24x1xf32> to vector<24x24xf32>
    %174 = arith.subf %170, %173 : vector<24x24xf32>
    %175 = math.exp %174 : vector<24x24xf32>
    %cst_51 = arith.constant dense<0.000000e+00> : vector<24xf32>
    %176 = vector.multi_reduction <add>, %175, %cst_51 [1] : vector<24x24xf32> to vector<24xf32>
    %177 = vector.shape_cast %176 : vector<24xf32> to vector<24x1xf32>
    %178 = tpu.reciprocal %177 {approx = true} : vector<24x1xf32> -> vector<24x1xf32>
    %179 = vector.broadcast %178 : vector<24x1xf32> to vector<24x24xf32>
    %180 = arith.mulf %175, %179 : vector<24x24xf32>
    %181 = arith.truncf %180 : vector<24x24xf32> to vector<24x24xbf16>
    %182 = vector.extract_strided_slice %143 {offsets = [0, 8], sizes = [24, 8], strides = [1, 1]} : vector<24x32xbf16> to vector<24x8xbf16>
    %cst_52 = arith.constant dense<0.000000e+00> : vector<24x8xf32>
    %183 = tpu.matmul %181, %182, %cst_52 {dimension_numbers = #tpu.dot_dimension_numbers<[1], [0], [0], [1], [0, 0, 1, 1], [], []>} : vector<24x24xbf16>, vector<24x8xbf16>, vector<24x8xf32> -> vector<24x8xf32>
    %184 = vector.extract_strided_slice %139 {offsets = [0, 16], sizes = [24, 8], strides = [1, 1]} : vector<24x32xf32> to vector<24x8xf32>
    %185 = arith.truncf %184 : vector<24x8xf32> to vector<24x8xbf16>
    %186 = vector.extract_strided_slice %141 {offsets = [16, 0], sizes = [8, 24], strides = [1, 1]} : vector<32x24xf32> to vector<8x24xf32>
    %187 = arith.truncf %186 : vector<8x24xf32> to vector<8x24xbf16>
    %cst_53 = arith.constant dense<0.000000e+00> : vector<24x24xf32>
    %188 = tpu.matmul %185, %187, %cst_53 {dimension_numbers = #tpu.dot_dimension_numbers<[1], [0], [0], [1], [0, 0, 1, 1], [], []>} : vector<24x8xbf16>, vector<8x24xbf16>, vector<24x24xf32> -> vector<24x24xf32>
    %189 = vector.broadcast %15 : vector<1x24xf32> to vector<24x24xf32>
    %190 = arith.addf %188, %189 : vector<24x24xf32>
    %cst_54 = arith.constant dense<0xFF800000> : vector<24xf32>
    %191 = vector.multi_reduction <maximumf>, %190, %cst_54 [1] : vector<24x24xf32> to vector<24xf32>
    %192 = vector.shape_cast %191 : vector<24xf32> to vector<24x1xf32>
    %193 = vector.broadcast %192 : vector<24x1xf32> to vector<24x24xf32>
    %194 = arith.subf %190, %193 : vector<24x24xf32>
    %195 = math.exp %194 : vector<24x24xf32>
    %cst_55 = arith.constant dense<0.000000e+00> : vector<24xf32>
    %196 = vector.multi_reduction <add>, %195, %cst_55 [1] : vector<24x24xf32> to vector<24xf32>
    %197 = vector.shape_cast %196 : vector<24xf32> to vector<24x1xf32>
    %198 = tpu.reciprocal %197 {approx = true} : vector<24x1xf32> -> vector<24x1xf32>
    %199 = vector.broadcast %198 : vector<24x1xf32> to vector<24x24xf32>
    %200 = arith.mulf %195, %199 : vector<24x24xf32>
    %201 = arith.truncf %200 : vector<24x24xf32> to vector<24x24xbf16>
    %202 = vector.extract_strided_slice %143 {offsets = [0, 16], sizes = [24, 8], strides = [1, 1]} : vector<24x32xbf16> to vector<24x8xbf16>
    %cst_56 = arith.constant dense<0.000000e+00> : vector<24x8xf32>
    %203 = tpu.matmul %201, %202, %cst_56 {dimension_numbers = #tpu.dot_dimension_numbers<[1], [0], [0], [1], [0, 0, 1, 1], [], []>} : vector<24x24xbf16>, vector<24x8xbf16>, vector<24x8xf32> -> vector<24x8xf32>
    %204 = vector.extract_strided_slice %139 {offsets = [0, 24], sizes = [24, 8], strides = [1, 1]} : vector<24x32xf32> to vector<24x8xf32>
    %205 = arith.truncf %204 : vector<24x8xf32> to vector<24x8xbf16>
    %206 = vector.extract_strided_slice %141 {offsets = [24, 0], sizes = [8, 24], strides = [1, 1]} : vector<32x24xf32> to vector<8x24xf32>
    %207 = arith.truncf %206 : vector<8x24xf32> to vector<8x24xbf16>
    %cst_57 = arith.constant dense<0.000000e+00> : vector<24x24xf32>
    %208 = tpu.matmul %205, %207, %cst_57 {dimension_numbers = #tpu.dot_dimension_numbers<[1], [0], [0], [1], [0, 0, 1, 1], [], []>} : vector<24x8xbf16>, vector<8x24xbf16>, vector<24x24xf32> -> vector<24x24xf32>
    %209 = vector.broadcast %15 : vector<1x24xf32> to vector<24x24xf32>
    %210 = arith.addf %208, %209 : vector<24x24xf32>
    %cst_58 = arith.constant dense<0xFF800000> : vector<24xf32>
    %211 = vector.multi_reduction <maximumf>, %210, %cst_58 [1] : vector<24x24xf32> to vector<24xf32>
    %212 = vector.shape_cast %211 : vector<24xf32> to vector<24x1xf32>
    %213 = vector.broadcast %212 : vector<24x1xf32> to vector<24x24xf32>
    %214 = arith.subf %210, %213 : vector<24x24xf32>
    %215 = math.exp %214 : vector<24x24xf32>
    %cst_59 = arith.constant dense<0.000000e+00> : vector<24xf32>
    %216 = vector.multi_reduction <add>, %215, %cst_59 [1] : vector<24x24xf32> to vector<24xf32>
    %217 = vector.shape_cast %216 : vector<24xf32> to vector<24x1xf32>
    %218 = tpu.reciprocal %217 {approx = true} : vector<24x1xf32> -> vector<24x1xf32>
    %219 = vector.broadcast %218 : vector<24x1xf32> to vector<24x24xf32>
    %220 = arith.mulf %215, %219 : vector<24x24xf32>
    %221 = arith.truncf %220 : vector<24x24xf32> to vector<24x24xbf16>
    %222 = vector.extract_strided_slice %143 {offsets = [0, 24], sizes = [24, 8], strides = [1, 1]} : vector<24x32xbf16> to vector<24x8xbf16>
    %cst_60 = arith.constant dense<0.000000e+00> : vector<24x8xf32>
    %223 = tpu.matmul %221, %222, %cst_60 {dimension_numbers = #tpu.dot_dimension_numbers<[1], [0], [0], [1], [0, 0, 1, 1], [], []>} : vector<24x24xbf16>, vector<24x8xbf16>, vector<24x8xf32> -> vector<24x8xf32>
    %224 = tpu.concatenate %163, %183, %203, %223 in 1 : vector<24x8xf32>, vector<24x8xf32>, vector<24x8xf32>, vector<24x8xf32> -> vector<24x32xf32>
    %225 = tpu.concatenate %138, %224 in 0 : vector<24x32xf32>, vector<24x32xf32> -> vector<48x32xf32>
    %c0_61 = arith.constant 0 : index
    %c0_62 = arith.constant 0 : index
    %c0_63 = arith.constant 0 : index
    %226 = vector.load %arg9[%c0_61, %c0_62, %c0_63] : memref<2x32x32xbf16, #tpu.memory_space<vmem>>, vector<1x32x32xbf16>
    %227 = vector.shape_cast %226 : vector<1x32x32xbf16> to vector<32x32xbf16>
    %c0_64 = arith.constant 0 : index
    %c0_65 = arith.constant 0 : index
    %c0_66 = arith.constant 0 : index
    %228 = vector.load %arg10[%c0_64, %c0_65, %c0_66] : memref<2x1x32xf32, #tpu.memory_space<vmem>>, vector<1x1x32xf32>
    %229 = vector.shape_cast %228 : vector<1x1x32xf32> to vector<1x32xf32>
    %230 = arith.truncf %225 : vector<48x32xf32> to vector<48x32xbf16>
    %cst_67 = arith.constant dense<0.000000e+00> : vector<48x32xf32>
    %231 = tpu.matmul %230, %227, %cst_67 {dimension_numbers = #tpu.dot_dimension_numbers<[1], [0], [0], [1], [0, 0, 1, 1], [], []>} : vector<48x32xbf16>, vector<32x32xbf16>, vector<48x32xf32> -> vector<48x32xf32>
    %232 = vector.broadcast %229 : vector<1x32xf32> to vector<48x32xf32>
    %233 = arith.addf %231, %232 : vector<48x32xf32>
    %234 = arith.addf %9, %233 : vector<48x32xf32>
    %c0_68 = arith.constant 0 : index
    %c0_69 = arith.constant 0 : index
    %c0_70 = arith.constant 0 : index
    %235 = vector.load %arg11[%c0_68, %c0_69, %c0_70] : memref<2x1x32xf32, #tpu.memory_space<vmem>>, vector<1x1x32xf32>
    %236 = vector.shape_cast %235 : vector<1x1x32xf32> to vector<1x32xf32>
    %c0_71 = arith.constant 0 : index
    %c0_72 = arith.constant 0 : index
    %c0_73 = arith.constant 0 : index
    %237 = vector.load %arg12[%c0_71, %c0_72, %c0_73] : memref<2x1x32xf32, #tpu.memory_space<vmem>>, vector<1x1x32xf32>
    %238 = vector.shape_cast %237 : vector<1x1x32xf32> to vector<1x32xf32>
    %cst_74 = arith.constant dense<0.000000e+00> : vector<48xf32>
    %239 = vector.multi_reduction <add>, %234, %cst_74 [1] : vector<48x32xf32> to vector<48xf32>
    %240 = vector.shape_cast %239 : vector<48xf32> to vector<48x1xf32>
    %cst_75 = arith.constant 3.200000e+01 : f32
    %241 = vector.broadcast %cst_75 : f32 to vector<48x1xf32>
    %242 = arith.divf %240, %241 : vector<48x1xf32>
    %243 = vector.broadcast %242 : vector<48x1xf32> to vector<48x32xf32>
    %244 = arith.subf %234, %243 : vector<48x32xf32>
    %245 = arith.mulf %244, %244 : vector<48x32xf32>
    %cst_76 = arith.constant dense<0.000000e+00> : vector<48xf32>
    %246 = vector.multi_reduction <add>, %245, %cst_76 [1] : vector<48x32xf32> to vector<48xf32>
    %247 = vector.shape_cast %246 : vector<48xf32> to vector<48x1xf32>
    %cst_77 = arith.constant 3.200000e+01 : f32
    %248 = vector.broadcast %cst_77 : f32 to vector<48x1xf32>
    %249 = arith.divf %247, %248 : vector<48x1xf32>
    %cst_78 = arith.constant 9.99999974E-6 : f32
    %250 = vector.broadcast %cst_78 : f32 to vector<48x1xf32>
    %251 = arith.addf %249, %250 : vector<48x1xf32>
    %252 = math.rsqrt %251 : vector<48x1xf32>
    %253 = vector.broadcast %252 : vector<48x1xf32> to vector<48x32xf32>
    %254 = arith.mulf %244, %253 : vector<48x32xf32>
    %255 = vector.broadcast %236 : vector<1x32xf32> to vector<48x32xf32>
    %256 = arith.mulf %254, %255 : vector<48x32xf32>
    %257 = vector.broadcast %238 : vector<1x32xf32> to vector<48x32xf32>
    %258 = arith.addf %256, %257 : vector<48x32xf32>
    %c0_79 = arith.constant 0 : index
    %c0_80 = arith.constant 0 : index
    %c0_81 = arith.constant 0 : index
    %259 = vector.load %arg13[%c0_79, %c0_80, %c0_81] : memref<2x32x64xbf16, #tpu.memory_space<vmem>>, vector<1x32x64xbf16>
    %260 = vector.shape_cast %259 : vector<1x32x64xbf16> to vector<32x64xbf16>
    %c0_82 = arith.constant 0 : index
    %c0_83 = arith.constant 0 : index
    %c0_84 = arith.constant 0 : index
    %261 = vector.load %arg14[%c0_82, %c0_83, %c0_84] : memref<2x1x64xf32, #tpu.memory_space<vmem>>, vector<1x1x64xf32>
    %262 = vector.shape_cast %261 : vector<1x1x64xf32> to vector<1x64xf32>
    %263 = arith.truncf %258 : vector<48x32xf32> to vector<48x32xbf16>
    %cst_85 = arith.constant dense<0.000000e+00> : vector<48x64xf32>
    %264 = tpu.matmul %263, %260, %cst_85 {dimension_numbers = #tpu.dot_dimension_numbers<[1], [0], [0], [1], [0, 0, 1, 1], [], []>} : vector<48x32xbf16>, vector<32x64xbf16>, vector<48x64xf32> -> vector<48x64xf32>
    %265 = vector.broadcast %262 : vector<1x64xf32> to vector<48x64xf32>
    %266 = arith.addf %264, %265 : vector<48x64xf32>
    %267 = arith.mulf %266, %266 : vector<48x64xf32>
    %cst_86 = arith.constant 5.000000e-01 : f32
    %268 = vector.broadcast %cst_86 : f32 to vector<48x64xf32>
    %269 = arith.mulf %268, %266 : vector<48x64xf32>
    %cst_87 = arith.constant 0.797884583 : f32
    %270 = vector.broadcast %cst_87 : f32 to vector<48x64xf32>
    %271 = arith.mulf %270, %266 : vector<48x64xf32>
    %cst_88 = arith.constant 4.471500e-02 : f32
    %272 = vector.broadcast %cst_88 : f32 to vector<48x64xf32>
    %273 = arith.mulf %272, %267 : vector<48x64xf32>
    %cst_89 = arith.constant 1.000000e+00 : f32
    %274 = vector.broadcast %cst_89 : f32 to vector<48x64xf32>
    %275 = arith.addf %274, %273 : vector<48x64xf32>
    %276 = arith.mulf %271, %275 : vector<48x64xf32>
    %277 = math.tanh %276 : vector<48x64xf32>
    %cst_90 = arith.constant 1.000000e+00 : f32
    %278 = vector.broadcast %cst_90 : f32 to vector<48x64xf32>
    %279 = arith.addf %278, %277 : vector<48x64xf32>
    %280 = arith.mulf %269, %279 : vector<48x64xf32>
    %c0_91 = arith.constant 0 : index
    %c0_92 = arith.constant 0 : index
    %c0_93 = arith.constant 0 : index
    %281 = vector.load %arg15[%c0_91, %c0_92, %c0_93] : memref<2x64x32xbf16, #tpu.memory_space<vmem>>, vector<1x64x32xbf16>
    %282 = vector.shape_cast %281 : vector<1x64x32xbf16> to vector<64x32xbf16>
    %c0_94 = arith.constant 0 : index
    %c0_95 = arith.constant 0 : index
    %c0_96 = arith.constant 0 : index
    %283 = vector.load %arg16[%c0_94, %c0_95, %c0_96] : memref<2x1x32xf32, #tpu.memory_space<vmem>>, vector<1x1x32xf32>
    %284 = vector.shape_cast %283 : vector<1x1x32xf32> to vector<1x32xf32>
    %285 = arith.truncf %280 : vector<48x64xf32> to vector<48x64xbf16>
    %cst_97 = arith.constant dense<0.000000e+00> : vector<48x32xf32>
    %286 = tpu.matmul %285, %282, %cst_97 {dimension_numbers = #tpu.dot_dimension_numbers<[1], [0], [0], [1], [0, 0, 1, 1], [], []>} : vector<48x64xbf16>, vector<64x32xbf16>, vector<48x32xf32> -> vector<48x32xf32>
    %287 = vector.broadcast %284 : vector<1x32xf32> to vector<48x32xf32>
    %288 = arith.addf %286, %287 : vector<48x32xf32>
    %289 = arith.addf %234, %288 : vector<48x32xf32>
    %c1 = arith.constant 1 : index
    %c0_98 = arith.constant 0 : index
    %c0_99 = arith.constant 0 : index
    %290 = vector.load %arg5[%c1, %c0_98, %c0_99] : memref<2x1x32xf32, #tpu.memory_space<vmem>>, vector<1x1x32xf32>
    %291 = vector.shape_cast %290 : vector<1x1x32xf32> to vector<1x32xf32>
    %c1_100 = arith.constant 1 : index
    %c0_101 = arith.constant 0 : index
    %c0_102 = arith.constant 0 : index
    %292 = vector.load %arg6[%c1_100, %c0_101, %c0_102] : memref<2x1x32xf32, #tpu.memory_space<vmem>>, vector<1x1x32xf32>
    %293 = vector.shape_cast %292 : vector<1x1x32xf32> to vector<1x32xf32>
    %cst_103 = arith.constant dense<0.000000e+00> : vector<48xf32>
    %294 = vector.multi_reduction <add>, %289, %cst_103 [1] : vector<48x32xf32> to vector<48xf32>
    %295 = vector.shape_cast %294 : vector<48xf32> to vector<48x1xf32>
    %cst_104 = arith.constant 3.200000e+01 : f32
    %296 = vector.broadcast %cst_104 : f32 to vector<48x1xf32>
    %297 = arith.divf %295, %296 : vector<48x1xf32>
    %298 = vector.broadcast %297 : vector<48x1xf32> to vector<48x32xf32>
    %299 = arith.subf %289, %298 : vector<48x32xf32>
    %300 = arith.mulf %299, %299 : vector<48x32xf32>
    %cst_105 = arith.constant dense<0.000000e+00> : vector<48xf32>
    %301 = vector.multi_reduction <add>, %300, %cst_105 [1] : vector<48x32xf32> to vector<48xf32>
    %302 = vector.shape_cast %301 : vector<48xf32> to vector<48x1xf32>
    %cst_106 = arith.constant 3.200000e+01 : f32
    %303 = vector.broadcast %cst_106 : f32 to vector<48x1xf32>
    %304 = arith.divf %302, %303 : vector<48x1xf32>
    %cst_107 = arith.constant 9.99999974E-6 : f32
    %305 = vector.broadcast %cst_107 : f32 to vector<48x1xf32>
    %306 = arith.addf %304, %305 : vector<48x1xf32>
    %307 = math.rsqrt %306 : vector<48x1xf32>
    %308 = vector.broadcast %307 : vector<48x1xf32> to vector<48x32xf32>
    %309 = arith.mulf %299, %308 : vector<48x32xf32>
    %310 = vector.broadcast %291 : vector<1x32xf32> to vector<48x32xf32>
    %311 = arith.mulf %309, %310 : vector<48x32xf32>
    %312 = vector.broadcast %293 : vector<1x32xf32> to vector<48x32xf32>
    %313 = arith.addf %311, %312 : vector<48x32xf32>
    %c1_108 = arith.constant 1 : index
    %c0_109 = arith.constant 0 : index
    %c0_110 = arith.constant 0 : index
    %314 = vector.load %arg7[%c1_108, %c0_109, %c0_110] : memref<2x32x96xbf16, #tpu.memory_space<vmem>>, vector<1x32x96xbf16>
    %315 = vector.shape_cast %314 : vector<1x32x96xbf16> to vector<32x96xbf16>
    %c1_111 = arith.constant 1 : index
    %c0_112 = arith.constant 0 : index
    %c0_113 = arith.constant 0 : index
    %316 = vector.load %arg8[%c1_111, %c0_112, %c0_113] : memref<2x1x96xf32, #tpu.memory_space<vmem>>, vector<1x1x96xf32>
    %317 = vector.shape_cast %316 : vector<1x1x96xf32> to vector<1x96xf32>
    %318 = arith.truncf %313 : vector<48x32xf32> to vector<48x32xbf16>
    %cst_114 = arith.constant dense<0.000000e+00> : vector<48x96xf32>
    %319 = tpu.matmul %318, %315, %cst_114 {dimension_numbers = #tpu.dot_dimension_numbers<[1], [0], [0], [1], [0, 0, 1, 1], [], []>} : vector<48x32xbf16>, vector<32x96xbf16>, vector<48x96xf32> -> vector<48x96xf32>
    %320 = vector.broadcast %317 : vector<1x96xf32> to vector<48x96xf32>
    %321 = arith.addf %319, %320 : vector<48x96xf32>
    %322 = vector.extract_strided_slice %321 {offsets = [0, 0], sizes = [48, 32], strides = [1, 1]} : vector<48x96xf32> to vector<48x32xf32>
    %cst_115 = arith.constant 0.353553385 : f32
    %323 = vector.broadcast %cst_115 : f32 to vector<48x32xf32>
    %324 = arith.mulf %322, %323 : vector<48x32xf32>
    %325 = vector.extract_strided_slice %321 {offsets = [0, 32], sizes = [48, 32], strides = [1, 1]} : vector<48x96xf32> to vector<48x32xf32>
    %326 = vector.extract_strided_slice %321 {offsets = [0, 64], sizes = [48, 32], strides = [1, 1]} : vector<48x96xf32> to vector<48x32xf32>
    %327 = vector.extract_strided_slice %324 {offsets = [0, 0], sizes = [24, 32], strides = [1, 1]} : vector<48x32xf32> to vector<24x32xf32>
    %328 = vector.extract_strided_slice %325 {offsets = [0, 0], sizes = [24, 32], strides = [1, 1]} : vector<48x32xf32> to vector<24x32xf32>
    %329 = tpu.transpose %328, [1, 0] : vector<24x32xf32> -> vector<32x24xf32>
    %330 = vector.extract_strided_slice %326 {offsets = [0, 0], sizes = [24, 32], strides = [1, 1]} : vector<48x32xf32> to vector<24x32xf32>
    %331 = arith.truncf %330 : vector<24x32xf32> to vector<24x32xbf16>
    %332 = vector.extract_strided_slice %327 {offsets = [0, 0], sizes = [24, 8], strides = [1, 1]} : vector<24x32xf32> to vector<24x8xf32>
    %333 = arith.truncf %332 : vector<24x8xf32> to vector<24x8xbf16>
    %334 = vector.extract_strided_slice %329 {offsets = [0, 0], sizes = [8, 24], strides = [1, 1]} : vector<32x24xf32> to vector<8x24xf32>
    %335 = arith.truncf %334 : vector<8x24xf32> to vector<8x24xbf16>
    %cst_116 = arith.constant dense<0.000000e+00> : vector<24x24xf32>
    %336 = tpu.matmul %333, %335, %cst_116 {dimension_numbers = #tpu.dot_dimension_numbers<[1], [0], [0], [1], [0, 0, 1, 1], [], []>} : vector<24x8xbf16>, vector<8x24xbf16>, vector<24x24xf32> -> vector<24x24xf32>
    %337 = vector.broadcast %15 : vector<1x24xf32> to vector<24x24xf32>
    %338 = arith.addf %336, %337 : vector<24x24xf32>
    %cst_117 = arith.constant dense<0xFF800000> : vector<24xf32>
    %339 = vector.multi_reduction <maximumf>, %338, %cst_117 [1] : vector<24x24xf32> to vector<24xf32>
    %340 = vector.shape_cast %339 : vector<24xf32> to vector<24x1xf32>
    %341 = vector.broadcast %340 : vector<24x1xf32> to vector<24x24xf32>
    %342 = arith.subf %338, %341 : vector<24x24xf32>
    %343 = math.exp %342 : vector<24x24xf32>
    %cst_118 = arith.constant dense<0.000000e+00> : vector<24xf32>
    %344 = vector.multi_reduction <add>, %343, %cst_118 [1] : vector<24x24xf32> to vector<24xf32>
    %345 = vector.shape_cast %344 : vector<24xf32> to vector<24x1xf32>
    %346 = tpu.reciprocal %345 {approx = true} : vector<24x1xf32> -> vector<24x1xf32>
    %347 = vector.broadcast %346 : vector<24x1xf32> to vector<24x24xf32>
    %348 = arith.mulf %343, %347 : vector<24x24xf32>
    %349 = arith.truncf %348 : vector<24x24xf32> to vector<24x24xbf16>
    %350 = vector.extract_strided_slice %331 {offsets = [0, 0], sizes = [24, 8], strides = [1, 1]} : vector<24x32xbf16> to vector<24x8xbf16>
    %cst_119 = arith.constant dense<0.000000e+00> : vector<24x8xf32>
    %351 = tpu.matmul %349, %350, %cst_119 {dimension_numbers = #tpu.dot_dimension_numbers<[1], [0], [0], [1], [0, 0, 1, 1], [], []>} : vector<24x24xbf16>, vector<24x8xbf16>, vector<24x8xf32> -> vector<24x8xf32>
    %352 = vector.extract_strided_slice %327 {offsets = [0, 8], sizes = [24, 8], strides = [1, 1]} : vector<24x32xf32> to vector<24x8xf32>
    %353 = arith.truncf %352 : vector<24x8xf32> to vector<24x8xbf16>
    %354 = vector.extract_strided_slice %329 {offsets = [8, 0], sizes = [8, 24], strides = [1, 1]} : vector<32x24xf32> to vector<8x24xf32>
    %355 = arith.truncf %354 : vector<8x24xf32> to vector<8x24xbf16>
    %cst_120 = arith.constant dense<0.000000e+00> : vector<24x24xf32>
    %356 = tpu.matmul %353, %355, %cst_120 {dimension_numbers = #tpu.dot_dimension_numbers<[1], [0], [0], [1], [0, 0, 1, 1], [], []>} : vector<24x8xbf16>, vector<8x24xbf16>, vector<24x24xf32> -> vector<24x24xf32>
    %357 = vector.broadcast %15 : vector<1x24xf32> to vector<24x24xf32>
    %358 = arith.addf %356, %357 : vector<24x24xf32>
    %cst_121 = arith.constant dense<0xFF800000> : vector<24xf32>
    %359 = vector.multi_reduction <maximumf>, %358, %cst_121 [1] : vector<24x24xf32> to vector<24xf32>
    %360 = vector.shape_cast %359 : vector<24xf32> to vector<24x1xf32>
    %361 = vector.broadcast %360 : vector<24x1xf32> to vector<24x24xf32>
    %362 = arith.subf %358, %361 : vector<24x24xf32>
    %363 = math.exp %362 : vector<24x24xf32>
    %cst_122 = arith.constant dense<0.000000e+00> : vector<24xf32>
    %364 = vector.multi_reduction <add>, %363, %cst_122 [1] : vector<24x24xf32> to vector<24xf32>
    %365 = vector.shape_cast %364 : vector<24xf32> to vector<24x1xf32>
    %366 = tpu.reciprocal %365 {approx = true} : vector<24x1xf32> -> vector<24x1xf32>
    %367 = vector.broadcast %366 : vector<24x1xf32> to vector<24x24xf32>
    %368 = arith.mulf %363, %367 : vector<24x24xf32>
    %369 = arith.truncf %368 : vector<24x24xf32> to vector<24x24xbf16>
    %370 = vector.extract_strided_slice %331 {offsets = [0, 8], sizes = [24, 8], strides = [1, 1]} : vector<24x32xbf16> to vector<24x8xbf16>
    %cst_123 = arith.constant dense<0.000000e+00> : vector<24x8xf32>
    %371 = tpu.matmul %369, %370, %cst_123 {dimension_numbers = #tpu.dot_dimension_numbers<[1], [0], [0], [1], [0, 0, 1, 1], [], []>} : vector<24x24xbf16>, vector<24x8xbf16>, vector<24x8xf32> -> vector<24x8xf32>
    %372 = vector.extract_strided_slice %327 {offsets = [0, 16], sizes = [24, 8], strides = [1, 1]} : vector<24x32xf32> to vector<24x8xf32>
    %373 = arith.truncf %372 : vector<24x8xf32> to vector<24x8xbf16>
    %374 = vector.extract_strided_slice %329 {offsets = [16, 0], sizes = [8, 24], strides = [1, 1]} : vector<32x24xf32> to vector<8x24xf32>
    %375 = arith.truncf %374 : vector<8x24xf32> to vector<8x24xbf16>
    %cst_124 = arith.constant dense<0.000000e+00> : vector<24x24xf32>
    %376 = tpu.matmul %373, %375, %cst_124 {dimension_numbers = #tpu.dot_dimension_numbers<[1], [0], [0], [1], [0, 0, 1, 1], [], []>} : vector<24x8xbf16>, vector<8x24xbf16>, vector<24x24xf32> -> vector<24x24xf32>
    %377 = vector.broadcast %15 : vector<1x24xf32> to vector<24x24xf32>
    %378 = arith.addf %376, %377 : vector<24x24xf32>
    %cst_125 = arith.constant dense<0xFF800000> : vector<24xf32>
    %379 = vector.multi_reduction <maximumf>, %378, %cst_125 [1] : vector<24x24xf32> to vector<24xf32>
    %380 = vector.shape_cast %379 : vector<24xf32> to vector<24x1xf32>
    %381 = vector.broadcast %380 : vector<24x1xf32> to vector<24x24xf32>
    %382 = arith.subf %378, %381 : vector<24x24xf32>
    %383 = math.exp %382 : vector<24x24xf32>
    %cst_126 = arith.constant dense<0.000000e+00> : vector<24xf32>
    %384 = vector.multi_reduction <add>, %383, %cst_126 [1] : vector<24x24xf32> to vector<24xf32>
    %385 = vector.shape_cast %384 : vector<24xf32> to vector<24x1xf32>
    %386 = tpu.reciprocal %385 {approx = true} : vector<24x1xf32> -> vector<24x1xf32>
    %387 = vector.broadcast %386 : vector<24x1xf32> to vector<24x24xf32>
    %388 = arith.mulf %383, %387 : vector<24x24xf32>
    %389 = arith.truncf %388 : vector<24x24xf32> to vector<24x24xbf16>
    %390 = vector.extract_strided_slice %331 {offsets = [0, 16], sizes = [24, 8], strides = [1, 1]} : vector<24x32xbf16> to vector<24x8xbf16>
    %cst_127 = arith.constant dense<0.000000e+00> : vector<24x8xf32>
    %391 = tpu.matmul %389, %390, %cst_127 {dimension_numbers = #tpu.dot_dimension_numbers<[1], [0], [0], [1], [0, 0, 1, 1], [], []>} : vector<24x24xbf16>, vector<24x8xbf16>, vector<24x8xf32> -> vector<24x8xf32>
    %392 = vector.extract_strided_slice %327 {offsets = [0, 24], sizes = [24, 8], strides = [1, 1]} : vector<24x32xf32> to vector<24x8xf32>
    %393 = arith.truncf %392 : vector<24x8xf32> to vector<24x8xbf16>
    %394 = vector.extract_strided_slice %329 {offsets = [24, 0], sizes = [8, 24], strides = [1, 1]} : vector<32x24xf32> to vector<8x24xf32>
    %395 = arith.truncf %394 : vector<8x24xf32> to vector<8x24xbf16>
    %cst_128 = arith.constant dense<0.000000e+00> : vector<24x24xf32>
    %396 = tpu.matmul %393, %395, %cst_128 {dimension_numbers = #tpu.dot_dimension_numbers<[1], [0], [0], [1], [0, 0, 1, 1], [], []>} : vector<24x8xbf16>, vector<8x24xbf16>, vector<24x24xf32> -> vector<24x24xf32>
    %397 = vector.broadcast %15 : vector<1x24xf32> to vector<24x24xf32>
    %398 = arith.addf %396, %397 : vector<24x24xf32>
    %cst_129 = arith.constant dense<0xFF800000> : vector<24xf32>
    %399 = vector.multi_reduction <maximumf>, %398, %cst_129 [1] : vector<24x24xf32> to vector<24xf32>
    %400 = vector.shape_cast %399 : vector<24xf32> to vector<24x1xf32>
    %401 = vector.broadcast %400 : vector<24x1xf32> to vector<24x24xf32>
    %402 = arith.subf %398, %401 : vector<24x24xf32>
    %403 = math.exp %402 : vector<24x24xf32>
    %cst_130 = arith.constant dense<0.000000e+00> : vector<24xf32>
    %404 = vector.multi_reduction <add>, %403, %cst_130 [1] : vector<24x24xf32> to vector<24xf32>
    %405 = vector.shape_cast %404 : vector<24xf32> to vector<24x1xf32>
    %406 = tpu.reciprocal %405 {approx = true} : vector<24x1xf32> -> vector<24x1xf32>
    %407 = vector.broadcast %406 : vector<24x1xf32> to vector<24x24xf32>
    %408 = arith.mulf %403, %407 : vector<24x24xf32>
    %409 = arith.truncf %408 : vector<24x24xf32> to vector<24x24xbf16>
    %410 = vector.extract_strided_slice %331 {offsets = [0, 24], sizes = [24, 8], strides = [1, 1]} : vector<24x32xbf16> to vector<24x8xbf16>
    %cst_131 = arith.constant dense<0.000000e+00> : vector<24x8xf32>
    %411 = tpu.matmul %409, %410, %cst_131 {dimension_numbers = #tpu.dot_dimension_numbers<[1], [0], [0], [1], [0, 0, 1, 1], [], []>} : vector<24x24xbf16>, vector<24x8xbf16>, vector<24x8xf32> -> vector<24x8xf32>
    %412 = tpu.concatenate %351, %371, %391, %411 in 1 : vector<24x8xf32>, vector<24x8xf32>, vector<24x8xf32>, vector<24x8xf32> -> vector<24x32xf32>
    %413 = vector.extract_strided_slice %324 {offsets = [24, 0], sizes = [24, 32], strides = [1, 1]} : vector<48x32xf32> to vector<24x32xf32>
    %414 = vector.extract_strided_slice %325 {offsets = [24, 0], sizes = [24, 32], strides = [1, 1]} : vector<48x32xf32> to vector<24x32xf32>
    %415 = tpu.transpose %414, [1, 0] : vector<24x32xf32> -> vector<32x24xf32>
    %416 = vector.extract_strided_slice %326 {offsets = [24, 0], sizes = [24, 32], strides = [1, 1]} : vector<48x32xf32> to vector<24x32xf32>
    %417 = arith.truncf %416 : vector<24x32xf32> to vector<24x32xbf16>
    %418 = vector.extract_strided_slice %413 {offsets = [0, 0], sizes = [24, 8], strides = [1, 1]} : vector<24x32xf32> to vector<24x8xf32>
    %419 = arith.truncf %418 : vector<24x8xf32> to vector<24x8xbf16>
    %420 = vector.extract_strided_slice %415 {offsets = [0, 0], sizes = [8, 24], strides = [1, 1]} : vector<32x24xf32> to vector<8x24xf32>
    %421 = arith.truncf %420 : vector<8x24xf32> to vector<8x24xbf16>
    %cst_132 = arith.constant dense<0.000000e+00> : vector<24x24xf32>
    %422 = tpu.matmul %419, %421, %cst_132 {dimension_numbers = #tpu.dot_dimension_numbers<[1], [0], [0], [1], [0, 0, 1, 1], [], []>} : vector<24x8xbf16>, vector<8x24xbf16>, vector<24x24xf32> -> vector<24x24xf32>
    %423 = vector.broadcast %15 : vector<1x24xf32> to vector<24x24xf32>
    %424 = arith.addf %422, %423 : vector<24x24xf32>
    %cst_133 = arith.constant dense<0xFF800000> : vector<24xf32>
    %425 = vector.multi_reduction <maximumf>, %424, %cst_133 [1] : vector<24x24xf32> to vector<24xf32>
    %426 = vector.shape_cast %425 : vector<24xf32> to vector<24x1xf32>
    %427 = vector.broadcast %426 : vector<24x1xf32> to vector<24x24xf32>
    %428 = arith.subf %424, %427 : vector<24x24xf32>
    %429 = math.exp %428 : vector<24x24xf32>
    %cst_134 = arith.constant dense<0.000000e+00> : vector<24xf32>
    %430 = vector.multi_reduction <add>, %429, %cst_134 [1] : vector<24x24xf32> to vector<24xf32>
    %431 = vector.shape_cast %430 : vector<24xf32> to vector<24x1xf32>
    %432 = tpu.reciprocal %431 {approx = true} : vector<24x1xf32> -> vector<24x1xf32>
    %433 = vector.broadcast %432 : vector<24x1xf32> to vector<24x24xf32>
    %434 = arith.mulf %429, %433 : vector<24x24xf32>
    %435 = arith.truncf %434 : vector<24x24xf32> to vector<24x24xbf16>
    %436 = vector.extract_strided_slice %417 {offsets = [0, 0], sizes = [24, 8], strides = [1, 1]} : vector<24x32xbf16> to vector<24x8xbf16>
    %cst_135 = arith.constant dense<0.000000e+00> : vector<24x8xf32>
    %437 = tpu.matmul %435, %436, %cst_135 {dimension_numbers = #tpu.dot_dimension_numbers<[1], [0], [0], [1], [0, 0, 1, 1], [], []>} : vector<24x24xbf16>, vector<24x8xbf16>, vector<24x8xf32> -> vector<24x8xf32>
    %438 = vector.extract_strided_slice %413 {offsets = [0, 8], sizes = [24, 8], strides = [1, 1]} : vector<24x32xf32> to vector<24x8xf32>
    %439 = arith.truncf %438 : vector<24x8xf32> to vector<24x8xbf16>
    %440 = vector.extract_strided_slice %415 {offsets = [8, 0], sizes = [8, 24], strides = [1, 1]} : vector<32x24xf32> to vector<8x24xf32>
    %441 = arith.truncf %440 : vector<8x24xf32> to vector<8x24xbf16>
    %cst_136 = arith.constant dense<0.000000e+00> : vector<24x24xf32>
    %442 = tpu.matmul %439, %441, %cst_136 {dimension_numbers = #tpu.dot_dimension_numbers<[1], [0], [0], [1], [0, 0, 1, 1], [], []>} : vector<24x8xbf16>, vector<8x24xbf16>, vector<24x24xf32> -> vector<24x24xf32>
    %443 = vector.broadcast %15 : vector<1x24xf32> to vector<24x24xf32>
    %444 = arith.addf %442, %443 : vector<24x24xf32>
    %cst_137 = arith.constant dense<0xFF800000> : vector<24xf32>
    %445 = vector.multi_reduction <maximumf>, %444, %cst_137 [1] : vector<24x24xf32> to vector<24xf32>
    %446 = vector.shape_cast %445 : vector<24xf32> to vector<24x1xf32>
    %447 = vector.broadcast %446 : vector<24x1xf32> to vector<24x24xf32>
    %448 = arith.subf %444, %447 : vector<24x24xf32>
    %449 = math.exp %448 : vector<24x24xf32>
    %cst_138 = arith.constant dense<0.000000e+00> : vector<24xf32>
    %450 = vector.multi_reduction <add>, %449, %cst_138 [1] : vector<24x24xf32> to vector<24xf32>
    %451 = vector.shape_cast %450 : vector<24xf32> to vector<24x1xf32>
    %452 = tpu.reciprocal %451 {approx = true} : vector<24x1xf32> -> vector<24x1xf32>
    %453 = vector.broadcast %452 : vector<24x1xf32> to vector<24x24xf32>
    %454 = arith.mulf %449, %453 : vector<24x24xf32>
    %455 = arith.truncf %454 : vector<24x24xf32> to vector<24x24xbf16>
    %456 = vector.extract_strided_slice %417 {offsets = [0, 8], sizes = [24, 8], strides = [1, 1]} : vector<24x32xbf16> to vector<24x8xbf16>
    %cst_139 = arith.constant dense<0.000000e+00> : vector<24x8xf32>
    %457 = tpu.matmul %455, %456, %cst_139 {dimension_numbers = #tpu.dot_dimension_numbers<[1], [0], [0], [1], [0, 0, 1, 1], [], []>} : vector<24x24xbf16>, vector<24x8xbf16>, vector<24x8xf32> -> vector<24x8xf32>
    %458 = vector.extract_strided_slice %413 {offsets = [0, 16], sizes = [24, 8], strides = [1, 1]} : vector<24x32xf32> to vector<24x8xf32>
    %459 = arith.truncf %458 : vector<24x8xf32> to vector<24x8xbf16>
    %460 = vector.extract_strided_slice %415 {offsets = [16, 0], sizes = [8, 24], strides = [1, 1]} : vector<32x24xf32> to vector<8x24xf32>
    %461 = arith.truncf %460 : vector<8x24xf32> to vector<8x24xbf16>
    %cst_140 = arith.constant dense<0.000000e+00> : vector<24x24xf32>
    %462 = tpu.matmul %459, %461, %cst_140 {dimension_numbers = #tpu.dot_dimension_numbers<[1], [0], [0], [1], [0, 0, 1, 1], [], []>} : vector<24x8xbf16>, vector<8x24xbf16>, vector<24x24xf32> -> vector<24x24xf32>
    %463 = vector.broadcast %15 : vector<1x24xf32> to vector<24x24xf32>
    %464 = arith.addf %462, %463 : vector<24x24xf32>
    %cst_141 = arith.constant dense<0xFF800000> : vector<24xf32>
    %465 = vector.multi_reduction <maximumf>, %464, %cst_141 [1] : vector<24x24xf32> to vector<24xf32>
    %466 = vector.shape_cast %465 : vector<24xf32> to vector<24x1xf32>
    %467 = vector.broadcast %466 : vector<24x1xf32> to vector<24x24xf32>
    %468 = arith.subf %464, %467 : vector<24x24xf32>
    %469 = math.exp %468 : vector<24x24xf32>
    %cst_142 = arith.constant dense<0.000000e+00> : vector<24xf32>
    %470 = vector.multi_reduction <add>, %469, %cst_142 [1] : vector<24x24xf32> to vector<24xf32>
    %471 = vector.shape_cast %470 : vector<24xf32> to vector<24x1xf32>
    %472 = tpu.reciprocal %471 {approx = true} : vector<24x1xf32> -> vector<24x1xf32>
    %473 = vector.broadcast %472 : vector<24x1xf32> to vector<24x24xf32>
    %474 = arith.mulf %469, %473 : vector<24x24xf32>
    %475 = arith.truncf %474 : vector<24x24xf32> to vector<24x24xbf16>
    %476 = vector.extract_strided_slice %417 {offsets = [0, 16], sizes = [24, 8], strides = [1, 1]} : vector<24x32xbf16> to vector<24x8xbf16>
    %cst_143 = arith.constant dense<0.000000e+00> : vector<24x8xf32>
    %477 = tpu.matmul %475, %476, %cst_143 {dimension_numbers = #tpu.dot_dimension_numbers<[1], [0], [0], [1], [0, 0, 1, 1], [], []>} : vector<24x24xbf16>, vector<24x8xbf16>, vector<24x8xf32> -> vector<24x8xf32>
    %478 = vector.extract_strided_slice %413 {offsets = [0, 24], sizes = [24, 8], strides = [1, 1]} : vector<24x32xf32> to vector<24x8xf32>
    %479 = arith.truncf %478 : vector<24x8xf32> to vector<24x8xbf16>
    %480 = vector.extract_strided_slice %415 {offsets = [24, 0], sizes = [8, 24], strides = [1, 1]} : vector<32x24xf32> to vector<8x24xf32>
    %481 = arith.truncf %480 : vector<8x24xf32> to vector<8x24xbf16>
    %cst_144 = arith.constant dense<0.000000e+00> : vector<24x24xf32>
    %482 = tpu.matmul %479, %481, %cst_144 {dimension_numbers = #tpu.dot_dimension_numbers<[1], [0], [0], [1], [0, 0, 1, 1], [], []>} : vector<24x8xbf16>, vector<8x24xbf16>, vector<24x24xf32> -> vector<24x24xf32>
    %483 = vector.broadcast %15 : vector<1x24xf32> to vector<24x24xf32>
    %484 = arith.addf %482, %483 : vector<24x24xf32>
    %cst_145 = arith.constant dense<0xFF800000> : vector<24xf32>
    %485 = vector.multi_reduction <maximumf>, %484, %cst_145 [1] : vector<24x24xf32> to vector<24xf32>
    %486 = vector.shape_cast %485 : vector<24xf32> to vector<24x1xf32>
    %487 = vector.broadcast %486 : vector<24x1xf32> to vector<24x24xf32>
    %488 = arith.subf %484, %487 : vector<24x24xf32>
    %489 = math.exp %488 : vector<24x24xf32>
    %cst_146 = arith.constant dense<0.000000e+00> : vector<24xf32>
    %490 = vector.multi_reduction <add>, %489, %cst_146 [1] : vector<24x24xf32> to vector<24xf32>
    %491 = vector.shape_cast %490 : vector<24xf32> to vector<24x1xf32>
    %492 = tpu.reciprocal %491 {approx = true} : vector<24x1xf32> -> vector<24x1xf32>
    %493 = vector.broadcast %492 : vector<24x1xf32> to vector<24x24xf32>
    %494 = arith.mulf %489, %493 : vector<24x24xf32>
    %495 = arith.truncf %494 : vector<24x24xf32> to vector<24x24xbf16>
    %496 = vector.extract_strided_slice %417 {offsets = [0, 24], sizes = [24, 8], strides = [1, 1]} : vector<24x32xbf16> to vector<24x8xbf16>
    %cst_147 = arith.constant dense<0.000000e+00> : vector<24x8xf32>
    %497 = tpu.matmul %495, %496, %cst_147 {dimension_numbers = #tpu.dot_dimension_numbers<[1], [0], [0], [1], [0, 0, 1, 1], [], []>} : vector<24x24xbf16>, vector<24x8xbf16>, vector<24x8xf32> -> vector<24x8xf32>
    %498 = tpu.concatenate %437, %457, %477, %497 in 1 : vector<24x8xf32>, vector<24x8xf32>, vector<24x8xf32>, vector<24x8xf32> -> vector<24x32xf32>
    %499 = tpu.concatenate %412, %498 in 0 : vector<24x32xf32>, vector<24x32xf32> -> vector<48x32xf32>
    %c1_148 = arith.constant 1 : index
    %c0_149 = arith.constant 0 : index
    %c0_150 = arith.constant 0 : index
    %500 = vector.load %arg9[%c1_148, %c0_149, %c0_150] : memref<2x32x32xbf16, #tpu.memory_space<vmem>>, vector<1x32x32xbf16>
    %501 = vector.shape_cast %500 : vector<1x32x32xbf16> to vector<32x32xbf16>
    %c1_151 = arith.constant 1 : index
    %c0_152 = arith.constant 0 : index
    %c0_153 = arith.constant 0 : index
    %502 = vector.load %arg10[%c1_151, %c0_152, %c0_153] : memref<2x1x32xf32, #tpu.memory_space<vmem>>, vector<1x1x32xf32>
    %503 = vector.shape_cast %502 : vector<1x1x32xf32> to vector<1x32xf32>
    %504 = arith.truncf %499 : vector<48x32xf32> to vector<48x32xbf16>
    %cst_154 = arith.constant dense<0.000000e+00> : vector<48x32xf32>
    %505 = tpu.matmul %504, %501, %cst_154 {dimension_numbers = #tpu.dot_dimension_numbers<[1], [0], [0], [1], [0, 0, 1, 1], [], []>} : vector<48x32xbf16>, vector<32x32xbf16>, vector<48x32xf32> -> vector<48x32xf32>
    %506 = vector.broadcast %503 : vector<1x32xf32> to vector<48x32xf32>
    %507 = arith.addf %505, %506 : vector<48x32xf32>
    %508 = arith.addf %289, %507 : vector<48x32xf32>
    %c1_155 = arith.constant 1 : index
    %c0_156 = arith.constant 0 : index
    %c0_157 = arith.constant 0 : index
    %509 = vector.load %arg11[%c1_155, %c0_156, %c0_157] : memref<2x1x32xf32, #tpu.memory_space<vmem>>, vector<1x1x32xf32>
    %510 = vector.shape_cast %509 : vector<1x1x32xf32> to vector<1x32xf32>
    %c1_158 = arith.constant 1 : index
    %c0_159 = arith.constant 0 : index
    %c0_160 = arith.constant 0 : index
    %511 = vector.load %arg12[%c1_158, %c0_159, %c0_160] : memref<2x1x32xf32, #tpu.memory_space<vmem>>, vector<1x1x32xf32>
    %512 = vector.shape_cast %511 : vector<1x1x32xf32> to vector<1x32xf32>
    %cst_161 = arith.constant dense<0.000000e+00> : vector<48xf32>
    %513 = vector.multi_reduction <add>, %508, %cst_161 [1] : vector<48x32xf32> to vector<48xf32>
    %514 = vector.shape_cast %513 : vector<48xf32> to vector<48x1xf32>
    %cst_162 = arith.constant 3.200000e+01 : f32
    %515 = vector.broadcast %cst_162 : f32 to vector<48x1xf32>
    %516 = arith.divf %514, %515 : vector<48x1xf32>
    %517 = vector.broadcast %516 : vector<48x1xf32> to vector<48x32xf32>
    %518 = arith.subf %508, %517 : vector<48x32xf32>
    %519 = arith.mulf %518, %518 : vector<48x32xf32>
    %cst_163 = arith.constant dense<0.000000e+00> : vector<48xf32>
    %520 = vector.multi_reduction <add>, %519, %cst_163 [1] : vector<48x32xf32> to vector<48xf32>
    %521 = vector.shape_cast %520 : vector<48xf32> to vector<48x1xf32>
    %cst_164 = arith.constant 3.200000e+01 : f32
    %522 = vector.broadcast %cst_164 : f32 to vector<48x1xf32>
    %523 = arith.divf %521, %522 : vector<48x1xf32>
    %cst_165 = arith.constant 9.99999974E-6 : f32
    %524 = vector.broadcast %cst_165 : f32 to vector<48x1xf32>
    %525 = arith.addf %523, %524 : vector<48x1xf32>
    %526 = math.rsqrt %525 : vector<48x1xf32>
    %527 = vector.broadcast %526 : vector<48x1xf32> to vector<48x32xf32>
    %528 = arith.mulf %518, %527 : vector<48x32xf32>
    %529 = vector.broadcast %510 : vector<1x32xf32> to vector<48x32xf32>
    %530 = arith.mulf %528, %529 : vector<48x32xf32>
    %531 = vector.broadcast %512 : vector<1x32xf32> to vector<48x32xf32>
    %532 = arith.addf %530, %531 : vector<48x32xf32>
    %c1_166 = arith.constant 1 : index
    %c0_167 = arith.constant 0 : index
    %c0_168 = arith.constant 0 : index
    %533 = vector.load %arg13[%c1_166, %c0_167, %c0_168] : memref<2x32x64xbf16, #tpu.memory_space<vmem>>, vector<1x32x64xbf16>
    %534 = vector.shape_cast %533 : vector<1x32x64xbf16> to vector<32x64xbf16>
    %c1_169 = arith.constant 1 : index
    %c0_170 = arith.constant 0 : index
    %c0_171 = arith.constant 0 : index
    %535 = vector.load %arg14[%c1_169, %c0_170, %c0_171] : memref<2x1x64xf32, #tpu.memory_space<vmem>>, vector<1x1x64xf32>
    %536 = vector.shape_cast %535 : vector<1x1x64xf32> to vector<1x64xf32>
    %537 = arith.truncf %532 : vector<48x32xf32> to vector<48x32xbf16>
    %cst_172 = arith.constant dense<0.000000e+00> : vector<48x64xf32>
    %538 = tpu.matmul %537, %534, %cst_172 {dimension_numbers = #tpu.dot_dimension_numbers<[1], [0], [0], [1], [0, 0, 1, 1], [], []>} : vector<48x32xbf16>, vector<32x64xbf16>, vector<48x64xf32> -> vector<48x64xf32>
    %539 = vector.broadcast %536 : vector<1x64xf32> to vector<48x64xf32>
    %540 = arith.addf %538, %539 : vector<48x64xf32>
    %541 = arith.mulf %540, %540 : vector<48x64xf32>
    %cst_173 = arith.constant 5.000000e-01 : f32
    %542 = vector.broadcast %cst_173 : f32 to vector<48x64xf32>
    %543 = arith.mulf %542, %540 : vector<48x64xf32>
    %cst_174 = arith.constant 0.797884583 : f32
    %544 = vector.broadcast %cst_174 : f32 to vector<48x64xf32>
    %545 = arith.mulf %544, %540 : vector<48x64xf32>
    %cst_175 = arith.constant 4.471500e-02 : f32
    %546 = vector.broadcast %cst_175 : f32 to vector<48x64xf32>
    %547 = arith.mulf %546, %541 : vector<48x64xf32>
    %cst_176 = arith.constant 1.000000e+00 : f32
    %548 = vector.broadcast %cst_176 : f32 to vector<48x64xf32>
    %549 = arith.addf %548, %547 : vector<48x64xf32>
    %550 = arith.mulf %545, %549 : vector<48x64xf32>
    %551 = math.tanh %550 : vector<48x64xf32>
    %cst_177 = arith.constant 1.000000e+00 : f32
    %552 = vector.broadcast %cst_177 : f32 to vector<48x64xf32>
    %553 = arith.addf %552, %551 : vector<48x64xf32>
    %554 = arith.mulf %543, %553 : vector<48x64xf32>
    %c1_178 = arith.constant 1 : index
    %c0_179 = arith.constant 0 : index
    %c0_180 = arith.constant 0 : index
    %555 = vector.load %arg15[%c1_178, %c0_179, %c0_180] : memref<2x64x32xbf16, #tpu.memory_space<vmem>>, vector<1x64x32xbf16>
    %556 = vector.shape_cast %555 : vector<1x64x32xbf16> to vector<64x32xbf16>
    %c1_181 = arith.constant 1 : index
    %c0_182 = arith.constant 0 : index
    %c0_183 = arith.constant 0 : index
    %557 = vector.load %arg16[%c1_181, %c0_182, %c0_183] : memref<2x1x32xf32, #tpu.memory_space<vmem>>, vector<1x1x32xf32>
    %558 = vector.shape_cast %557 : vector<1x1x32xf32> to vector<1x32xf32>
    %559 = arith.truncf %554 : vector<48x64xf32> to vector<48x64xbf16>
    %cst_184 = arith.constant dense<0.000000e+00> : vector<48x32xf32>
    %560 = tpu.matmul %559, %556, %cst_184 {dimension_numbers = #tpu.dot_dimension_numbers<[1], [0], [0], [1], [0, 0, 1, 1], [], []>} : vector<48x64xbf16>, vector<64x32xbf16>, vector<48x32xf32> -> vector<48x32xf32>
    %561 = vector.broadcast %558 : vector<1x32xf32> to vector<48x32xf32>
    %562 = arith.addf %560, %561 : vector<48x32xf32>
    %563 = arith.addf %508, %562 : vector<48x32xf32>
    %564 = vector.extract_strided_slice %563 {offsets = [0, 0], sizes = [1, 32], strides = [1, 1]} : vector<48x32xf32> to vector<1x32xf32>
    %565 = vector.extract_strided_slice %563 {offsets = [24, 0], sizes = [1, 32], strides = [1, 1]} : vector<48x32xf32> to vector<1x32xf32>
    %566 = tpu.concatenate %564, %565 in 0 : vector<1x32xf32>, vector<1x32xf32> -> vector<2x32xf32>
    %c0_185 = arith.constant 0 : index
    %c0_186 = arith.constant 0 : index
    %567 = vector.load %arg17[%c0_185, %c0_186] : memref<1x32xf32, #tpu.memory_space<vmem>>, vector<1x32xf32>
    %c0_187 = arith.constant 0 : index
    %c0_188 = arith.constant 0 : index
    %568 = vector.load %arg18[%c0_187, %c0_188] : memref<1x32xf32, #tpu.memory_space<vmem>>, vector<1x32xf32>
    %cst_189 = arith.constant dense<0.000000e+00> : vector<2xf32>
    %569 = vector.multi_reduction <add>, %566, %cst_189 [1] : vector<2x32xf32> to vector<2xf32>
    %570 = vector.shape_cast %569 : vector<2xf32> to vector<2x1xf32>
    %cst_190 = arith.constant 3.200000e+01 : f32
    %571 = vector.broadcast %cst_190 : f32 to vector<2x1xf32>
    %572 = arith.divf %570, %571 : vector<2x1xf32>
    %573 = vector.broadcast %572 : vector<2x1xf32> to vector<2x32xf32>
    %574 = arith.subf %566, %573 : vector<2x32xf32>
    %575 = arith.mulf %574, %574 : vector<2x32xf32>
    %cst_191 = arith.constant dense<0.000000e+00> : vector<2xf32>
    %576 = vector.multi_reduction <add>, %575, %cst_191 [1] : vector<2x32xf32> to vector<2xf32>
    %577 = vector.shape_cast %576 : vector<2xf32> to vector<2x1xf32>
    %cst_192 = arith.constant 3.200000e+01 : f32
    %578 = vector.broadcast %cst_192 : f32 to vector<2x1xf32>
    %579 = arith.divf %577, %578 : vector<2x1xf32>
    %cst_193 = arith.constant 9.99999974E-6 : f32
    %580 = vector.broadcast %cst_193 : f32 to vector<2x1xf32>
    %581 = arith.addf %579, %580 : vector<2x1xf32>
    %582 = math.rsqrt %581 : vector<2x1xf32>
    %583 = vector.broadcast %582 : vector<2x1xf32> to vector<2x32xf32>
    %584 = arith.mulf %574, %583 : vector<2x32xf32>
    %585 = vector.broadcast %567 : vector<1x32xf32> to vector<2x32xf32>
    %586 = arith.mulf %584, %585 : vector<2x32xf32>
    %587 = vector.broadcast %568 : vector<1x32xf32> to vector<2x32xf32>
    %588 = arith.addf %586, %587 : vector<2x32xf32>
    %c0_194 = arith.constant 0 : index
    %c0_195 = arith.constant 0 : index
    %589 = vector.load %arg19[%c0_194, %c0_195] : memref<32x64xbf16, #tpu.memory_space<vmem>>, vector<32x64xbf16>
    %c0_196 = arith.constant 0 : index
    %c0_197 = arith.constant 0 : index
    %590 = vector.load %arg20[%c0_196, %c0_197] : memref<1x64xf32, #tpu.memory_space<vmem>>, vector<1x64xf32>
    %591 = arith.truncf %588 : vector<2x32xf32> to vector<2x32xbf16>
    %cst_198 = arith.constant dense<0.000000e+00> : vector<2x64xf32>
    %592 = tpu.matmul %591, %589, %cst_198 {dimension_numbers = #tpu.dot_dimension_numbers<[1], [0], [0], [1], [0, 0, 1, 1], [], []>} : vector<2x32xbf16>, vector<32x64xbf16>, vector<2x64xf32> -> vector<2x64xf32>
    %593 = vector.broadcast %590 : vector<1x64xf32> to vector<2x64xf32>
    %594 = arith.addf %592, %593 : vector<2x64xf32>
    %595 = arith.mulf %594, %594 : vector<2x64xf32>
    %cst_199 = arith.constant 5.000000e-01 : f32
    %596 = vector.broadcast %cst_199 : f32 to vector<2x64xf32>
    %597 = arith.mulf %596, %594 : vector<2x64xf32>
    %cst_200 = arith.constant 0.797884583 : f32
    %598 = vector.broadcast %cst_200 : f32 to vector<2x64xf32>
    %599 = arith.mulf %598, %594 : vector<2x64xf32>
    %cst_201 = arith.constant 4.471500e-02 : f32
    %600 = vector.broadcast %cst_201 : f32 to vector<2x64xf32>
    %601 = arith.mulf %600, %595 : vector<2x64xf32>
    %cst_202 = arith.constant 1.000000e+00 : f32
    %602 = vector.broadcast %cst_202 : f32 to vector<2x64xf32>
    %603 = arith.addf %602, %601 : vector<2x64xf32>
    %604 = arith.mulf %599, %603 : vector<2x64xf32>
    %605 = math.tanh %604 : vector<2x64xf32>
    %cst_203 = arith.constant 1.000000e+00 : f32
    %606 = vector.broadcast %cst_203 : f32 to vector<2x64xf32>
    %607 = arith.addf %606, %605 : vector<2x64xf32>
    %608 = arith.mulf %597, %607 : vector<2x64xf32>
    %c0_204 = arith.constant 0 : index
    %c0_205 = arith.constant 0 : index
    %609 = vector.load %arg21[%c0_204, %c0_205] : memref<64x16xbf16, #tpu.memory_space<vmem>>, vector<64x16xbf16>
    %c0_206 = arith.constant 0 : index
    %c0_207 = arith.constant 0 : index
    %610 = vector.load %arg22[%c0_206, %c0_207] : memref<1x16xf32, #tpu.memory_space<vmem>>, vector<1x16xf32>
    %611 = arith.truncf %608 : vector<2x64xf32> to vector<2x64xbf16>
    %cst_208 = arith.constant dense<0.000000e+00> : vector<2x16xf32>
    %612 = tpu.matmul %611, %609, %cst_208 {dimension_numbers = #tpu.dot_dimension_numbers<[1], [0], [0], [1], [0, 0, 1, 1], [], []>} : vector<2x64xbf16>, vector<64x16xbf16>, vector<2x16xf32> -> vector<2x16xf32>
    %613 = vector.broadcast %610 : vector<1x16xf32> to vector<2x16xf32>
    %614 = arith.addf %612, %613 : vector<2x16xf32>
    %cst_209 = arith.constant 0.000000e+00 : f32
    %615 = vector.broadcast %cst_209 : f32 to vector<2x48xf32>
    %616 = tpu.concatenate %608, %614, %615 in 1 : vector<2x64xf32>, vector<2x16xf32>, vector<2x48xf32> -> vector<2x128xf32>
    %c0_210 = arith.constant 0 : index
    %c0_211 = arith.constant 0 : index
    %c0_212 = arith.constant 0 : index
    %617 = vector.load %arg23[%c0_210, %c0_211, %c0_212] : memref<1x2x128xf32, #tpu.memory_space<vmem>>, vector<1x2x128xf32>
    %618 = vector.shape_cast %617 : vector<1x2x128xf32> to vector<2x128xf32>
    %619 = vector.shape_cast %616 : vector<2x128xf32> to vector<1x2x128xf32>
    tpu.vector_store %arg23[%c0_210, %c0_211, %c0_212], %619 {strides = array<i32>} : memref<1x2x128xf32, #tpu.memory_space<vmem>>, vector<1x2x128xf32>,
    return
  }
  func.func @transform_0(%arg0: i32) -> (i32, i32, i32) {
    %c0_i32 = arith.constant 0 : i32
    %c0_i32_0 = arith.constant 0 : i32
    %c0_i32_1 = arith.constant 0 : i32
    return %arg0, %c0_i32, %c0_i32_0 : i32, i32, i32
  }
  func.func @transform_1(%arg0: i32) -> (i32, i32) {
    %c0_i32 = arith.constant 0 : i32
    %c0_i32_0 = arith.constant 0 : i32
    %c0_i32_1 = arith.constant 0 : i32
    return %c0_i32, %c0_i32_0 : i32, i32
  }
  func.func @transform_2(%arg0: i32) -> (i32, i32) {
    %c0_i32 = arith.constant 0 : i32
    %c0_i32_0 = arith.constant 0 : i32
    %c0_i32_1 = arith.constant 0 : i32
    return %c0_i32, %c0_i32_0 : i32, i32
  }
  func.func @transform_3(%arg0: i32) -> (i32, i32) {
    %c0_i32 = arith.constant 0 : i32
    %c0_i32_0 = arith.constant 0 : i32
    %c0_i32_1 = arith.constant 0 : i32
    return %c0_i32, %c0_i32_0 : i32, i32
  }
  func.func @transform_4(%arg0: i32) -> (i32, i32, i32) {
    %c0_i32 = arith.constant 0 : i32
    %c0_i32_0 = arith.constant 0 : i32
    %c0_i32_1 = arith.constant 0 : i32
    %c0_i32_2 = arith.constant 0 : i32
    return %c0_i32, %c0_i32_0, %c0_i32_1 : i32, i32, i32
  }
  func.func @transform_5(%arg0: i32) -> (i32, i32, i32) {
    %c0_i32 = arith.constant 0 : i32
    %c0_i32_0 = arith.constant 0 : i32
    %c0_i32_1 = arith.constant 0 : i32
    %c0_i32_2 = arith.constant 0 : i32
    return %c0_i32, %c0_i32_0, %c0_i32_1 : i32, i32, i32
  }
  func.func @transform_6(%arg0: i32) -> (i32, i32, i32) {
    %c0_i32 = arith.constant 0 : i32
    %c0_i32_0 = arith.constant 0 : i32
    %c0_i32_1 = arith.constant 0 : i32
    %c0_i32_2 = arith.constant 0 : i32
    return %c0_i32, %c0_i32_0, %c0_i32_1 : i32, i32, i32
  }
  func.func @transform_7(%arg0: i32) -> (i32, i32, i32) {
    %c0_i32 = arith.constant 0 : i32
    %c0_i32_0 = arith.constant 0 : i32
    %c0_i32_1 = arith.constant 0 : i32
    %c0_i32_2 = arith.constant 0 : i32
    return %c0_i32, %c0_i32_0, %c0_i32_1 : i32, i32, i32
  }
  func.func @transform_8(%arg0: i32) -> (i32, i32, i32) {
    %c0_i32 = arith.constant 0 : i32
    %c0_i32_0 = arith.constant 0 : i32
    %c0_i32_1 = arith.constant 0 : i32
    %c0_i32_2 = arith.constant 0 : i32
    return %c0_i32, %c0_i32_0, %c0_i32_1 : i32, i32, i32
  }
  func.func @transform_9(%arg0: i32) -> (i32, i32, i32) {
    %c0_i32 = arith.constant 0 : i32
    %c0_i32_0 = arith.constant 0 : i32
    %c0_i32_1 = arith.constant 0 : i32
    %c0_i32_2 = arith.constant 0 : i32
    return %c0_i32, %c0_i32_0, %c0_i32_1 : i32, i32, i32
  }
  func.func @transform_10(%arg0: i32) -> (i32, i32, i32) {
    %c0_i32 = arith.constant 0 : i32
    %c0_i32_0 = arith.constant 0 : i32
    %c0_i32_1 = arith.constant 0 : i32
    %c0_i32_2 = arith.constant 0 : i32
    return %c0_i32, %c0_i32_0, %c0_i32_1 : i32, i32, i32
  }
  func.func @transform_11(%arg0: i32) -> (i32, i32, i32) {
    %c0_i32 = arith.constant 0 : i32
    %c0_i32_0 = arith.constant 0 : i32
    %c0_i32_1 = arith.constant 0 : i32
    %c0_i32_2 = arith.constant 0 : i32
    return %c0_i32, %c0_i32_0, %c0_i32_1 : i32, i32, i32
  }
  func.func @transform_12(%arg0: i32) -> (i32, i32, i32) {
    %c0_i32 = arith.constant 0 : i32
    %c0_i32_0 = arith.constant 0 : i32
    %c0_i32_1 = arith.constant 0 : i32
    %c0_i32_2 = arith.constant 0 : i32
    return %c0_i32, %c0_i32_0, %c0_i32_1 : i32, i32, i32
  }
  func.func @transform_13(%arg0: i32) -> (i32, i32, i32) {
    %c0_i32 = arith.constant 0 : i32
    %c0_i32_0 = arith.constant 0 : i32
    %c0_i32_1 = arith.constant 0 : i32
    %c0_i32_2 = arith.constant 0 : i32
    return %c0_i32, %c0_i32_0, %c0_i32_1 : i32, i32, i32
  }
  func.func @transform_14(%arg0: i32) -> (i32, i32, i32) {
    %c0_i32 = arith.constant 0 : i32
    %c0_i32_0 = arith.constant 0 : i32
    %c0_i32_1 = arith.constant 0 : i32
    %c0_i32_2 = arith.constant 0 : i32
    return %c0_i32, %c0_i32_0, %c0_i32_1 : i32, i32, i32
  }
  func.func @transform_15(%arg0: i32) -> (i32, i32, i32) {
    %c0_i32 = arith.constant 0 : i32
    %c0_i32_0 = arith.constant 0 : i32
    %c0_i32_1 = arith.constant 0 : i32
    %c0_i32_2 = arith.constant 0 : i32
    return %c0_i32, %c0_i32_0, %c0_i32_1 : i32, i32, i32
  }
  func.func @transform_16(%arg0: i32) -> (i32, i32) {
    %c0_i32 = arith.constant 0 : i32
    %c0_i32_0 = arith.constant 0 : i32
    %c0_i32_1 = arith.constant 0 : i32
    return %c0_i32, %c0_i32_0 : i32, i32
  }
  func.func @transform_17(%arg0: i32) -> (i32, i32) {
    %c0_i32 = arith.constant 0 : i32
    %c0_i32_0 = arith.constant 0 : i32
    %c0_i32_1 = arith.constant 0 : i32
    return %c0_i32, %c0_i32_0 : i32, i32
  }
  func.func @transform_18(%arg0: i32) -> (i32, i32) {
    %c0_i32 = arith.constant 0 : i32
    %c0_i32_0 = arith.constant 0 : i32
    %c0_i32_1 = arith.constant 0 : i32
    return %c0_i32, %c0_i32_0 : i32, i32
  }
  func.func @transform_19(%arg0: i32) -> (i32, i32) {
    %c0_i32 = arith.constant 0 : i32
    %c0_i32_0 = arith.constant 0 : i32
    %c0_i32_1 = arith.constant 0 : i32
    return %c0_i32, %c0_i32_0 : i32, i32
  }
  func.func @transform_20(%arg0: i32) -> (i32, i32) {
    %c0_i32 = arith.constant 0 : i32
    %c0_i32_0 = arith.constant 0 : i32
    %c0_i32_1 = arith.constant 0 : i32
    return %c0_i32, %c0_i32_0 : i32, i32
  }
  func.func @transform_21(%arg0: i32) -> (i32, i32) {
    %c0_i32 = arith.constant 0 : i32
    %c0_i32_0 = arith.constant 0 : i32
    %c0_i32_1 = arith.constant 0 : i32
    return %c0_i32, %c0_i32_0 : i32, i32
  }
  func.func @transform_22(%arg0: i32) -> (i32, i32, i32) {
    %c0_i32 = arith.constant 0 : i32
    %c0_i32_0 = arith.constant 0 : i32
    %c0_i32_1 = arith.constant 0 : i32
    return %arg0, %c0_i32, %c0_i32_0 : i32, i32, i32
  }
}

</mosaic_0001>

<llo_original>
// kernel: tpu_custom_call.1
$region0: #{tpu_custom_call.1}
  #allocation0 [shape = 'u32[]', space=smem, size = 0x4, offset = 0x4, fixed_abs, tag = 'smem constant byte address 0x4 - core index']
  #allocation1 [shape = 'u32[72,128]{1,0:T(1,128)}', space=vmem, size = 0x9000, scoped, tag = 'internal scratch']
  %s0 = inlined_call_operand.vmem [shape: f32[1,48,64], index: 0, kind: input, shape index: {}]
  %s1 = inlined_call_operand.vmem [shape: f32[48,32], index: 1, kind: input, shape index: {}]
  %s2 = inlined_call_operand.vmem [shape: bf16[64,32], index: 2, kind: input, shape index: {}]
  %s3 = inlined_call_operand.vmem [shape: f32[1,32], index: 3, kind: input, shape index: {}]
  %s4 = inlined_call_operand.vmem [shape: f32[2,1,32], index: 4, kind: input, shape index: {}]
  %s5 = inlined_call_operand.vmem [shape: f32[2,1,32], index: 5, kind: input, shape index: {}]
  %s6 = inlined_call_operand.vmem [shape: bf16[2,32,96], index: 6, kind: input, shape index: {}]
  %s7 = inlined_call_operand.vmem [shape: f32[2,1,96], index: 7, kind: input, shape index: {}]
  %s8 = inlined_call_operand.vmem [shape: bf16[2,32,32], index: 8, kind: input, shape index: {}]
  %s9 = inlined_call_operand.vmem [shape: f32[2,1,32], index: 9, kind: input, shape index: {}]
  %s10 = inlined_call_operand.vmem [shape: f32[2,1,32], index: 10, kind: input, shape index: {}]
  %s11 = inlined_call_operand.vmem [shape: f32[2,1,32], index: 11, kind: input, shape index: {}]
  %s12 = inlined_call_operand.vmem [shape: bf16[2,32,64], index: 12, kind: input, shape index: {}]
  %s13 = inlined_call_operand.vmem [shape: f32[2,1,64], index: 13, kind: input, shape index: {}]
  %s14 = inlined_call_operand.vmem [shape: bf16[2,64,32], index: 14, kind: input, shape index: {}]
  %s15 = inlined_call_operand.vmem [shape: f32[2,1,32], index: 15, kind: input, shape index: {}]
  %s16 = inlined_call_operand.vmem [shape: f32[1,32], index: 16, kind: input, shape index: {}]
  %s17 = inlined_call_operand.vmem [shape: f32[1,32], index: 17, kind: input, shape index: {}]
  %s18 = inlined_call_operand.vmem [shape: bf16[32,64], index: 18, kind: input, shape index: {}]
  %s19 = inlined_call_operand.vmem [shape: f32[1,64], index: 19, kind: input, shape index: {}]
  %s20 = inlined_call_operand.vmem [shape: bf16[64,16], index: 20, kind: input, shape index: {}]
  %s21 = inlined_call_operand.vmem [shape: f32[1,16], index: 21, kind: input, shape index: {}]
  %s22 = inlined_call_operand.hbm [shape: f32[1,2,128], index: 22, kind: output, shape index: {}]
  %s23 = sld [smem:[#allocation0]]
  $region98: #{tpu_custom_call.1} parent=0
    _
  %s25 = ssub.s32 1, %s23
  %s26 = scalar_select 0, %s25, %s23
  $region1: #{tpu_custom_call.1} parent=0
    #allocation2 [shape = 'u8[1024]{0}', space=vmem, size = 0x400, scoped, tag = 'output window, operand 0, single buffered']
    #allocation3 [shape = 's32[1]{0}', space=sflag, size = 0x4, scoped, tag = 'scoped memory for tpu_custom_call.1']
    %27 = vsyncpa [#allocation3], 0
    // Predicated region
    $region2: #{tpu_custom_call.1} parent=1 // pred_check
      _
    $region3: #{tpu_custom_call.1} parent=1 // pred_check_branch
      %29 = sbr.rel (0) target = $region5
    $region4: #{tpu_custom_call.1} parent=1 // pred_region
      _
    $region5: #{tpu_custom_call.1} parent=1 // pred_fallthru
      _
    // Predicated region
    $region6: #{tpu_custom_call.1} parent=1 // pred_check
      _
    $region7: #{tpu_custom_call.1} parent=1 // pred_check_branch
      %31 = sbr.rel (0) target = $region9
    $region8: #{tpu_custom_call.1} parent=1 // pred_region
      _
    $region9: #{tpu_custom_call.1} parent=1 // pred_fallthru
      _
    // Predicated region
    $region10: #{tpu_custom_call.1} parent=1 // pred_check
      _
    $region11: #{tpu_custom_call.1} parent=1 // pred_check_branch
      %33 = sbr.rel (0) target = $region13
    $region12: #{tpu_custom_call.1} parent=1 // pred_region
      _
    $region13: #{tpu_custom_call.1} parent=1 // pred_fallthru
      _
    // Predicated region
    $region14: #{tpu_custom_call.1} parent=1 // pred_check
      _
    $region15: #{tpu_custom_call.1} parent=1 // pred_check_branch
      %35 = sbr.rel (0) target = $region17
    $region16: #{tpu_custom_call.1} parent=1 // pred_region
      _
    $region17: #{tpu_custom_call.1} parent=1 // pred_fallthru
      _
    // Predicated region
    $region18: #{tpu_custom_call.1} parent=1 // pred_check
      _
    $region19: #{tpu_custom_call.1} parent=1 // pred_check_branch
      %37 = sbr.rel (0) target = $region21
    $region20: #{tpu_custom_call.1} parent=1 // pred_region
      _
    $region21: #{tpu_custom_call.1} parent=1 // pred_fallthru
      _
    // Predicated region
    $region22: #{tpu_custom_call.1} parent=1 // pred_check
      _
    $region23: #{tpu_custom_call.1} parent=1 // pred_check_branch
      %39 = sbr.rel (0) target = $region25
    $region24: #{tpu_custom_call.1} parent=1 // pred_region
      _
    $region25: #{tpu_custom_call.1} parent=1 // pred_fallthru
      _
    // Predicated region
    $region26: #{tpu_custom_call.1} parent=1 // pred_check
      _
    $region27: #{tpu_custom_call.1} parent=1 // pred_check_branch
      %41 = sbr.rel (0) target = $region29
    $region28: #{tpu_custom_call.1} parent=1 // pred_region
      _
    $region29: #{tpu_custom_call.1} parent=1 // pred_fallthru
      _
    // Predicated region
    $region30: #{tpu_custom_call.1} parent=1 // pred_check
      _
    $region31: #{tpu_custom_call.1} parent=1 // pred_check_branch
      %43 = sbr.rel (0) target = $region33
    $region32: #{tpu_custom_call.1} parent=1 // pred_region
      _
    $region33: #{tpu_custom_call.1} parent=1 // pred_fallthru
      _
    // Predicated region
    $region34: #{tpu_custom_call.1} parent=1 // pred_check
      _
    $region35: #{tpu_custom_call.1} parent=1 // pred_check_branch
      %45 = sbr.rel (0) target = $region37
    $region36: #{tpu_custom_call.1} parent=1 // pred_region
      _
    $region37: #{tpu_custom_call.1} parent=1 // pred_fallthru
      _
    // Predicated region
    $region38: #{tpu_custom_call.1} parent=1 // pred_check
      _
    $region39: #{tpu_custom_call.1} parent=1 // pred_check_branch
      %47 = sbr.rel (0) target = $region41
    $region40: #{tpu_custom_call.1} parent=1 // pred_region
      _
    $region41: #{tpu_custom_call.1} parent=1 // pred_fallthru
      _
    // Predicated region
    $region42: #{tpu_custom_call.1} parent=1 // pred_check
      _
    $region43: #{tpu_custom_call.1} parent=1 // pred_check_branch
      %49 = sbr.rel (0) target = $region45
    $region44: #{tpu_custom_call.1} parent=1 // pred_region
      _
    $region45: #{tpu_custom_call.1} parent=1 // pred_fallthru
      _
    // Predicated region
    $region46: #{tpu_custom_call.1} parent=1 // pred_check
      _
    $region47: #{tpu_custom_call.1} parent=1 // pred_check_branch
      %51 = sbr.rel (0) target = $region49
    $region48: #{tpu_custom_call.1} parent=1 // pred_region
      _
    $region49: #{tpu_custom_call.1} parent=1 // pred_fallthru
      _
    // Predicated region
    $region50: #{tpu_custom_call.1} parent=1 // pred_check
      _
    $region51: #{tpu_custom_call.1} parent=1 // pred_check_branch
      %53 = sbr.rel (0) target = $region53
    $region52: #{tpu_custom_call.1} parent=1 // pred_region
      _
    $region53: #{tpu_custom_call.1} parent=1 // pred_fallthru
      _
    // Predicated region
    $region54: #{tpu_custom_call.1} parent=1 // pred_check
      _
    $region55: #{tpu_custom_call.1} parent=1 // pred_check_branch
      %55 = sbr.rel (0) target = $region57
    $region56: #{tpu_custom_call.1} parent=1 // pred_region
      _
    $region57: #{tpu_custom_call.1} parent=1 // pred_fallthru
      _
    // Predicated region
    $region58: #{tpu_custom_call.1} parent=1 // pred_check
      _
    $region59: #{tpu_custom_call.1} parent=1 // pred_check_branch
      %57 = sbr.rel (0) target = $region61
    $region60: #{tpu_custom_call.1} parent=1 // pred_region
      _
    $region61: #{tpu_custom_call.1} parent=1 // pred_fallthru
      _
    // Predicated region
    $region62: #{tpu_custom_call.1} parent=1 // pred_check
      _
    $region63: #{tpu_custom_call.1} parent=1 // pred_check_branch
      %59 = sbr.rel (0) target = $region65
    $region64: #{tpu_custom_call.1} parent=1 // pred_region
      _
    $region65: #{tpu_custom_call.1} parent=1 // pred_fallthru
      _
    // Predicated region
    $region66: #{tpu_custom_call.1} parent=1 // pred_check
      _
    $region67: #{tpu_custom_call.1} parent=1 // pred_check_branch
      %61 = sbr.rel (0) target = $region69
    $region68: #{tpu_custom_call.1} parent=1 // pred_region
      _
    $region69: #{tpu_custom_call.1} parent=1 // pred_fallthru
      _
    // Predicated region
    $region70: #{tpu_custom_call.1} parent=1 // pred_check
      _
    $region71: #{tpu_custom_call.1} parent=1 // pred_check_branch
      %63 = sbr.rel (0) target = $region73
    $region72: #{tpu_custom_call.1} parent=1 // pred_region
      _
    $region73: #{tpu_custom_call.1} parent=1 // pred_fallthru
      _
    // Predicated region
    $region74: #{tpu_custom_call.1} parent=1 // pred_check
      _
    $region75: #{tpu_custom_call.1} parent=1 // pred_check_branch
      %65 = sbr.rel (0) target = $region77
    $region76: #{tpu_custom_call.1} parent=1 // pred_region
      _
    $region77: #{tpu_custom_call.1} parent=1 // pred_fallthru
      _
    // Predicated region
    $region78: #{tpu_custom_call.1} parent=1 // pred_check
      _
    $region79: #{tpu_custom_call.1} parent=1 // pred_check_branch
      %67 = sbr.rel (0) target = $region81
    $region80: #{tpu_custom_call.1} parent=1 // pred_region
      _
    $region81: #{tpu_custom_call.1} parent=1 // pred_fallthru
      _
    // Predicated region
    $region82: #{tpu_custom_call.1} parent=1 // pred_check
      _
    $region83: #{tpu_custom_call.1} parent=1 // pred_check_branch
      %69 = sbr.rel (0) target = $region85
    $region84: #{tpu_custom_call.1} parent=1 // pred_region
      _
    $region85: #{tpu_custom_call.1} parent=1 // pred_fallthru
      _
    // Predicated region
    $region86: #{tpu_custom_call.1} parent=1 // pred_check
      _
    $region87: #{tpu_custom_call.1} parent=1 // pred_check_branch
      %71 = sbr.rel (0) target = $region89
    $region88: #{tpu_custom_call.1} parent=1 // pred_region
      _
    $region89: #{tpu_custom_call.1} parent=1 // pred_fallthru
      _
    %v73 = vld [vmem:[%s0] sm:$0xff]
    %v74 = vld [vmem:[%s0 + $0x8] sm:$0xff]
    %v75 = vld [vmem:[%s0 + $0x10] sm:$0xff]
    %v76 = vld [vmem:[%s0 + $0x18] sm:$0xff]
    %v77 = vld [vmem:[%s0 + $0x20] sm:$0xff]
    %v78 = vld [vmem:[%s0 + $0x28] sm:$0xff]
    %v79 = vld [vmem:[%s2] sm:$0xf]
    %v80 = vld [vmem:[%s2 + $0x4] sm:$0xf]
    %v81 = vld [vmem:[%s2 + $0x8] sm:$0xf]
    %v82 = vld [vmem:[%s2 + $0xc] sm:$0xf]
    %v83 = vld [vmem:[%s2 + $0x10] sm:$0xf]
    %v84 = vld [vmem:[%s2 + $0x14] sm:$0xf]
    %v85 = vld [vmem:[%s2 + $0x18] sm:$0xf]
    %v86 = vld [vmem:[%s2 + $0x1c] sm:$0xf]
    %v87 = vld [vmem:[%s3] sm:$0x1]
    %v88 = vpack.c.bf16 %v74, %v73
    %v89 = vpack.c.bf16 %v76, %v75
    %v90 = vpack.c.bf16 %v78, %v77
    %v92 = vperm.slane %v87, 0
    %v102 = vunpack.c.l.b16 %v79
    %v103 = vunpack.c.l.b16 %v80
    %v104 = vunpack.c.l.b16 %v81
    %v105 = vunpack.c.l.b16 %v82
    %v106 = vunpack.c.l.b16 %v83
    %v107 = vunpack.c.l.b16 %v84
    %v108 = vunpack.c.l.b16 %v85
    %v109 = vunpack.c.l.b16 %v86
    %v110 = vpack.c.b16 %v103, %v102
    %v111 = vpack.c.b16 %v105, %v104
    %v112 = vpack.c.b16 %v107, %v106
    %v113 = vpack.c.b16 %v109, %v108
    %vm118 = vcmask 523264
    %v120 = vsel %vm118, %v88, 0
    %v123 = vsel %vm118, %v89, 0
    %v126 = vsel %vm118, %v90, 0
    %128 = vmatpush.bf16.msra.mxu0 0
    %129 = vmatpush.bf16.msra.mxu0 0
    %130 = vmatpush.bf16.msra.mxu0 0
    %131 = vmatpush.bf16.msra.mxu0 0
    %132 = vmatpush.bf16.msra.mxu0 %v113
    %133 = vmatpush.bf16.msra.mxu0 %v112
    %134 = vmatpush.bf16.msra.mxu0 %v111
    %135 = vmatpush.bf16.msra.mxu0 %v110
    %136 = vmatmul.bf16.gmra.mxu0 %v120
    %v137 = vpop.f32.mrf.mxu0
    %v138 = vadd.f32 %v92, %v137
    %v139 = vpop.f32.mrf.mxu0
    %v140 = vadd.f32 %v92, %v139
    %141 = vmatmul.bf16.gmra.mxu0 %v123
    %v142 = vpop.f32.mrf.mxu0
    %v143 = vadd.f32 %v92, %v142
    %v144 = vpop.f32.mrf.mxu0
    %v145 = vadd.f32 %v92, %v144
    %146 = vmatmul.bf16.gmra.mxu0 %v126
    %v147 = vpop.f32.mrf.mxu0
    %v148 = vadd.f32 %v92, %v147
    %v149 = vpop.f32.mrf.mxu0
    %v150 = vadd.f32 %v92, %v149
    %151 = vdwg.mxu0
    %v152 = vld [vmem:[%s1] sm:$0xff]
    %v153 = vld [vmem:[%s1 + $0x8] sm:$0xff]
    %v154 = vld [vmem:[%s1 + $0x10] sm:$0xff]
    %v155 = vld [vmem:[%s1 + $0x18] sm:$0xff]
    %v156 = vld [vmem:[%s1 + $0x20] sm:$0xff]
    %v157 = vld [vmem:[%s1 + $0x28] sm:$0xff]
    %v158 = vadd.f32 %v138, %v152
    %v159 = vadd.f32 %v140, %v153
    %v160 = vadd.f32 %v143, %v154
    %v161 = vadd.f32 %v145, %v155
    %v162 = vadd.f32 %v148, %v156
    %v163 = vadd.f32 %v150, %v157
    %v164 = vlaneseq
    %v165 = vand.u32 %v164, 127
    %vm166 = vcmp.lt.s32.totalorder %v165, 17
    %v167 = vsel %vm166, 0.0, -1e+30
    %v168 = vld [vmem:[%s4] sm:$0x1]
    %v169 = vld [vmem:[%s5] sm:$0x1]
    %vm170 = vcmask 261120
    %v171 = vsel %vm170, %v158, 0.0
    %172 = vadd.xlane.f32.xlu0 %v171
    %v173 = vpop.xlane.xlu0 %172
    %v174 = vsel %vm170, %v159, 0.0
    %175 = vadd.xlane.f32.xlu0 %v174
    %v176 = vpop.xlane.xlu0 %175
    %v177 = vsel %vm170, %v160, 0.0
    %178 = vadd.xlane.f32.xlu0 %v177
    %v179 = vpop.xlane.xlu0 %178
    %v180 = vsel %vm170, %v161, 0.0
    %181 = vadd.xlane.f32.xlu0 %v180
    %v182 = vpop.xlane.xlu0 %181
    %v183 = vsel %vm170, %v162, 0.0
    %184 = vadd.xlane.f32.xlu0 %v183
    %v185 = vpop.xlane.xlu0 %184
    %v186 = vsel %vm170, %v163, 0.0
    %187 = vadd.xlane.f32.xlu0 %v186
    %v188 = vpop.xlane.xlu0 %187
    %v189 = vrcp.pop 32.0
    %v190 = vmul.f32 32.0, %v189
    %v191 = vsub.f32 1.0, %v190
    %v192 = vmul.f32 %v189, %v191
    %v193 = vadd.f32 %v189, %v192
    %vm194 = vweird.f32 %v189
    %v195 = vsel %vm194, %v189, %v193
    %v196 = vmul.f32 %v173, %v195
    %v197 = vmul.f32 %v176, %v195
    %v198 = vmul.f32 %v179, %v195
    %v199 = vmul.f32 %v182, %v195
    %v200 = vmul.f32 %v185, %v195
    %v201 = vmul.f32 %v188, %v195
    %v202 = vsub.f32 %v158, %v196
    %v203 = vsub.f32 %v159, %v197
    %v204 = vsub.f32 %v160, %v198
    %v205 = vsub.f32 %v161, %v199
    %v206 = vsub.f32 %v162, %v200
    %v207 = vsub.f32 %v163, %v201
    %v208 = vmul.f32 %v202, %v202
    %v209 = vmul.f32 %v203, %v203
    %v210 = vmul.f32 %v204, %v204
    %v211 = vmul.f32 %v205, %v205
    %v212 = vmul.f32 %v206, %v206
    %v213 = vmul.f32 %v207, %v207
    %v214 = vsel %vm170, %v208, 0.0
    %215 = vadd.xlane.f32.xlu0 %v214
    %v216 = vpop.xlane.xlu0 %215
    %v217 = vsel %vm170, %v209, 0.0
    %218 = vadd.xlane.f32.xlu0 %v217
    %v219 = vpop.xlane.xlu0 %218
    %v220 = vsel %vm170, %v210, 0.0
    %221 = vadd.xlane.f32.xlu0 %v220
    %v222 = vpop.xlane.xlu0 %221
    %v223 = vsel %vm170, %v211, 0.0
    %224 = vadd.xlane.f32.xlu0 %v223
    %v225 = vpop.xlane.xlu0 %224
    %v226 = vsel %vm170, %v212, 0.0
    %227 = vadd.xlane.f32.xlu0 %v226
    %v228 = vpop.xlane.xlu0 %227
    %v229 = vsel %vm170, %v213, 0.0
    %230 = vadd.xlane.f32.xlu0 %v229
    %v231 = vpop.xlane.xlu0 %230
    %v232 = vmul.f32 %v216, %v195
    %v233 = vmul.f32 %v219, %v195
    %v234 = vmul.f32 %v222, %v195
    %v235 = vmul.f32 %v225, %v195
    %v236 = vmul.f32 %v228, %v195
    %v237 = vmul.f32 %v231, %v195
    %v238 = vadd.f32 %v232, 1e-05
    %v239 = vadd.f32 %v233, 1e-05
    %v240 = vadd.f32 %v234, 1e-05
    %v241 = vadd.f32 %v235, 1e-05
    %v242 = vadd.f32 %v236, 1e-05
    %v243 = vadd.f32 %v237, 1e-05
    %v244 = vrsqrt.pop %v238
    %v245 = vmul.f32 %v244, %v238
    %v246 = vmul.f32 %v245, %v244
    %v247 = vmul.f32 0.5, %v246
    %v248 = vsub.f32 1.5, %v247
    %v249 = vmul.f32 %v244, %v248
    %vm250 = vweird.f32 %v238
    %vm251 = vweird.f32 %v244
    %vm252 = vmor %vm250, %vm251
    %v253 = vsel %vm252, %v244, %v249
    %v254 = vrsqrt.pop %v239
    %v255 = vmul.f32 %v254, %v239
    %v256 = vmul.f32 %v255, %v254
    %v257 = vmul.f32 0.5, %v256
    %v258 = vsub.f32 1.5, %v257
    %v259 = vmul.f32 %v254, %v258
    %vm260 = vweird.f32 %v239
    %vm261 = vweird.f32 %v254
    %vm262 = vmor %vm260, %vm261
    %v263 = vsel %vm262, %v254, %v259
    %v264 = vrsqrt.pop %v240
    %v265 = vmul.f32 %v264, %v240
    %v266 = vmul.f32 %v265, %v264
    %v267 = vmul.f32 0.5, %v266
    %v268 = vsub.f32 1.5, %v267
    %v269 = vmul.f32 %v264, %v268
    %vm270 = vweird.f32 %v240
    %vm271 = vweird.f32 %v264
    %vm272 = vmor %vm270, %vm271
    %v273 = vsel %vm272, %v264, %v269
    %v274 = vrsqrt.pop %v241
    %v275 = vmul.f32 %v274, %v241
    %v276 = vmul.f32 %v275, %v274
    %v277 = vmul.f32 0.5, %v276
    %v278 = vsub.f32 1.5, %v277
    %v279 = vmul.f32 %v274, %v278
    %vm280 = vweird.f32 %v241
    %vm281 = vweird.f32 %v274
    %vm282 = vmor %vm280, %vm281
    %v283 = vsel %vm282, %v274, %v279
    %v284 = vrsqrt.pop %v242
    %v285 = vmul.f32 %v284, %v242
    %v286 = vmul.f32 %v285, %v284
    %v287 = vmul.f32 0.5, %v286
    %v288 = vsub.f32 1.5, %v287
    %v289 = vmul.f32 %v284, %v288
    %vm290 = vweird.f32 %v242
    %vm291 = vweird.f32 %v284
    %vm292 = vmor %vm290, %vm291
    %v293 = vsel %vm292, %v284, %v289
    %v294 = vrsqrt.pop %v243
    %v295 = vmul.f32 %v294, %v243
    %v296 = vmul.f32 %v295, %v294
    %v297 = vmul.f32 0.5, %v296
    %v298 = vsub.f32 1.5, %v297
    %v299 = vmul.f32 %v294, %v298
    %vm300 = vweird.f32 %v243
    %vm301 = vweird.f32 %v294
    %vm302 = vmor %vm300, %vm301
    %v303 = vsel %vm302, %v294, %v299
    %v304 = vmul.f32 %v202, %v253
    %v305 = vmul.f32 %v203, %v263
    %v306 = vmul.f32 %v204, %v273
    %v307 = vmul.f32 %v205, %v283
    %v308 = vmul.f32 %v206, %v293
    %v309 = vmul.f32 %v207, %v303
    %v311 = vperm.slane %v168, 0
    %v313 = vmul.f32 %v304, %v311
    %v314 = vmul.f32 %v305, %v311
    %v315 = vmul.f32 %v306, %v311
    %v316 = vmul.f32 %v307, %v311
    %v317 = vmul.f32 %v308, %v311
    %v318 = vmul.f32 %v309, %v311
    %v320 = vperm.slane %v169, 0
    %v322 = vadd.f32 %v313, %v320
    %v323 = vadd.f32 %v314, %v320
    %v324 = vadd.f32 %v315, %v320
    %v325 = vadd.f32 %v316, %v320
    %v326 = vadd.f32 %v317, %v320
    %v327 = vadd.f32 %v318, %v320
    %v328 = vld [vmem:[%s6] sm:$0xf]
    %v329 = vld [vmem:[%s6 + $0x4] sm:$0xf]
    %v330 = vld [vmem:[%s6 + $0x8] sm:$0xf]
    %v331 = vld [vmem:[%s6 + $0xc] sm:$0xf]
    %v332 = vld [vmem:[%s7] sm:$0x1]
    %v333 = vpack.c.bf16 %v323, %v322
    %v334 = vpack.c.bf16 %v325, %v324
    %v335 = vpack.c.bf16 %v327, %v326
    %v337 = vperm.slane %v332, 0
    %v343 = vunpack.c.l.b16 %v328
    %v344 = vunpack.c.l.b16 %v329
    %v345 = vunpack.c.l.b16 %v330
    %v346 = vunpack.c.l.b16 %v331
    %v347 = vpack.c.b16 %v344, %v343
    %v348 = vpack.c.b16 %v346, %v345
    %v352 = vsel %vm170, %v333, 0
    %v355 = vsel %vm170, %v334, 0
    %v358 = vsel %vm170, %v335, 0
    %360 = vmatpush.bf16.msra.mxu0 0
    %361 = vmatpush.bf16.msra.mxu0 0
    %362 = vmatpush.bf16.msra.mxu0 0
    %363 = vmatpush.bf16.msra.mxu0 0
    %364 = vmatpush.bf16.msra.mxu0 0
    %365 = vmatpush.bf16.msra.mxu0 0
    %366 = vmatpush.bf16.msra.mxu0 %v348
    %367 = vmatpush.bf16.msra.mxu0 %v347
    %368 = vmatmul.bf16.gmra.mxu0 %v352
    %v369 = vpop.f32.mrf.mxu0
    %v370 = vadd.f32 %v337, %v369
    %v371 = vpop.f32.mrf.mxu0
    %v372 = vadd.f32 %v337, %v371
    %373 = vmatmul.bf16.gmra.mxu0 %v355
    %v374 = vpop.f32.mrf.mxu0
    %v375 = vadd.f32 %v337, %v374
    %v376 = vpop.f32.mrf.mxu0
    %v377 = vadd.f32 %v337, %v376
    %378 = vmatmul.bf16.gmra.mxu0 %v358
    %v379 = vpop.f32.mrf.mxu0
    %v380 = vadd.f32 %v337, %v379
    %v381 = vpop.f32.mrf.mxu0
    %v382 = vadd.f32 %v337, %v381
    %383 = vdwg.mxu0
    %v384 = vmul.f32 %v370, 0.35355338
    %v385 = vmul.f32 %v372, 0.35355338
    %v386 = vmul.f32 %v375, 0.35355338
    %v387 = vmul.f32 %v377, 0.35355338
    %v388 = vmul.f32 %v380, 0.35355338
    %v389 = vmul.f32 %v382, 0.35355338
    %393 = vrot.lane.b32.xlu0 %v370, 96
    %v394 = vpop.permute.xlu0 %393
    %395 = vrot.lane.b32.xlu0 %v372, 96
    %v396 = vpop.permute.xlu0 %395
    %397 = vrot.lane.b32.xlu0 %v375, 96
    %v398 = vpop.permute.xlu0 %397
    %402 = vxpose.xlu0.b32.start [1/16] %v394, 128
    %403 = vxpose.xlu0.b32.cont [2/16] %v396, 128
    %404 = vxpose.xlu0.b32.cont [3/16] %v398, 128
    %405 = vxpose.xlu0.b32.cont [4/16] 0.0, 128
    %406 = vxpose.xlu0.b32.cont [5/16] 0.0, 128
    %407 = vxpose.xlu0.b32.cont [6/16] 0.0, 128
    %408 = vxpose.xlu0.b32.cont [7/16] 0.0, 128
    %409 = vxpose.xlu0.b32.cont [8/16] 0.0, 128
    %410 = vxpose.xlu0.b32.cont [9/16] 0.0, 128
    %411 = vxpose.xlu0.b32.cont [10/16] 0.0, 128
    %412 = vxpose.xlu0.b32.cont [11/16] 0.0, 128
    %413 = vxpose.xlu0.b32.cont [12/16] 0.0, 128
    %414 = vxpose.xlu0.b32.cont [13/16] 0.0, 128
    %415 = vxpose.xlu0.b32.cont [14/16] 0.0, 128
    %416 = vxpose.xlu0.b32.cont [15/16] 0.0, 128
    %417 = vxpose.xlu0.b32.end [16/16] 0.0, 128
    %v418 = vpop.trf.xlu0
    %v419 = vpop.trf.xlu0
    %v420 = vpop.trf.xlu0
    %v421 = vpop.trf.xlu0
    %v422 = vpop.trf.xlu0
    %v423 = vpop.trf.xlu0
    %v424 = vpop.trf.xlu0
    %v425 = vpop.trf.xlu0
    %v426 = vpop.trf.xlu0
    %v427 = vpop.trf.xlu0
    %v428 = vpop.trf.xlu0
    %v429 = vpop.trf.xlu0
    %v430 = vpop.trf.xlu0
    %v431 = vpop.trf.xlu0
    %v432 = vpop.trf.xlu0
    %v433 = vpop.trf.xlu0
    %v434 = vpack.c.bf16 %v370, %v370
    %v435 = vpack.c.bf16 %v372, %v372
    %v436 = vpack.c.bf16 %v375, %v375
    %v437 = vpack.c.bf16 %v385, %v384
    %v438 = vpack.c.bf16 %v386, %v386
    %v439 = vpack.c.bf16 %v418, %v418
    %vm440 = vcmask 64512
    %v442 = vsel %vm440, %v437, 0
    %v445 = vsel %vm440, %v438, 0
    %vm447 = vcmask 1043456
    %v449 = vsel %vm447, %v439, 0
    %451 = vmatpush.bf16.msra.mxu0 0
    %452 = vmatpush.bf16.msra.mxu0 0
    %453 = vmatpush.bf16.msra.mxu0 0
    %454 = vmatpush.bf16.msra.mxu0 0
    %455 = vmatpush.bf16.msra.mxu0 0
    %456 = vmatpush.bf16.msra.mxu0 0
    %457 = vmatpush.bf16.msra.mxu0 0
    %458 = vmatpush.bf16.msra.mxu0 %v449
    %459 = vmatmul.bf16.gmra.mxu0 %v442
    %v460 = vpop.f32.mrf.mxu0
    %v461 = vadd.f32 %v167, %v460
    %v462 = vpop.f32.mrf.mxu0
    %v463 = vadd.f32 %v167, %v462
    %464 = vmatmul.bf16.gmra.mxu0 %v445
    %v465 = vpop.f32.mrf.mxu0
    %v466 = vadd.f32 %v167, %v465
    %v467 = vpop.f32.mrf.mxu0
    %468 = vdwg.mxu0
    %vm469 = vcmask 195584
    %v470 = vsel %vm469, %v461, -inf
    %471 = vmax.xlane.f32.xlu0 %v470
    %v472 = vpop.xlane.xlu0 %471
    %v473 = vsel %vm469, %v463, -inf
    %474 = vmax.xlane.f32.xlu0 %v473
    %v475 = vpop.xlane.xlu0 %474
    %v476 = vsel %vm469, %v466, -inf
    %477 = vmax.xlane.f32.xlu0 %v476
    %v478 = vpop.xlane.xlu0 %477
    %v479 = vsub.f32 %v461, %v472
    %v480 = vsub.f32 %v463, %v475
    %v481 = vsub.f32 %v466, %v478
    %v482 = vmul.f32 %v479, 1.442695
    %v483 = vpow.pop %v482
    %v484 = vmul.f32 %v480, 1.442695
    %v485 = vpow.pop %v484
    %v486 = vmul.f32 %v481, 1.442695
    %v487 = vpow.pop %v486
    %v488 = vsel %vm469, %v483, 0.0
    %489 = vadd.xlane.f32.xlu0 %v488
    %v490 = vpop.xlane.xlu0 %489
    %v491 = vsel %vm469, %v485, 0.0
    %492 = vadd.xlane.f32.xlu0 %v491
    %v493 = vpop.xlane.xlu0 %492
    %v494 = vsel %vm469, %v487, 0.0
    %495 = vadd.xlane.f32.xlu0 %v494
    %v496 = vpop.xlane.xlu0 %495
    %v497 = vrcp.pop %v490
    %v498 = vrcp.pop %v493
    %v499 = vrcp.pop %v496
    %v500 = vmul.f32 %v483, %v497
    %v501 = vmul.f32 %v485, %v498
    %v502 = vmul.f32 %v487, %v499
    %v503 = vpack.c.bf16 %v501, %v500
    %v504 = vpack.c.bf16 %v502, %v502
    %v508 = vunpack.c.l.b16 %v434
    %v509 = vunpack.c.l.b16 %v435
    %v510 = vunpack.c.l.b16 %v436
    %v511 = vpack.c.b16 %v509, %v508
    %v512 = vpack.c.b16 %v510, %v510
    %513 = vrot.lane.b32.xlu0 %v511, 64
    %v514 = vpop.permute.xlu0 %513
    %515 = vrot.lane.b32.xlu0 %v512, 64
    %v516 = vpop.permute.xlu0 %515
    %v519 = vsel %vm469, %v503, 0
    %v522 = vsel %vm469, %v504, 0
    %v525 = vsel %vm447, %v516, 0
    %527 = vmatpush.bf16.msra.mxu0 0
    %528 = vmatpush.bf16.msra.mxu0 0
    %529 = vmatpush.bf16.msra.mxu0 0
    %530 = vmatpush.bf16.msra.mxu0 0
    %531 = vmatpush.bf16.msra.mxu0 0
    %532 = vmatpush.bf16.msra.mxu0 0
    %533 = vmatpush.bf16.msra.mxu0 %v525
    %534 = vmatpush.bf16.msra.mxu0 %v514
    %535 = vmatmul.bf16.gmra.mxu0 %v519
    %v536 = vpop.f32.mrf.mxu0
    %v537 = vadd.f32 0.0, %v536
    %v538 = vpop.f32.mrf.mxu0
    %v539 = vadd.f32 0.0, %v538
    %540 = vmatmul.bf16.gmra.mxu0 %v522
    %v541 = vpop.f32.mrf.mxu0
    %v542 = vadd.f32 0.0, %v541
    %v543 = vpop.f32.mrf.mxu0
    %544 = vdwg.mxu0
    %v545 = vpack.c.bf16 %v419, %v419
    %548 = vrot.lane.b32.xlu0 %v437, 120
    %v549 = vpop.permute.xlu0 %548
    %550 = vrot.lane.b32.xlu0 %v438, 120
    %v551 = vpop.permute.xlu0 %550
    %v553 = vsel %vm440, %v549, 0
    %v556 = vsel %vm440, %v551, 0
    %v559 = vsel %vm447, %v545, 0
    %561 = vmatpush.bf16.msra.mxu0 0
    %562 = vmatpush.bf16.msra.mxu0 0
    %563 = vmatpush.bf16.msra.mxu0 0
    %564 = vmatpush.bf16.msra.mxu0 0
    %565 = vmatpush.bf16.msra.mxu0 0
    %566 = vmatpush.bf16.msra.mxu0 0
    %567 = vmatpush.bf16.msra.mxu0 0
    %568 = vmatpush.bf16.msra.mxu0 %v559
    %569 = vmatmul.bf16.gmra.mxu0 %v553
    %v570 = vpop.f32.mrf.mxu0
    %v571 = vadd.f32 %v167, %v570
    %v572 = vpop.f32.mrf.mxu0
    %v573 = vadd.f32 %v167, %v572
    %574 = vmatmul.bf16.gmra.mxu0 %v556
    %v575 = vpop.f32.mrf.mxu0
    %v576 = vadd.f32 %v167, %v575
    %v577 = vpop.f32.mrf.mxu0
    %578 = vdwg.mxu0
    %v579 = vsel %vm469, %v571, -inf
    %580 = vmax.xlane.f32.xlu0 %v579
    %v581 = vpop.xlane.xlu0 %580
    %v582 = vsel %vm469, %v573, -inf
    %583 = vmax.xlane.f32.xlu0 %v582
    %v584 = vpop.xlane.xlu0 %583
    %v585 = vsel %vm469, %v576, -inf
    %586 = vmax.xlane.f32.xlu0 %v585
    %v587 = vpop.xlane.xlu0 %586
    %v588 = vsub.f32 %v571, %v581
    %v589 = vsub.f32 %v573, %v584
    %v590 = vsub.f32 %v576, %v587
    %v591 = vmul.f32 %v588, 1.442695
    %v592 = vpow.pop %v591
    %v593 = vmul.f32 %v589, 1.442695
    %v594 = vpow.pop %v593
    %v595 = vmul.f32 %v590, 1.442695
    %v596 = vpow.pop %v595
    %v597 = vsel %vm469, %v592, 0.0
    %598 = vadd.xlane.f32.xlu0 %v597
    %v599 = vpop.xlane.xlu0 %598
    %v600 = vsel %vm469, %v594, 0.0
    %601 = vadd.xlane.f32.xlu0 %v600
    %v602 = vpop.xlane.xlu0 %601
    %v603 = vsel %vm469, %v596, 0.0
    %604 = vadd.xlane.f32.xlu0 %v603
    %v605 = vpop.xlane.xlu0 %604
    %v606 = vrcp.pop %v599
    %v607 = vrcp.pop %v602
    %v608 = vrcp.pop %v605
    %v609 = vmul.f32 %v592, %v606
    %v610 = vmul.f32 %v594, %v607
    %v611 = vmul.f32 %v596, %v608
    %v612 = vpack.c.bf16 %v610, %v609
    %v613 = vpack.c.bf16 %v611, %v611
    %614 = vrot.lane.b32.xlu0 %v511, 56
    %v615 = vpop.permute.xlu0 %614
    %616 = vrot.lane.b32.xlu0 %v512, 56
    %v617 = vpop.permute.xlu0 %616
    %v620 = vsel %vm469, %v612, 0
    %v623 = vsel %vm469, %v613, 0
    %v626 = vsel %vm447, %v617, 0
    %628 = vmatpush.bf16.msra.mxu0 0
    %629 = vmatpush.bf16.msra.mxu0 0
    %630 = vmatpush.bf16.msra.mxu0 0
    %631 = vmatpush.bf16.msra.mxu0 0
    %632 = vmatpush.bf16.msra.mxu0 0
    %633 = vmatpush.bf16.msra.mxu0 0
    %634 = vmatpush.bf16.msra.mxu0 %v626
    %635 = vmatpush.bf16.msra.mxu0 %v615
    %636 = vmatmul.bf16.gmra.mxu0 %v620
    %v637 = vpop.f32.mrf.mxu0
    %v638 = vadd.f32 0.0, %v637
    %v639 = vpop.f32.mrf.mxu0
    %v640 = vadd.f32 0.0, %v639
    %641 = vmatmul.bf16.gmra.mxu0 %v623
    %v642 = vpop.f32.mrf.mxu0
    %v643 = vadd.f32 0.0, %v642
    %v644 = vpop.f32.mrf.mxu0
    %645 = vdwg.mxu0
    %v646 = vpack.c.bf16 %v420, %v420
    %647 = vrot.lane.b32.xlu0 %v437, 112
    %v648 = vpop.permute.xlu0 %647
    %649 = vrot.lane.b32.xlu0 %v438, 112
    %v650 = vpop.permute.xlu0 %649
    %v652 = vsel %vm440, %v648, 0
    %v655 = vsel %vm440, %v650, 0
    %v658 = vsel %vm447, %v646, 0
    %660 = vmatpush.bf16.msra.mxu0 0
    %661 = vmatpush.bf16.msra.mxu0 0
    %662 = vmatpush.bf16.msra.mxu0 0
    %663 = vmatpush.bf16.msra.mxu0 0
    %664 = vmatpush.bf16.msra.mxu0 0
    %665 = vmatpush.bf16.msra.mxu0 0
    %666 = vmatpush.bf16.msra.mxu0 0
    %667 = vmatpush.bf16.msra.mxu0 %v658
    %668 = vmatmul.bf16.gmra.mxu0 %v652
    %v669 = vpop.f32.mrf.mxu0
    %v670 = vadd.f32 %v167, %v669
    %v671 = vpop.f32.mrf.mxu0
    %v672 = vadd.f32 %v167, %v671
    %673 = vmatmul.bf16.gmra.mxu0 %v655
    %v674 = vpop.f32.mrf.mxu0
    %v675 = vadd.f32 %v167, %v674
    %v676 = vpop.f32.mrf.mxu0
    %677 = vdwg.mxu0
    %v678 = vsel %vm469, %v670, -inf
    %679 = vmax.xlane.f32.xlu0 %v678
    %v680 = vpop.xlane.xlu0 %679
    %v681 = vsel %vm469, %v672, -inf
    %682 = vmax.xlane.f32.xlu0 %v681
    %v683 = vpop.xlane.xlu0 %682
    %v684 = vsel %vm469, %v675, -inf
    %685 = vmax.xlane.f32.xlu0 %v684
    %v686 = vpop.xlane.xlu0 %685
    %v687 = vsub.f32 %v670, %v680
    %v688 = vsub.f32 %v672, %v683
    %v689 = vsub.f32 %v675, %v686
    %v690 = vmul.f32 %v687, 1.442695
    %v691 = vpow.pop %v690
    %v692 = vmul.f32 %v688, 1.442695
    %v693 = vpow.pop %v692
    %v694 = vmul.f32 %v689, 1.442695
    %v695 = vpow.pop %v694
    %v696 = vsel %vm469, %v691, 0.0
    %697 = vadd.xlane.f32.xlu0 %v696
    %v698 = vpop.xlane.xlu0 %697
    %v699 = vsel %vm469, %v693, 0.0
    %700 = vadd.xlane.f32.xlu0 %v699
    %v701 = vpop.xlane.xlu0 %700
    %v702 = vsel %vm469, %v695, 0.0
    %703 = vadd.xlane.f32.xlu0 %v702
    %v704 = vpop.xlane.xlu0 %703
    %v705 = vrcp.pop %v698
    %v706 = vrcp.pop %v701
    %v707 = vrcp.pop %v704
    %v708 = vmul.f32 %v691, %v705
    %v709 = vmul.f32 %v693, %v706
    %v710 = vmul.f32 %v695, %v707
    %v711 = vpack.c.bf16 %v709, %v708
    %v712 = vpack.c.bf16 %v710, %v710
    %713 = vrot.lane.b32.xlu0 %v511, 48
    %v714 = vpop.permute.xlu0 %713
    %715 = vrot.lane.b32.xlu0 %v512, 48
    %v716 = vpop.permute.xlu0 %715
    %v719 = vsel %vm469, %v711, 0
    %v722 = vsel %vm469, %v712, 0
    %v725 = vsel %vm447, %v716, 0
    %727 = vmatpush.bf16.msra.mxu0 0
    %728 = vmatpush.bf16.msra.mxu0 0
    %729 = vmatpush.bf16.msra.mxu0 0
    %730 = vmatpush.bf16.msra.mxu0 0
    %731 = vmatpush.bf16.msra.mxu0 0
    %732 = vmatpush.bf16.msra.mxu0 0
    %733 = vmatpush.bf16.msra.mxu0 %v725
    %734 = vmatpush.bf16.msra.mxu0 %v714
    %735 = vmatmul.bf16.gmra.mxu0 %v719
    %v736 = vpop.f32.mrf.mxu0
    %v737 = vadd.f32 0.0, %v736
    %v738 = vpop.f32.mrf.mxu0
    %v739 = vadd.f32 0.0, %v738
    %740 = vmatmul.bf16.gmra.mxu0 %v722
    %v741 = vpop.f32.mrf.mxu0
    %v742 = vadd.f32 0.0, %v741
    %v743 = vpop.f32.mrf.mxu0
    %744 = vdwg.mxu0
    %v745 = vpack.c.bf16 %v421, %v421
    %746 = vrot.lane.b32.xlu0 %v437, 104
    %v747 = vpop.permute.xlu0 %746
    %748 = vrot.lane.b32.xlu0 %v438, 104
    %v749 = vpop.permute.xlu0 %748
    %v751 = vsel %vm440, %v747, 0
    %v754 = vsel %vm440, %v749, 0
    %v757 = vsel %vm447, %v745, 0
    %759 = vmatpush.bf16.msra.mxu0 0
    %760 = vmatpush.bf16.msra.mxu0 0
    %761 = vmatpush.bf16.msra.mxu0 0
    %762 = vmatpush.bf16.msra.mxu0 0
    %763 = vmatpush.bf16.msra.mxu0 0
    %764 = vmatpush.bf16.msra.mxu0 0
    %765 = vmatpush.bf16.msra.mxu0 0
    %766 = vmatpush.bf16.msra.mxu0 %v757
    %767 = vmatmul.bf16.gmra.mxu0 %v751
    %v768 = vpop.f32.mrf.mxu0
    %v769 = vadd.f32 %v167, %v768
    %v770 = vpop.f32.mrf.mxu0
    %v771 = vadd.f32 %v167, %v770
    %772 = vmatmul.bf16.gmra.mxu0 %v754
    %v773 = vpop.f32.mrf.mxu0
    %v774 = vadd.f32 %v167, %v773
    %v775 = vpop.f32.mrf.mxu0
    %776 = vdwg.mxu0
    %v777 = vsel %vm469, %v769, -inf
    %778 = vmax.xlane.f32.xlu0 %v777
    %v779 = vpop.xlane.xlu0 %778
    %v780 = vsel %vm469, %v771, -inf
    %781 = vmax.xlane.f32.xlu0 %v780
    %v782 = vpop.xlane.xlu0 %781
    %v783 = vsel %vm469, %v774, -inf
    %784 = vmax.xlane.f32.xlu0 %v783
    %v785 = vpop.xlane.xlu0 %784
    %v786 = vsub.f32 %v769, %v779
    %v787 = vsub.f32 %v771, %v782
    %v788 = vsub.f32 %v774, %v785
    %v789 = vmul.f32 %v786, 1.442695
    %v790 = vpow.pop %v789
    %v791 = vmul.f32 %v787, 1.442695
    %v792 = vpow.pop %v791
    %v793 = vmul.f32 %v788, 1.442695
    %v794 = vpow.pop %v793
    %v795 = vsel %vm469, %v790, 0.0
    %796 = vadd.xlane.f32.xlu0 %v795
    %v797 = vpop.xlane.xlu0 %796
    %v798 = vsel %vm469, %v792, 0.0
    %799 = vadd.xlane.f32.xlu0 %v798
    %v800 = vpop.xlane.xlu0 %799
    %v801 = vsel %vm469, %v794, 0.0
    %802 = vadd.xlane.f32.xlu0 %v801
    %v803 = vpop.xlane.xlu0 %802
    %v804 = vrcp.pop %v797
    %v805 = vrcp.pop %v800
    %v806 = vrcp.pop %v803
    %v807 = vmul.f32 %v790, %v804
    %v808 = vmul.f32 %v792, %v805
    %v809 = vmul.f32 %v794, %v806
    %v810 = vpack.c.bf16 %v808, %v807
    %v811 = vpack.c.bf16 %v809, %v809
    %812 = vrot.lane.b32.xlu0 %v511, 40
    %v813 = vpop.permute.xlu0 %812
    %814 = vrot.lane.b32.xlu0 %v512, 40
    %v815 = vpop.permute.xlu0 %814
    %v818 = vsel %vm469, %v810, 0
    %v821 = vsel %vm469, %v811, 0
    %v824 = vsel %vm447, %v815, 0
    %826 = vmatpush.bf16.msra.mxu0 0
    %827 = vmatpush.bf16.msra.mxu0 0
    %828 = vmatpush.bf16.msra.mxu0 0
    %829 = vmatpush.bf16.msra.mxu0 0
    %830 = vmatpush.bf16.msra.mxu0 0
    %831 = vmatpush.bf16.msra.mxu0 0
    %832 = vmatpush.bf16.msra.mxu0 %v824
    %833 = vmatpush.bf16.msra.mxu0 %v813
    %834 = vmatmul.bf16.gmra.mxu0 %v818
    %v835 = vpop.f32.mrf.mxu0
    %v836 = vadd.f32 0.0, %v835
    %v837 = vpop.f32.mrf.mxu0
    %v838 = vadd.f32 0.0, %v837
    %839 = vmatmul.bf16.gmra.mxu0 %v821
    %v840 = vpop.f32.mrf.mxu0
    %v841 = vadd.f32 0.0, %v840
    %v842 = vpop.f32.mrf.mxu0
    %843 = vdwg.mxu0
    %847 = vrot.lane.b32.xlu0 %v638, 8
    %v848 = vpop.permute.xlu0 %847
    %849 = vrot.lane.b32.xlu0 %v640, 8
    %v850 = vpop.permute.xlu0 %849
    %851 = vrot.lane.b32.xlu0 %v643, 8
    %v852 = vpop.permute.xlu0 %851
    %859 = vrot.lane.b32.xlu0 %v737, 16
    %v860 = vpop.permute.xlu0 %859
    %861 = vrot.lane.b32.xlu0 %v739, 16
    %v862 = vpop.permute.xlu0 %861
    %863 = vrot.lane.b32.xlu0 %v742, 16
    %v864 = vpop.permute.xlu0 %863
    %871 = vrot.lane.b32.xlu0 %v836, 24
    %v872 = vpop.permute.xlu0 %871
    %873 = vrot.lane.b32.xlu0 %v838, 24
    %v874 = vpop.permute.xlu0 %873
    %875 = vrot.lane.b32.xlu0 %v841, 24
    %v876 = vpop.permute.xlu0 %875
    %v880 = vsel %vm440, %v537, %v848
    %v881 = vsel %vm440, %v539, %v850
    %v882 = vsel %vm440, %v542, %v852
    %vm883 = vcmask 130048
    %v884 = vsel %vm883, %v880, %v860
    %v885 = vsel %vm883, %v881, %v862
    %v886 = vsel %vm883, %v882, %v864
    %v887 = vsel %vm469, %v884, %v872
    %v888 = vsel %vm469, %v885, %v874
    %v889 = vsel %vm469, %v886, %v876
    %893 = vrot.lane.b32.xlu0 %v377, 96
    %v894 = vpop.permute.xlu0 %893
    %895 = vrot.lane.b32.xlu0 %v380, 96
    %v896 = vpop.permute.xlu0 %895
    %897 = vrot.lane.b32.xlu0 %v382, 96
    %v898 = vpop.permute.xlu0 %897
    %902 = vxpose.xlu0.b32.start [1/16] %v894, 128
    %903 = vxpose.xlu0.b32.cont [2/16] %v896, 128
    %904 = vxpose.xlu0.b32.cont [3/16] %v898, 128
    %905 = vxpose.xlu0.b32.cont [4/16] 0.0, 128
    %906 = vxpose.xlu0.b32.cont [5/16] 0.0, 128
    %907 = vxpose.xlu0.b32.cont [6/16] 0.0, 128
    %908 = vxpose.xlu0.b32.cont [7/16] 0.0, 128
    %909 = vxpose.xlu0.b32.cont [8/16] 0.0, 128
    %910 = vxpose.xlu0.b32.cont [9/16] 0.0, 128
    %911 = vxpose.xlu0.b32.cont [10/16] 0.0, 128
    %912 = vxpose.xlu0.b32.cont [11/16] 0.0, 128
    %913 = vxpose.xlu0.b32.cont [12/16] 0.0, 128
    %914 = vxpose.xlu0.b32.cont [13/16] 0.0, 128
    %915 = vxpose.xlu0.b32.cont [14/16] 0.0, 128
    %916 = vxpose.xlu0.b32.cont [15/16] 0.0, 128
    %917 = vxpose.xlu0.b32.end [16/16] 0.0, 128
    %v918 = vpop.trf.xlu0
    %v919 = vpop.trf.xlu0
    %v920 = vpop.trf.xlu0
    %v921 = vpop.trf.xlu0
    %v922 = vpop.trf.xlu0
    %v923 = vpop.trf.xlu0
    %v924 = vpop.trf.xlu0
    %v925 = vpop.trf.xlu0
    %v926 = vpop.trf.xlu0
    %v927 = vpop.trf.xlu0
    %v928 = vpop.trf.xlu0
    %v929 = vpop.trf.xlu0
    %v930 = vpop.trf.xlu0
    %v931 = vpop.trf.xlu0
    %v932 = vpop.trf.xlu0
    %v933 = vpop.trf.xlu0
    %v934 = vpack.c.bf16 %v377, %v377
    %v935 = vpack.c.bf16 %v380, %v380
    %v936 = vpack.c.bf16 %v382, %v382
    %v937 = vpack.c.bf16 %v388, %v387
    %v938 = vpack.c.bf16 %v389, %v389
    %v939 = vpack.c.bf16 %v918, %v918
    %v941 = vsel %vm440, %v937, 0
    %v944 = vsel %vm440, %v938, 0
    %v947 = vsel %vm447, %v939, 0
    %949 = vmatpush.bf16.msra.mxu0 0
    %950 = vmatpush.bf16.msra.mxu0 0
    %951 = vmatpush.bf16.msra.mxu0 0
    %952 = vmatpush.bf16.msra.mxu0 0
    %953 = vmatpush.bf16.msra.mxu0 0
    %954 = vmatpush.bf16.msra.mxu0 0
    %955 = vmatpush.bf16.msra.mxu0 0
    %956 = vmatpush.bf16.msra.mxu0 %v947
    %957 = vmatmul.bf16.gmra.mxu0 %v941
    %v958 = vpop.f32.mrf.mxu0
    %v959 = vadd.f32 %v167, %v958
    %v960 = vpop.f32.mrf.mxu0
    %v961 = vadd.f32 %v167, %v960
    %962 = vmatmul.bf16.gmra.mxu0 %v944
    %v963 = vpop.f32.mrf.mxu0
    %v964 = vadd.f32 %v167, %v963
    %v965 = vpop.f32.mrf.mxu0
    %966 = vdwg.mxu0
    %v967 = vsel %vm469, %v959, -inf
    %968 = vmax.xlane.f32.xlu0 %v967
    %v969 = vpop.xlane.xlu0 %968
    %v970 = vsel %vm469, %v961, -inf
    %971 = vmax.xlane.f32.xlu0 %v970
    %v972 = vpop.xlane.xlu0 %971
    %v973 = vsel %vm469, %v964, -inf
    %974 = vmax.xlane.f32.xlu0 %v973
    %v975 = vpop.xlane.xlu0 %974
    %v976 = vsub.f32 %v959, %v969
    %v977 = vsub.f32 %v961, %v972
    %v978 = vsub.f32 %v964, %v975
    %v979 = vmul.f32 %v976, 1.442695
    %v980 = vpow.pop %v979
    %v981 = vmul.f32 %v977, 1.442695
    %v982 = vpow.pop %v981
    %v983 = vmul.f32 %v978, 1.442695
    %v984 = vpow.pop %v983
    %v985 = vsel %vm469, %v980, 0.0
    %986 = vadd.xlane.f32.xlu0 %v985
    %v987 = vpop.xlane.xlu0 %986
    %v988 = vsel %vm469, %v982, 0.0
    %989 = vadd.xlane.f32.xlu0 %v988
    %v990 = vpop.xlane.xlu0 %989
    %v991 = vsel %vm469, %v984, 0.0
    %992 = vadd.xlane.f32.xlu0 %v991
    %v993 = vpop.xlane.xlu0 %992
    %v994 = vrcp.pop %v987
    %v995 = vrcp.pop %v990
    %v996 = vrcp.pop %v993
    %v997 = vmul.f32 %v980, %v994
    %v998 = vmul.f32 %v982, %v995
    %v999 = vmul.f32 %v984, %v996
    %v1000 = vpack.c.bf16 %v998, %v997
    %v1001 = vpack.c.bf16 %v999, %v999
    %v1005 = vunpack.c.l.b16 %v934
    %v1006 = vunpack.c.l.b16 %v935
    %v1007 = vunpack.c.l.b16 %v936
    %v1008 = vpack.c.b16 %v1006, %v1005
    %v1009 = vpack.c.b16 %v1007, %v1007
    %1010 = vrot.lane.b32.xlu0 %v1008, 64
    %v1011 = vpop.permute.xlu0 %1010
    %1012 = vrot.lane.b32.xlu0 %v1009, 64
    %v1013 = vpop.permute.xlu0 %1012
    %v1016 = vsel %vm469, %v1000, 0
    %v1019 = vsel %vm469, %v1001, 0
    %v1022 = vsel %vm447, %v1013, 0
    %1024 = vmatpush.bf16.msra.mxu0 0
    %1025 = vmatpush.bf16.msra.mxu0 0
    %1026 = vmatpush.bf16.msra.mxu0 0
    %1027 = vmatpush.bf16.msra.mxu0 0
    %1028 = vmatpush.bf16.msra.mxu0 0
    %1029 = vmatpush.bf16.msra.mxu0 0
    %1030 = vmatpush.bf16.msra.mxu0 %v1022
    %1031 = vmatpush.bf16.msra.mxu0 %v1011
    %1032 = vmatmul.bf16.gmra.mxu0 %v1016
    %v1033 = vpop.f32.mrf.mxu0
    %v1034 = vadd.f32 0.0, %v1033
    %v1035 = vpop.f32.mrf.mxu0
    %v1036 = vadd.f32 0.0, %v1035
    %1037 = vmatmul.bf16.gmra.mxu0 %v1019
    %v1038 = vpop.f32.mrf.mxu0
    %v1039 = vadd.f32 0.0, %v1038
    %v1040 = vpop.f32.mrf.mxu0
    %1041 = vdwg.mxu0
    %v1042 = vpack.c.bf16 %v919, %v919
    %1045 = vrot.lane.b32.xlu0 %v937, 120
    %v1046 = vpop.permute.xlu0 %1045
    %1047 = vrot.lane.b32.xlu0 %v938, 120
    %v1048 = vpop.permute.xlu0 %1047
    %v1050 = vsel %vm440, %v1046, 0
    %v1053 = vsel %vm440, %v1048, 0
    %v1056 = vsel %vm447, %v1042, 0
    %1058 = vmatpush.bf16.msra.mxu0 0
    %1059 = vmatpush.bf16.msra.mxu0 0
    %1060 = vmatpush.bf16.msra.mxu0 0
    %1061 = vmatpush.bf16.msra.mxu0 0
    %1062 = vmatpush.bf16.msra.mxu0 0
    %1063 = vmatpush.bf16.msra.mxu0 0
    %1064 = vmatpush.bf16.msra.mxu0 0
    %1065 = vmatpush.bf16.msra.mxu0 %v1056
    %1066 = vmatmul.bf16.gmra.mxu0 %v1050
    %v1067 = vpop.f32.mrf.mxu0
    %v1068 = vadd.f32 %v167, %v1067
    %v1069 = vpop.f32.mrf.mxu0
    %v1070 = vadd.f32 %v167, %v1069
    %1071 = vmatmul.bf16.gmra.mxu0 %v1053
    %v1072 = vpop.f32.mrf.mxu0
    %v1073 = vadd.f32 %v167, %v1072
    %v1074 = vpop.f32.mrf.mxu0
    %1075 = vdwg.mxu0
    %v1076 = vsel %vm469, %v1068, -inf
    %1077 = vmax.xlane.f32.xlu0 %v1076
    %v1078 = vpop.xlane.xlu0 %1077
    %v1079 = vsel %vm469, %v1070, -inf
    %1080 = vmax.xlane.f32.xlu0 %v1079
    %v1081 = vpop.xlane.xlu0 %1080
    %v1082 = vsel %vm469, %v1073, -inf
    %1083 = vmax.xlane.f32.xlu0 %v1082
    %v1084 = vpop.xlane.xlu0 %1083
    %v1085 = vsub.f32 %v1068, %v1078
    %v1086 = vsub.f32 %v1070, %v1081
    %v1087 = vsub.f32 %v1073, %v1084
    %v1088 = vmul.f32 %v1085, 1.442695
    %v1089 = vpow.pop %v1088
    %v1090 = vmul.f32 %v1086, 1.442695
    %v1091 = vpow.pop %v1090
    %v1092 = vmul.f32 %v1087, 1.442695
    %v1093 = vpow.pop %v1092
    %v1094 = vsel %vm469, %v1089, 0.0
    %1095 = vadd.xlane.f32.xlu0 %v1094
    %v1096 = vpop.xlane.xlu0 %1095
    %v1097 = vsel %vm469, %v1091, 0.0
    %1098 = vadd.xlane.f32.xlu0 %v1097
    %v1099 = vpop.xlane.xlu0 %1098
    %v1100 = vsel %vm469, %v1093, 0.0
    %1101 = vadd.xlane.f32.xlu0 %v1100
    %v1102 = vpop.xlane.xlu0 %1101
    %v1103 = vrcp.pop %v1096
    %v1104 = vrcp.pop %v1099
    %v1105 = vrcp.pop %v1102
    %v1106 = vmul.f32 %v1089, %v1103
    %v1107 = vmul.f32 %v1091, %v1104
    %v1108 = vmul.f32 %v1093, %v1105
    %v1109 = vpack.c.bf16 %v1107, %v1106
    %v1110 = vpack.c.bf16 %v1108, %v1108
    %1111 = vrot.lane.b32.xlu0 %v1008, 56
    %v1112 = vpop.permute.xlu0 %1111
    %1113 = vrot.lane.b32.xlu0 %v1009, 56
    %v1114 = vpop.permute.xlu0 %1113
    %v1117 = vsel %vm469, %v1109, 0
    %v1120 = vsel %vm469, %v1110, 0
    %v1123 = vsel %vm447, %v1114, 0
    %1125 = vmatpush.bf16.msra.mxu0 0
    %1126 = vmatpush.bf16.msra.mxu0 0
    %1127 = vmatpush.bf16.msra.mxu0 0
    %1128 = vmatpush.bf16.msra.mxu0 0
    %1129 = vmatpush.bf16.msra.mxu0 0
    %1130 = vmatpush.bf16.msra.mxu0 0
    %1131 = vmatpush.bf16.msra.mxu0 %v1123
    %1132 = vmatpush.bf16.msra.mxu0 %v1112
    %1133 = vmatmul.bf16.gmra.mxu0 %v1117
    %v1134 = vpop.f32.mrf.mxu0
    %v1135 = vadd.f32 0.0, %v1134
    %v1136 = vpop.f32.mrf.mxu0
    %v1137 = vadd.f32 0.0, %v1136
    %1138 = vmatmul.bf16.gmra.mxu0 %v1120
    %v1139 = vpop.f32.mrf.mxu0
    %v1140 = vadd.f32 0.0, %v1139
    %v1141 = vpop.f32.mrf.mxu0
    %1142 = vdwg.mxu0
    %v1143 = vpack.c.bf16 %v920, %v920
    %1144 = vrot.lane.b32.xlu0 %v937, 112
    %v1145 = vpop.permute.xlu0 %1144
    %1146 = vrot.lane.b32.xlu0 %v938, 112
    %v1147 = vpop.permute.xlu0 %1146
    %v1149 = vsel %vm440, %v1145, 0
    %v1152 = vsel %vm440, %v1147, 0
    %v1155 = vsel %vm447, %v1143, 0
    %1157 = vmatpush.bf16.msra.mxu0 0
    %1158 = vmatpush.bf16.msra.mxu0 0
    %1159 = vmatpush.bf16.msra.mxu0 0
    %1160 = vmatpush.bf16.msra.mxu0 0
    %1161 = vmatpush.bf16.msra.mxu0 0
    %1162 = vmatpush.bf16.msra.mxu0 0
    %1163 = vmatpush.bf16.msra.mxu0 0
    %1164 = vmatpush.bf16.msra.mxu0 %v1155
    %1165 = vmatmul.bf16.gmra.mxu0 %v1149
    %v1166 = vpop.f32.mrf.mxu0
    %v1167 = vadd.f32 %v167, %v1166
    %v1168 = vpop.f32.mrf.mxu0
    %v1169 = vadd.f32 %v167, %v1168
    %1170 = vmatmul.bf16.gmra.mxu0 %v1152
    %v1171 = vpop.f32.mrf.mxu0
    %v1172 = vadd.f32 %v167, %v1171
    %v1173 = vpop.f32.mrf.mxu0
    %1174 = vdwg.mxu0
    %v1175 = vsel %vm469, %v1167, -inf
    %1176 = vmax.xlane.f32.xlu0 %v1175
    %v1177 = vpop.xlane.xlu0 %1176
    %v1178 = vsel %vm469, %v1169, -inf
    %1179 = vmax.xlane.f32.xlu0 %v1178
    %v1180 = vpop.xlane.xlu0 %1179
    %v1181 = vsel %vm469, %v1172, -inf
    %1182 = vmax.xlane.f32.xlu0 %v1181
    %v1183 = vpop.xlane.xlu0 %1182
    %v1184 = vsub.f32 %v1167, %v1177
    %v1185 = vsub.f32 %v1169, %v1180
    %v1186 = vsub.f32 %v1172, %v1183
    %v1187 = vmul.f32 %v1184, 1.442695
    %v1188 = vpow.pop %v1187
    %v1189 = vmul.f32 %v1185, 1.442695
    %v1190 = vpow.pop %v1189
    %v1191 = vmul.f32 %v1186, 1.442695
    %v1192 = vpow.pop %v1191
    %v1193 = vsel %vm469, %v1188, 0.0
    %1194 = vadd.xlane.f32.xlu0 %v1193
    %v1195 = vpop.xlane.xlu0 %1194
    %v1196 = vsel %vm469, %v1190, 0.0
    %1197 = vadd.xlane.f32.xlu0 %v1196
    %v1198 = vpop.xlane.xlu0 %1197
    %v1199 = vsel %vm469, %v1192, 0.0
    %1200 = vadd.xlane.f32.xlu0 %v1199
    %v1201 = vpop.xlane.xlu0 %1200
    %v1202 = vrcp.pop %v1195
    %v1203 = vrcp.pop %v1198
    %v1204 = vrcp.pop %v1201
    %v1205 = vmul.f32 %v1188, %v1202
    %v1206 = vmul.f32 %v1190, %v1203
    %v1207 = vmul.f32 %v1192, %v1204
    %v1208 = vpack.c.bf16 %v1206, %v1205
    %v1209 = vpack.c.bf16 %v1207, %v1207
    %1210 = vrot.lane.b32.xlu0 %v1008, 48
    %v1211 = vpop.permute.xlu0 %1210
    %1212 = vrot.lane.b32.xlu0 %v1009, 48
    %v1213 = vpop.permute.xlu0 %1212
    %v1216 = vsel %vm469, %v1208, 0
    %v1219 = vsel %vm469, %v1209, 0
    %v1222 = vsel %vm447, %v1213, 0
    %1224 = vmatpush.bf16.msra.mxu0 0
    %1225 = vmatpush.bf16.msra.mxu0 0
    %1226 = vmatpush.bf16.msra.mxu0 0
    %1227 = vmatpush.bf16.msra.mxu0 0
    %1228 = vmatpush.bf16.msra.mxu0 0
    %1229 = vmatpush.bf16.msra.mxu0 0
    %1230 = vmatpush.bf16.msra.mxu0 %v1222
    %1231 = vmatpush.bf16.msra.mxu0 %v1211
    %1232 = vmatmul.bf16.gmra.mxu0 %v1216
    %v1233 = vpop.f32.mrf.mxu0
    %v1234 = vadd.f32 0.0, %v1233
    %v1235 = vpop.f32.mrf.mxu0
    %v1236 = vadd.f32 0.0, %v1235
    %1237 = vmatmul.bf16.gmra.mxu0 %v1219
    %v1238 = vpop.f32.mrf.mxu0
    %v1239 = vadd.f32 0.0, %v1238
    %v1240 = vpop.f32.mrf.mxu0
    %1241 = vdwg.mxu0
    %v1242 = vpack.c.bf16 %v921, %v921
    %1243 = vrot.lane.b32.xlu0 %v937, 104
    %v1244 = vpop.permute.xlu0 %1243
    %1245 = vrot.lane.b32.xlu0 %v938, 104
    %v1246 = vpop.permute.xlu0 %1245
    %v1248 = vsel %vm440, %v1244, 0
    %v1251 = vsel %vm440, %v1246, 0
    %v1254 = vsel %vm447, %v1242, 0
    %1256 = vmatpush.bf16.msra.mxu0 0
    %1257 = vmatpush.bf16.msra.mxu0 0
    %1258 = vmatpush.bf16.msra.mxu0 0
    %1259 = vmatpush.bf16.msra.mxu0 0
    %1260 = vmatpush.bf16.msra.mxu0 0
    %1261 = vmatpush.bf16.msra.mxu0 0
    %1262 = vmatpush.bf16.msra.mxu0 0
    %1263 = vmatpush.bf16.msra.mxu0 %v1254
    %1264 = vmatmul.bf16.gmra.mxu0 %v1248
    %v1265 = vpop.f32.mrf.mxu0
    %v1266 = vadd.f32 %v167, %v1265
    %v1267 = vpop.f32.mrf.mxu0
    %v1268 = vadd.f32 %v167, %v1267
    %1269 = vmatmul.bf16.gmra.mxu0 %v1251
    %v1270 = vpop.f32.mrf.mxu0
    %v1271 = vadd.f32 %v167, %v1270
    %v1272 = vpop.f32.mrf.mxu0
    %1273 = vdwg.mxu0
    %v1274 = vsel %vm469, %v1266, -inf
    %1275 = vmax.xlane.f32.xlu0 %v1274
    %v1276 = vpop.xlane.xlu0 %1275
    %v1277 = vsel %vm469, %v1268, -inf
    %1278 = vmax.xlane.f32.xlu0 %v1277
    %v1279 = vpop.xlane.xlu0 %1278
    %v1280 = vsel %vm469, %v1271, -inf
    %1281 = vmax.xlane.f32.xlu0 %v1280
    %v1282 = vpop.xlane.xlu0 %1281
    %v1283 = vsub.f32 %v1266, %v1276
    %v1284 = vsub.f32 %v1268, %v1279
    %v1285 = vsub.f32 %v1271, %v1282
    %v1286 = vmul.f32 %v1283, 1.442695
    %v1287 = vpow.pop %v1286
    %v1288 = vmul.f32 %v1284, 1.442695
    %v1289 = vpow.pop %v1288
    %v1290 = vmul.f32 %v1285, 1.442695
    %v1291 = vpow.pop %v1290
    %v1292 = vsel %vm469, %v1287, 0.0
    %1293 = vadd.xlane.f32.xlu0 %v1292
    %v1294 = vpop.xlane.xlu0 %1293
    %v1295 = vsel %vm469, %v1289, 0.0
    %1296 = vadd.xlane.f32.xlu0 %v1295
    %v1297 = vpop.xlane.xlu0 %1296
    %v1298 = vsel %vm469, %v1291, 0.0
    %1299 = vadd.xlane.f32.xlu0 %v1298
    %v1300 = vpop.xlane.xlu0 %1299
    %v1301 = vrcp.pop %v1294
    %v1302 = vrcp.pop %v1297
    %v1303 = vrcp.pop %v1300
    %v1304 = vmul.f32 %v1287, %v1301
    %v1305 = vmul.f32 %v1289, %v1302
    %v1306 = vmul.f32 %v1291, %v1303
    %v1307 = vpack.c.bf16 %v1305, %v1304
    %v1308 = vpack.c.bf16 %v1306, %v1306
    %1309 = vrot.lane.b32.xlu0 %v1008, 40
    %v1310 = vpop.permute.xlu0 %1309
    %1311 = vrot.lane.b32.xlu0 %v1009, 40
    %v1312 = vpop.permute.xlu0 %1311
    %v1315 = vsel %vm469, %v1307, 0
    %v1318 = vsel %vm469, %v1308, 0
    %v1321 = vsel %vm447, %v1312, 0
    %1323 = vmatpush.bf16.msra.mxu0 0
    %1324 = vmatpush.bf16.msra.mxu0 0
    %1325 = vmatpush.bf16.msra.mxu0 0
    %1326 = vmatpush.bf16.msra.mxu0 0
    %1327 = vmatpush.bf16.msra.mxu0 0
    %1328 = vmatpush.bf16.msra.mxu0 0
    %1329 = vmatpush.bf16.msra.mxu0 %v1321
    %1330 = vmatpush.bf16.msra.mxu0 %v1310
    %1331 = vmatmul.bf16.gmra.mxu0 %v1315
    %v1332 = vpop.f32.mrf.mxu0
    %v1333 = vadd.f32 0.0, %v1332
    %v1334 = vpop.f32.mrf.mxu0
    %v1335 = vadd.f32 0.0, %v1334
    %1336 = vmatmul.bf16.gmra.mxu0 %v1318
    %v1337 = vpop.f32.mrf.mxu0
    %v1338 = vadd.f32 0.0, %v1337
    %v1339 = vpop.f32.mrf.mxu0
    %1340 = vdwg.mxu0
    %1344 = vrot.lane.b32.xlu0 %v1135, 8
    %v1345 = vpop.permute.xlu0 %1344
    %1346 = vrot.lane.b32.xlu0 %v1137, 8
    %v1347 = vpop.permute.xlu0 %1346
    %1348 = vrot.lane.b32.xlu0 %v1140, 8
    %v1349 = vpop.permute.xlu0 %1348
    %1356 = vrot.lane.b32.xlu0 %v1234, 16
    %v1357 = vpop.permute.xlu0 %1356
    %1358 = vrot.lane.b32.xlu0 %v1236, 16
    %v1359 = vpop.permute.xlu0 %1358
    %1360 = vrot.lane.b32.xlu0 %v1239, 16
    %v1361 = vpop.permute.xlu0 %1360
    %1368 = vrot.lane.b32.xlu0 %v1333, 24
    %v1369 = vpop.permute.xlu0 %1368
    %1370 = vrot.lane.b32.xlu0 %v1335, 24
    %v1371 = vpop.permute.xlu0 %1370
    %1372 = vrot.lane.b32.xlu0 %v1338, 24
    %v1373 = vpop.permute.xlu0 %1372
    %v1377 = vsel %vm440, %v1034, %v1345
    %v1378 = vsel %vm440, %v1036, %v1347
    %v1379 = vsel %vm440, %v1039, %v1349
    %v1380 = vsel %vm883, %v1377, %v1357
    %v1381 = vsel %vm883, %v1378, %v1359
    %v1382 = vsel %vm883, %v1379, %v1361
    %v1383 = vsel %vm469, %v1380, %v1369
    %v1384 = vsel %vm469, %v1381, %v1371
    %v1385 = vsel %vm469, %v1382, %v1373
    %v1386 = vld [vmem:[%s8] sm:$0xf]
    %v1387 = vld [vmem:[%s8 + $0x4] sm:$0xf]
    %v1388 = vld [vmem:[%s8 + $0x8] sm:$0xf]
    %v1389 = vld [vmem:[%s8 + $0xc] sm:$0xf]
    %v1390 = vld [vmem:[%s9] sm:$0x1]
    %v1391 = vpack.c.bf16 %v888, %v887
    %v1392 = vpack.c.bf16 %v1383, %v889
    %v1393 = vpack.c.bf16 %v1385, %v1384
    %v1395 = vperm.slane %v1390, 0
    %v1401 = vunpack.c.l.b16 %v1386
    %v1402 = vunpack.c.l.b16 %v1387
    %v1403 = vunpack.c.l.b16 %v1388
    %v1404 = vunpack.c.l.b16 %v1389
    %v1405 = vpack.c.b16 %v1402, %v1401
    %v1406 = vpack.c.b16 %v1404, %v1403
    %v1410 = vsel %vm170, %v1391, 0
    %v1413 = vsel %vm170, %v1392, 0
    %v1416 = vsel %vm170, %v1393, 0
    %1418 = vmatpush.bf16.msra.mxu0 0
    %1419 = vmatpush.bf16.msra.mxu0 0
    %1420 = vmatpush.bf16.msra.mxu0 0
    %1421 = vmatpush.bf16.msra.mxu0 0
    %1422 = vmatpush.bf16.msra.mxu0 0
    %1423 = vmatpush.bf16.msra.mxu0 0
    %1424 = vmatpush.bf16.msra.mxu0 %v1406
    %1425 = vmatpush.bf16.msra.mxu0 %v1405
    %1426 = vmatmul.bf16.gmra.mxu0 %v1410
    %v1427 = vpop.f32.mrf.mxu0
    %v1428 = vadd.f32 %v1395, %v1427
    %v1429 = vpop.f32.mrf.mxu0
    %v1430 = vadd.f32 %v1395, %v1429
    %1431 = vmatmul.bf16.gmra.mxu0 %v1413
    %v1432 = vpop.f32.mrf.mxu0
    %v1433 = vadd.f32 %v1395, %v1432
    %v1434 = vpop.f32.mrf.mxu0
    %v1435 = vadd.f32 %v1395, %v1434
    %1436 = vmatmul.bf16.gmra.mxu0 %v1416
    %v1437 = vpop.f32.mrf.mxu0
    %v1438 = vadd.f32 %v1395, %v1437
    %v1439 = vpop.f32.mrf.mxu0
    %v1440 = vadd.f32 %v1395, %v1439
    %1441 = vdwg.mxu0
    %v1442 = vadd.f32 %v158, %v1428
    %v1443 = vadd.f32 %v159, %v1430
    %v1444 = vadd.f32 %v160, %v1433
    %v1445 = vadd.f32 %v161, %v1435
    %v1446 = vadd.f32 %v162, %v1438
    %v1447 = vadd.f32 %v163, %v1440
    %v1448 = vld [vmem:[%s10] sm:$0x1]
    %v1449 = vld [vmem:[%s11] sm:$0x1]
    %v1450 = vsel %vm170, %v1442, 0.0
    %1451 = vadd.xlane.f32.xlu0 %v1450
    %v1452 = vpop.xlane.xlu0 %1451
    %v1453 = vsel %vm170, %v1443, 0.0
    %1454 = vadd.xlane.f32.xlu0 %v1453
    %v1455 = vpop.xlane.xlu0 %1454
    %v1456 = vsel %vm170, %v1444, 0.0
    %1457 = vadd.xlane.f32.xlu0 %v1456
    %v1458 = vpop.xlane.xlu0 %1457
    %v1459 = vsel %vm170, %v1445, 0.0
    %1460 = vadd.xlane.f32.xlu0 %v1459
    %v1461 = vpop.xlane.xlu0 %1460
    %v1462 = vsel %vm170, %v1446, 0.0
    %1463 = vadd.xlane.f32.xlu0 %v1462
    %v1464 = vpop.xlane.xlu0 %1463
    %v1465 = vsel %vm170, %v1447, 0.0
    %1466 = vadd.xlane.f32.xlu0 %v1465
    %v1467 = vpop.xlane.xlu0 %1466
    %v1468 = vmul.f32 %v1452, %v195
    %v1469 = vmul.f32 %v1455, %v195
    %v1470 = vmul.f32 %v1458, %v195
    %v1471 = vmul.f32 %v1461, %v195
    %v1472 = vmul.f32 %v1464, %v195
    %v1473 = vmul.f32 %v1467, %v195
    %v1474 = vsub.f32 %v1442, %v1468
    %v1475 = vsub.f32 %v1443, %v1469
    %v1476 = vsub.f32 %v1444, %v1470
    %v1477 = vsub.f32 %v1445, %v1471
    %v1478 = vsub.f32 %v1446, %v1472
    %v1479 = vsub.f32 %v1447, %v1473
    %v1480 = vmul.f32 %v1474, %v1474
    %v1481 = vmul.f32 %v1475, %v1475
    %v1482 = vmul.f32 %v1476, %v1476
    %v1483 = vmul.f32 %v1477, %v1477
    %v1484 = vmul.f32 %v1478, %v1478
    %v1485 = vmul.f32 %v1479, %v1479
    %v1486 = vsel %vm170, %v1480, 0.0
    %1487 = vadd.xlane.f32.xlu0 %v1486
    %v1488 = vpop.xlane.xlu0 %1487
    %v1489 = vsel %vm170, %v1481, 0.0
    %1490 = vadd.xlane.f32.xlu0 %v1489
    %v1491 = vpop.xlane.xlu0 %1490
    %v1492 = vsel %vm170, %v1482, 0.0
    %1493 = vadd.xlane.f32.xlu0 %v1492
    %v1494 = vpop.xlane.xlu0 %1493
    %v1495 = vsel %vm170, %v1483, 0.0
    %1496 = vadd.xlane.f32.xlu0 %v1495
    %v1497 = vpop.xlane.xlu0 %1496
    %v1498 = vsel %vm170, %v1484, 0.0
    %1499 = vadd.xlane.f32.xlu0 %v1498
    %v1500 = vpop.xlane.xlu0 %1499
    %v1501 = vsel %vm170, %v1485, 0.0
    %1502 = vadd.xlane.f32.xlu0 %v1501
    %v1503 = vpop.xlane.xlu0 %1502
    %v1504 = vmul.f32 %v1488, %v195
    %v1505 = vmul.f32 %v1491, %v195
    %v1506 = vmul.f32 %v1494, %v195
    %v1507 = vmul.f32 %v1497, %v195
    %v1508 = vmul.f32 %v1500, %v195
    %v1509 = vmul.f32 %v1503, %v195
    %v1510 = vadd.f32 %v1504, 1e-05
    %v1511 = vadd.f32 %v1505, 1e-05
    %v1512 = vadd.f32 %v1506, 1e-05
    %v1513 = vadd.f32 %v1507, 1e-05
    %v1514 = vadd.f32 %v1508, 1e-05
    %v1515 = vadd.f32 %v1509, 1e-05
    %v1516 = vrsqrt.pop %v1510
    %v1517 = vmul.f32 %v1516, %v1510
    %v1518 = vmul.f32 %v1517, %v1516
    %v1519 = vmul.f32 0.5, %v1518
    %v1520 = vsub.f32 1.5, %v1519
    %v1521 = vmul.f32 %v1516, %v1520
    %vm1522 = vweird.f32 %v1510
    %vm1523 = vweird.f32 %v1516
    %vm1524 = vmor %vm1522, %vm1523
    %v1525 = vsel %vm1524, %v1516, %v1521
    %v1526 = vrsqrt.pop %v1511
    %v1527 = vmul.f32 %v1526, %v1511
    %v1528 = vmul.f32 %v1527, %v1526
    %v1529 = vmul.f32 0.5, %v1528
    %v1530 = vsub.f32 1.5, %v1529
    %v1531 = vmul.f32 %v1526, %v1530
    %vm1532 = vweird.f32 %v1511
    %vm1533 = vweird.f32 %v1526
    %vm1534 = vmor %vm1532, %vm1533
    %v1535 = vsel %vm1534, %v1526, %v1531
    %v1536 = vrsqrt.pop %v1512
    %v1537 = vmul.f32 %v1536, %v1512
    %v1538 = vmul.f32 %v1537, %v1536
    %v1539 = vmul.f32 0.5, %v1538
    %v1540 = vsub.f32 1.5, %v1539
    %v1541 = vmul.f32 %v1536, %v1540
    %vm1542 = vweird.f32 %v1512
    %vm1543 = vweird.f32 %v1536
    %vm1544 = vmor %vm1542, %vm1543
    %v1545 = vsel %vm1544, %v1536, %v1541
    %v1546 = vrsqrt.pop %v1513
    %v1547 = vmul.f32 %v1546, %v1513
    %v1548 = vmul.f32 %v1547, %v1546
    %v1549 = vmul.f32 0.5, %v1548
    %v1550 = vsub.f32 1.5, %v1549
    %v1551 = vmul.f32 %v1546, %v1550
    %vm1552 = vweird.f32 %v1513
    %vm1553 = vweird.f32 %v1546
    %vm1554 = vmor %vm1552, %vm1553
    %v1555 = vsel %vm1554, %v1546, %v1551
    %v1556 = vrsqrt.pop %v1514
    %v1557 = vmul.f32 %v1556, %v1514
    %v1558 = vmul.f32 %v1557, %v1556
    %v1559 = vmul.f32 0.5, %v1558
    %v1560 = vsub.f32 1.5, %v1559
    %v1561 = vmul.f32 %v1556, %v1560
    %vm1562 = vweird.f32 %v1514
    %vm1563 = vweird.f32 %v1556
    %vm1564 = vmor %vm1562, %vm1563
    %v1565 = vsel %vm1564, %v1556, %v1561
    %v1566 = vrsqrt.pop %v1515
    %v1567 = vmul.f32 %v1566, %v1515
    %v1568 = vmul.f32 %v1567, %v1566
    %v1569 = vmul.f32 0.5, %v1568
    %v1570 = vsub.f32 1.5, %v1569
    %v1571 = vmul.f32 %v1566, %v1570
    %vm1572 = vweird.f32 %v1515
    %vm1573 = vweird.f32 %v1566
    %vm1574 = vmor %vm1572, %vm1573
    %v1575 = vsel %vm1574, %v1566, %v1571
    %v1576 = vmul.f32 %v1474, %v1525
    %v1577 = vmul.f32 %v1475, %v1535
    %v1578 = vmul.f32 %v1476, %v1545
    %v1579 = vmul.f32 %v1477, %v1555
    %v1580 = vmul.f32 %v1478, %v1565
    %v1581 = vmul.f32 %v1479, %v1575
    %v1583 = vperm.slane %v1448, 0
    %v1585 = vmul.f32 %v1576, %v1583
    %v1586 = vmul.f32 %v1577, %v1583
    %v1587 = vmul.f32 %v1578, %v1583
    %v1588 = vmul.f32 %v1579, %v1583
    %v1589 = vmul.f32 %v1580, %v1583
    %v1590 = vmul.f32 %v1581, %v1583
    %v1592 = vperm.slane %v1449, 0
    %v1594 = vadd.f32 %v1585, %v1592
    %v1595 = vadd.f32 %v1586, %v1592
    %v1596 = vadd.f32 %v1587, %v1592
    %v1597 = vadd.f32 %v1588, %v1592
    %v1598 = vadd.f32 %v1589, %v1592
    %v1599 = vadd.f32 %v1590, %v1592
    %v1600 = vld [vmem:[%s12] sm:$0xf]
    %v1601 = vld [vmem:[%s12 + $0x4] sm:$0xf]
    %v1602 = vld [vmem:[%s12 + $0x8] sm:$0xf]
    %v1603 = vld [vmem:[%s12 + $0xc] sm:$0xf]
    %v1604 = vld [vmem:[%s13] sm:$0x1]
    %v1605 = vpack.c.bf16 %v1595, %v1594
    %v1606 = vpack.c.bf16 %v1597, %v1596
    %v1607 = vpack.c.bf16 %v1599, %v1598
    %v1609 = vperm.slane %v1604, 0
    %v1615 = vunpack.c.l.b16 %v1600
    %v1616 = vunpack.c.l.b16 %v1601
    %v1617 = vunpack.c.l.b16 %v1602
    %v1618 = vunpack.c.l.b16 %v1603
    %v1619 = vpack.c.b16 %v1616, %v1615
    %v1620 = vpack.c.b16 %v1618, %v1617
    %v1624 = vsel %vm170, %v1605, 0
    %v1627 = vsel %vm170, %v1606, 0
    %v1630 = vsel %vm170, %v1607, 0
    %1632 = vmatpush.bf16.msra.mxu0 0
    %1633 = vmatpush.bf16.msra.mxu0 0
    %1634 = vmatpush.bf16.msra.mxu0 0
    %1635 = vmatpush.bf16.msra.mxu0 0
    %1636 = vmatpush.bf16.msra.mxu0 0
    %1637 = vmatpush.bf16.msra.mxu0 0
    %1638 = vmatpush.bf16.msra.mxu0 %v1620
    %1639 = vmatpush.bf16.msra.mxu0 %v1619
    %1640 = vmatmul.bf16.gmra.mxu0 %v1624
    %v1641 = vpop.f32.mrf.mxu0
    %v1642 = vadd.f32 %v1609, %v1641
    %v1643 = vpop.f32.mrf.mxu0
    %v1644 = vadd.f32 %v1609, %v1643
    %1645 = vmatmul.bf16.gmra.mxu0 %v1627
    %v1646 = vpop.f32.mrf.mxu0
    %v1647 = vadd.f32 %v1609, %v1646
    %v1648 = vpop.f32.mrf.mxu0
    %v1649 = vadd.f32 %v1609, %v1648
    %1650 = vmatmul.bf16.gmra.mxu0 %v1630
    %v1651 = vpop.f32.mrf.mxu0
    %v1652 = vadd.f32 %v1609, %v1651
    %v1653 = vpop.f32.mrf.mxu0
    %v1654 = vadd.f32 %v1609, %v1653
    %1655 = vdwg.mxu0
    %v1656 = vmul.f32 %v1642, %v1642
    %v1657 = vmul.f32 %v1644, %v1644
    %v1658 = vmul.f32 %v1647, %v1647
    %v1659 = vmul.f32 %v1649, %v1649
    %v1660 = vmul.f32 %v1652, %v1652
    %v1661 = vmul.f32 %v1654, %v1654
    %v1662 = vmul.f32 %v1642, 0.5
    %v1663 = vmul.f32 %v1644, 0.5
    %v1664 = vmul.f32 %v1647, 0.5
    %v1665 = vmul.f32 %v1649, 0.5
    %v1666 = vmul.f32 %v1652, 0.5
    %v1667 = vmul.f32 %v1654, 0.5
    %v1668 = vmul.f32 %v1642, 0.7978846
    %v1669 = vmul.f32 %v1644, 0.7978846
    %v1670 = vmul.f32 %v1647, 0.7978846
    %v1671 = vmul.f32 %v1649, 0.7978846
    %v1672 = vmul.f32 %v1652, 0.7978846
    %v1673 = vmul.f32 %v1654, 0.7978846
    %v1674 = vmul.f32 %v1656, 0.044715
    %v1675 = vmul.f32 %v1657, 0.044715
    %v1676 = vmul.f32 %v1658, 0.044715
    %v1677 = vmul.f32 %v1659, 0.044715
    %v1678 = vmul.f32 %v1660, 0.044715
    %v1679 = vmul.f32 %v1661, 0.044715
    %v1680 = vadd.f32 %v1674, 1.0
    %v1681 = vadd.f32 %v1675, 1.0
    %v1682 = vadd.f32 %v1676, 1.0
    %v1683 = vadd.f32 %v1677, 1.0
    %v1684 = vadd.f32 %v1678, 1.0
    %v1685 = vadd.f32 %v1679, 1.0
    %v1686 = vmul.f32 %v1668, %v1680
    %v1687 = vmul.f32 %v1669, %v1681
    %v1688 = vmul.f32 %v1670, %v1682
    %v1689 = vmul.f32 %v1671, %v1683
    %v1690 = vmul.f32 %v1672, %v1684
    %v1691 = vmul.f32 %v1673, %v1685
    %v1692 = vtanh.pop %v1686
    %v1693 = vtanh.pop %v1687
    %v1694 = vtanh.pop %v1688
    %v1695 = vtanh.pop %v1689
    %v1696 = vtanh.pop %v1690
    %v1697 = vtanh.pop %v1691
    %v1698 = vadd.f32 %v1692, 1.0
    %v1699 = vadd.f32 %v1693, 1.0
    %v1700 = vadd.f32 %v1694, 1.0
    %v1701 = vadd.f32 %v1695, 1.0
    %v1702 = vadd.f32 %v1696, 1.0
    %v1703 = vadd.f32 %v1697, 1.0
    %v1704 = vmul.f32 %v1662, %v1698
    %v1705 = vmul.f32 %v1663, %v1699
    %v1706 = vmul.f32 %v1664, %v1700
    %v1707 = vmul.f32 %v1665, %v1701
    %v1708 = vmul.f32 %v1666, %v1702
    %v1709 = vmul.f32 %v1667, %v1703
    %v1710 = vld [vmem:[%s14] sm:$0xf]
    %v1711 = vld [vmem:[%s14 + $0x4] sm:$0xf]
    %v1712 = vld [vmem:[%s14 + $0x8] sm:$0xf]
    %v1713 = vld [vmem:[%s14 + $0xc] sm:$0xf]
    %v1714 = vld [vmem:[%s14 + $0x10] sm:$0xf]
    %v1715 = vld [vmem:[%s14 + $0x14] sm:$0xf]
    %v1716 = vld [vmem:[%s14 + $0x18] sm:$0xf]
    %v1717 = vld [vmem:[%s14 + $0x1c] sm:$0xf]
    %v1718 = vld [vmem:[%s15] sm:$0x1]
    %v1719 = vpack.c.bf16 %v1705, %v1704
    %v1720 = vpack.c.bf16 %v1707, %v1706
    %v1721 = vpack.c.bf16 %v1709, %v1708
    %v1723 = vperm.slane %v1718, 0
    %v1733 = vunpack.c.l.b16 %v1710
    %v1734 = vunpack.c.l.b16 %v1711
    %v1735 = vunpack.c.l.b16 %v1712
    %v1736 = vunpack.c.l.b16 %v1713
    %v1737 = vunpack.c.l.b16 %v1714
    %v1738 = vunpack.c.l.b16 %v1715
    %v1739 = vunpack.c.l.b16 %v1716
    %v1740 = vunpack.c.l.b16 %v1717
    %v1741 = vpack.c.b16 %v1734, %v1733
    %v1742 = vpack.c.b16 %v1736, %v1735
    %v1743 = vpack.c.b16 %v1738, %v1737
    %v1744 = vpack.c.b16 %v1740, %v1739
    %v1750 = vsel %vm118, %v1719, 0
    %v1753 = vsel %vm118, %v1720, 0
    %v1756 = vsel %vm118, %v1721, 0
    %1758 = vmatpush.bf16.msra.mxu0 0
    %1759 = vmatpush.bf16.msra.mxu0 0
    %1760 = vmatpush.bf16.msra.mxu0 0
    %1761 = vmatpush.bf16.msra.mxu0 0
    %1762 = vmatpush.bf16.msra.mxu0 %v1744
    %1763 = vmatpush.bf16.msra.mxu0 %v1743
    %1764 = vmatpush.bf16.msra.mxu0 %v1742
    %1765 = vmatpush.bf16.msra.mxu0 %v1741
    %1766 = vmatmul.bf16.gmra.mxu0 %v1750
    %v1767 = vpop.f32.mrf.mxu0
    %v1768 = vadd.f32 %v1723, %v1767
    %v1769 = vpop.f32.mrf.mxu0
    %v1770 = vadd.f32 %v1723, %v1769
    %1771 = vmatmul.bf16.gmra.mxu0 %v1753
    %v1772 = vpop.f32.mrf.mxu0
    %v1773 = vadd.f32 %v1723, %v1772
    %v1774 = vpop.f32.mrf.mxu0
    %v1775 = vadd.f32 %v1723, %v1774
    %1776 = vmatmul.bf16.gmra.mxu0 %v1756
    %v1777 = vpop.f32.mrf.mxu0
    %v1778 = vadd.f32 %v1723, %v1777
    %v1779 = vpop.f32.mrf.mxu0
    %v1780 = vadd.f32 %v1723, %v1779
    %1781 = vdwg.mxu0
    %v1782 = vadd.f32 %v1442, %v1768
    %v1783 = vadd.f32 %v1443, %v1770
    %v1784 = vadd.f32 %v1444, %v1773
    %v1785 = vadd.f32 %v1445, %v1775
    %v1786 = vadd.f32 %v1446, %v1778
    %v1787 = vadd.f32 %v1447, %v1780
    %s1788 = scalar_lea.vmem %s4, 1
    %v1789 = vld [vmem:[%s1788] sm:$0x1]
    %s1790 = scalar_lea.vmem %s5, 1
    %v1791 = vld [vmem:[%s1790] sm:$0x1]
    %v1792 = vsel %vm170, %v1782, 0.0
    %1793 = vadd.xlane.f32.xlu0 %v1792
    %v1794 = vpop.xlane.xlu0 %1793
    %v1795 = vsel %vm170, %v1783, 0.0
    %1796 = vadd.xlane.f32.xlu0 %v1795
    %v1797 = vpop.xlane.xlu0 %1796
    %v1798 = vsel %vm170, %v1784, 0.0
    %1799 = vadd.xlane.f32.xlu0 %v1798
    %v1800 = vpop.xlane.xlu0 %1799
    %v1801 = vsel %vm170, %v1785, 0.0
    %1802 = vadd.xlane.f32.xlu0 %v1801
    %v1803 = vpop.xlane.xlu0 %1802
    %v1804 = vsel %vm170, %v1786, 0.0
    %1805 = vadd.xlane.f32.xlu0 %v1804
    %v1806 = vpop.xlane.xlu0 %1805
    %v1807 = vsel %vm170, %v1787, 0.0
    %1808 = vadd.xlane.f32.xlu0 %v1807
    %v1809 = vpop.xlane.xlu0 %1808
    %v1810 = vmul.f32 %v1794, %v195
    %v1811 = vmul.f32 %v1797, %v195
    %v1812 = vmul.f32 %v1800, %v195
    %v1813 = vmul.f32 %v1803, %v195
    %v1814 = vmul.f32 %v1806, %v195
    %v1815 = vmul.f32 %v1809, %v195
    %v1816 = vsub.f32 %v1782, %v1810
    %v1817 = vsub.f32 %v1783, %v1811
    %v1818 = vsub.f32 %v1784, %v1812
    %v1819 = vsub.f32 %v1785, %v1813
    %v1820 = vsub.f32 %v1786, %v1814
    %v1821 = vsub.f32 %v1787, %v1815
    %v1822 = vmul.f32 %v1816, %v1816
    %v1823 = vmul.f32 %v1817, %v1817
    %v1824 = vmul.f32 %v1818, %v1818
    %v1825 = vmul.f32 %v1819, %v1819
    %v1826 = vmul.f32 %v1820, %v1820
    %v1827 = vmul.f32 %v1821, %v1821
    %v1828 = vsel %vm170, %v1822, 0.0
    %1829 = vadd.xlane.f32.xlu0 %v1828
    %v1830 = vpop.xlane.xlu0 %1829
    %v1831 = vsel %vm170, %v1823, 0.0
    %1832 = vadd.xlane.f32.xlu0 %v1831
    %v1833 = vpop.xlane.xlu0 %1832
    %v1834 = vsel %vm170, %v1824, 0.0
    %1835 = vadd.xlane.f32.xlu0 %v1834
    %v1836 = vpop.xlane.xlu0 %1835
    %v1837 = vsel %vm170, %v1825, 0.0
    %1838 = vadd.xlane.f32.xlu0 %v1837
    %v1839 = vpop.xlane.xlu0 %1838
    %v1840 = vsel %vm170, %v1826, 0.0
    %1841 = vadd.xlane.f32.xlu0 %v1840
    %v1842 = vpop.xlane.xlu0 %1841
    %v1843 = vsel %vm170, %v1827, 0.0
    %1844 = vadd.xlane.f32.xlu0 %v1843
    %v1845 = vpop.xlane.xlu0 %1844
    %v1846 = vmul.f32 %v1830, %v195
    %v1847 = vmul.f32 %v1833, %v195
    %v1848 = vmul.f32 %v1836, %v195
    %v1849 = vmul.f32 %v1839, %v195
    %v1850 = vmul.f32 %v1842, %v195
    %v1851 = vmul.f32 %v1845, %v195
    %v1852 = vadd.f32 %v1846, 1e-05
    %v1853 = vadd.f32 %v1847, 1e-05
    %v1854 = vadd.f32 %v1848, 1e-05
    %v1855 = vadd.f32 %v1849, 1e-05
    %v1856 = vadd.f32 %v1850, 1e-05
    %v1857 = vadd.f32 %v1851, 1e-05
    %v1858 = vrsqrt.pop %v1852
    %v1859 = vmul.f32 %v1858, %v1852
    %v1860 = vmul.f32 %v1859, %v1858
    %v1861 = vmul.f32 0.5, %v1860
    %v1862 = vsub.f32 1.5, %v1861
    %v1863 = vmul.f32 %v1858, %v1862
    %vm1864 = vweird.f32 %v1852
    %vm1865 = vweird.f32 %v1858
    %vm1866 = vmor %vm1864, %vm1865
    %v1867 = vsel %vm1866, %v1858, %v1863
    %v1868 = vrsqrt.pop %v1853
    %v1869 = vmul.f32 %v1868, %v1853
    %v1870 = vmul.f32 %v1869, %v1868
    %v1871 = vmul.f32 0.5, %v1870
    %v1872 = vsub.f32 1.5, %v1871
    %v1873 = vmul.f32 %v1868, %v1872
    %vm1874 = vweird.f32 %v1853
    %vm1875 = vweird.f32 %v1868
    %vm1876 = vmor %vm1874, %vm1875
    %v1877 = vsel %vm1876, %v1868, %v1873
    %v1878 = vrsqrt.pop %v1854
    %v1879 = vmul.f32 %v1878, %v1854
    %v1880 = vmul.f32 %v1879, %v1878
    %v1881 = vmul.f32 0.5, %v1880
    %v1882 = vsub.f32 1.5, %v1881
    %v1883 = vmul.f32 %v1878, %v1882
    %vm1884 = vweird.f32 %v1854
    %vm1885 = vweird.f32 %v1878
    %vm1886 = vmor %vm1884, %vm1885
    %v1887 = vsel %vm1886, %v1878, %v1883
    %v1888 = vrsqrt.pop %v1855
    %v1889 = vmul.f32 %v1888, %v1855
    %v1890 = vmul.f32 %v1889, %v1888
    %v1891 = vmul.f32 0.5, %v1890
    %v1892 = vsub.f32 1.5, %v1891
    %v1893 = vmul.f32 %v1888, %v1892
    %vm1894 = vweird.f32 %v1855
    %vm1895 = vweird.f32 %v1888
    %vm1896 = vmor %vm1894, %vm1895
    %v1897 = vsel %vm1896, %v1888, %v1893
    %v1898 = vrsqrt.pop %v1856
    %v1899 = vmul.f32 %v1898, %v1856
    %v1900 = vmul.f32 %v1899, %v1898
    %v1901 = vmul.f32 0.5, %v1900
    %v1902 = vsub.f32 1.5, %v1901
    %v1903 = vmul.f32 %v1898, %v1902
    %vm1904 = vweird.f32 %v1856
    %vm1905 = vweird.f32 %v1898
    %vm1906 = vmor %vm1904, %vm1905
    %v1907 = vsel %vm1906, %v1898, %v1903
    %v1908 = vrsqrt.pop %v1857
    %v1909 = vmul.f32 %v1908, %v1857
    %v1910 = vmul.f32 %v1909, %v1908
    %v1911 = vmul.f32 0.5, %v1910
    %v1912 = vsub.f32 1.5, %v1911
    %v1913 = vmul.f32 %v1908, %v1912
    %vm1914 = vweird.f32 %v1857
    %vm1915 = vweird.f32 %v1908
    %vm1916 = vmor %vm1914, %vm1915
    %v1917 = vsel %vm1916, %v1908, %v1913
    %v1918 = vmul.f32 %v1816, %v1867
    %v1919 = vmul.f32 %v1817, %v1877
    %v1920 = vmul.f32 %v1818, %v1887
    %v1921 = vmul.f32 %v1819, %v1897
    %v1922 = vmul.f32 %v1820, %v1907
    %v1923 = vmul.f32 %v1821, %v1917
    %v1925 = vperm.slane %v1789, 0
    %v1927 = vmul.f32 %v1918, %v1925
    %v1928 = vmul.f32 %v1919, %v1925
    %v1929 = vmul.f32 %v1920, %v1925
    %v1930 = vmul.f32 %v1921, %v1925
    %v1931 = vmul.f32 %v1922, %v1925
    %v1932 = vmul.f32 %v1923, %v1925
    %v1934 = vperm.slane %v1791, 0
    %v1936 = vadd.f32 %v1927, %v1934
    %v1937 = vadd.f32 %v1928, %v1934
    %v1938 = vadd.f32 %v1929, %v1934
    %v1939 = vadd.f32 %v1930, %v1934
    %v1940 = vadd.f32 %v1931, %v1934
    %v1941 = vadd.f32 %v1932, %v1934
    %s1942 = scalar_lea.vmem %s6, 16
    %v1943 = vld [vmem:[%s1942] sm:$0xf]
    %v1944 = vld [vmem:[%s1942 + $0x4] sm:$0xf]
    %v1945 = vld [vmem:[%s1942 + $0x8] sm:$0xf]
    %v1946 = vld [vmem:[%s1942 + $0xc] sm:$0xf]
    %s1947 = scalar_lea.vmem %s7, 1
    %v1948 = vld [vmem:[%s1947] sm:$0x1]
    %v1949 = vpack.c.bf16 %v1937, %v1936
    %v1950 = vpack.c.bf16 %v1939, %v1938
    %v1951 = vpack.c.bf16 %v1941, %v1940
    %v1953 = vperm.slane %v1948, 0
    %v1959 = vunpack.c.l.b16 %v1943
    %v1960 = vunpack.c.l.b16 %v1944
    %v1961 = vunpack.c.l.b16 %v1945
    %v1962 = vunpack.c.l.b16 %v1946
    %v1963 = vpack.c.b16 %v1960, %v1959
    %v1964 = vpack.c.b16 %v1962, %v1961
    %v1968 = vsel %vm170, %v1949, 0
    %v1971 = vsel %vm170, %v1950, 0
    %v1974 = vsel %vm170, %v1951, 0
    %1976 = vmatpush.bf16.msra.mxu0 0
    %1977 = vmatpush.bf16.msra.mxu0 0
    %1978 = vmatpush.bf16.msra.mxu0 0
    %1979 = vmatpush.bf16.msra.mxu0 0
    %1980 = vmatpush.bf16.msra.mxu0 0
    %1981 = vmatpush.bf16.msra.mxu0 0
    %1982 = vmatpush.bf16.msra.mxu0 %v1964
    %1983 = vmatpush.bf16.msra.mxu0 %v1963
    %1984 = vmatmul.bf16.gmra.mxu0 %v1968
    %v1985 = vpop.f32.mrf.mxu0
    %v1986 = vadd.f32 %v1953, %v1985
    %v1987 = vpop.f32.mrf.mxu0
    %v1988 = vadd.f32 %v1953, %v1987
    %1989 = vmatmul.bf16.gmra.mxu0 %v1971
    %v1990 = vpop.f32.mrf.mxu0
    %v1991 = vadd.f32 %v1953, %v1990
    %v1992 = vpop.f32.mrf.mxu0
    %v1993 = vadd.f32 %v1953, %v1992
    %1994 = vmatmul.bf16.gmra.mxu0 %v1974
    %v1995 = vpop.f32.mrf.mxu0
    %v1996 = vadd.f32 %v1953, %v1995
    %v1997 = vpop.f32.mrf.mxu0
    %v1998 = vadd.f32 %v1953, %v1997
    %1999 = vdwg.mxu0
    %v2000 = vmul.f32 %v1986, 0.35355338
    %v2001 = vmul.f32 %v1988, 0.35355338
    %v2002 = vmul.f32 %v1991, 0.35355338
    %v2003 = vmul.f32 %v1993, 0.35355338
    %v2004 = vmul.f32 %v1996, 0.35355338
    %v2005 = vmul.f32 %v1998, 0.35355338
    %2009 = vrot.lane.b32.xlu0 %v1986, 96
    %v2010 = vpop.permute.xlu0 %2009
    %2011 = vrot.lane.b32.xlu0 %v1988, 96
    %v2012 = vpop.permute.xlu0 %2011
    %2013 = vrot.lane.b32.xlu0 %v1991, 96
    %v2014 = vpop.permute.xlu0 %2013
    %2018 = vxpose.xlu0.b32.start [1/16] %v2010, 128
    %2019 = vxpose.xlu0.b32.cont [2/16] %v2012, 128
    %2020 = vxpose.xlu0.b32.cont [3/16] %v2014, 128
    %2021 = vxpose.xlu0.b32.cont [4/16] 0.0, 128
    %2022 = vxpose.xlu0.b32.cont [5/16] 0.0, 128
    %2023 = vxpose.xlu0.b32.cont [6/16] 0.0, 128
    %2024 = vxpose.xlu0.b32.cont [7/16] 0.0, 128
    %2025 = vxpose.xlu0.b32.cont [8/16] 0.0, 128
    %2026 = vxpose.xlu0.b32.cont [9/16] 0.0, 128
    %2027 = vxpose.xlu0.b32.cont [10/16] 0.0, 128
    %2028 = vxpose.xlu0.b32.cont [11/16] 0.0, 128
    %2029 = vxpose.xlu0.b32.cont [12/16] 0.0, 128
    %2030 = vxpose.xlu0.b32.cont [13/16] 0.0, 128
    %2031 = vxpose.xlu0.b32.cont [14/16] 0.0, 128
    %2032 = vxpose.xlu0.b32.cont [15/16] 0.0, 128
    %2033 = vxpose.xlu0.b32.end [16/16] 0.0, 128
    %v2034 = vpop.trf.xlu0
    %v2035 = vpop.trf.xlu0
    %v2036 = vpop.trf.xlu0
    %v2037 = vpop.trf.xlu0
    %v2038 = vpop.trf.xlu0
    %v2039 = vpop.trf.xlu0
    %v2040 = vpop.trf.xlu0
    %v2041 = vpop.trf.xlu0
    %v2042 = vpop.trf.xlu0
    %v2043 = vpop.trf.xlu0
    %v2044 = vpop.trf.xlu0
    %v2045 = vpop.trf.xlu0
    %v2046 = vpop.trf.xlu0
    %v2047 = vpop.trf.xlu0
    %v2048 = vpop.trf.xlu0
    %v2049 = vpop.trf.xlu0
    %v2050 = vpack.c.bf16 %v1986, %v1986
    %v2051 = vpack.c.bf16 %v1988, %v1988
    %v2052 = vpack.c.bf16 %v1991, %v1991
    %v2053 = vpack.c.bf16 %v2001, %v2000
    %v2054 = vpack.c.bf16 %v2002, %v2002
    %v2055 = vpack.c.bf16 %v2034, %v2034
    %v2057 = vsel %vm440, %v2053, 0
    %v2060 = vsel %vm440, %v2054, 0
    %v2063 = vsel %vm447, %v2055, 0
    %2065 = vmatpush.bf16.msra.mxu0 0
    %2066 = vmatpush.bf16.msra.mxu0 0
    %2067 = vmatpush.bf16.msra.mxu0 0
    %2068 = vmatpush.bf16.msra.mxu0 0
    %2069 = vmatpush.bf16.msra.mxu0 0
    %2070 = vmatpush.bf16.msra.mxu0 0
    %2071 = vmatpush.bf16.msra.mxu0 0
    %2072 = vmatpush.bf16.msra.mxu0 %v2063
    %2073 = vmatmul.bf16.gmra.mxu0 %v2057
    %v2074 = vpop.f32.mrf.mxu0
    %v2075 = vadd.f32 %v167, %v2074
    %v2076 = vpop.f32.mrf.mxu0
    %v2077 = vadd.f32 %v167, %v2076
    %2078 = vmatmul.bf16.gmra.mxu0 %v2060
    %v2079 = vpop.f32.mrf.mxu0
    %v2080 = vadd.f32 %v167, %v2079
    %v2081 = vpop.f32.mrf.mxu0
    %2082 = vdwg.mxu0
    %v2083 = vsel %vm469, %v2075, -inf
    %2084 = vmax.xlane.f32.xlu0 %v2083
    %v2085 = vpop.xlane.xlu0 %2084
    %v2086 = vsel %vm469, %v2077, -inf
    %2087 = vmax.xlane.f32.xlu0 %v2086
    %v2088 = vpop.xlane.xlu0 %2087
    %v2089 = vsel %vm469, %v2080, -inf
    %2090 = vmax.xlane.f32.xlu0 %v2089
    %v2091 = vpop.xlane.xlu0 %2090
    %v2092 = vsub.f32 %v2075, %v2085
    %v2093 = vsub.f32 %v2077, %v2088
    %v2094 = vsub.f32 %v2080, %v2091
    %v2095 = vmul.f32 %v2092, 1.442695
    %v2096 = vpow.pop %v2095
    %v2097 = vmul.f32 %v2093, 1.442695
    %v2098 = vpow.pop %v2097
    %v2099 = vmul.f32 %v2094, 1.442695
    %v2100 = vpow.pop %v2099
    %v2101 = vsel %vm469, %v2096, 0.0
    %2102 = vadd.xlane.f32.xlu0 %v2101
    %v2103 = vpop.xlane.xlu0 %2102
    %v2104 = vsel %vm469, %v2098, 0.0
    %2105 = vadd.xlane.f32.xlu0 %v2104
    %v2106 = vpop.xlane.xlu0 %2105
    %v2107 = vsel %vm469, %v2100, 0.0
    %2108 = vadd.xlane.f32.xlu0 %v2107
    %v2109 = vpop.xlane.xlu0 %2108
    %v2110 = vrcp.pop %v2103
    %v2111 = vrcp.pop %v2106
    %v2112 = vrcp.pop %v2109
    %v2113 = vmul.f32 %v2096, %v2110
    %v2114 = vmul.f32 %v2098, %v2111
    %v2115 = vmul.f32 %v2100, %v2112
    %v2116 = vpack.c.bf16 %v2114, %v2113
    %v2117 = vpack.c.bf16 %v2115, %v2115
    %v2121 = vunpack.c.l.b16 %v2050
    %v2122 = vunpack.c.l.b16 %v2051
    %v2123 = vunpack.c.l.b16 %v2052
    %v2124 = vpack.c.b16 %v2122, %v2121
    %v2125 = vpack.c.b16 %v2123, %v2123
    %2126 = vrot.lane.b32.xlu0 %v2124, 64
    %v2127 = vpop.permute.xlu0 %2126
    %2128 = vrot.lane.b32.xlu0 %v2125, 64
    %v2129 = vpop.permute.xlu0 %2128
    %v2132 = vsel %vm469, %v2116, 0
    %v2135 = vsel %vm469, %v2117, 0
    %v2138 = vsel %vm447, %v2129, 0
    %2140 = vmatpush.bf16.msra.mxu0 0
    %2141 = vmatpush.bf16.msra.mxu0 0
    %2142 = vmatpush.bf16.msra.mxu0 0
    %2143 = vmatpush.bf16.msra.mxu0 0
    %2144 = vmatpush.bf16.msra.mxu0 0
    %2145 = vmatpush.bf16.msra.mxu0 0
    %2146 = vmatpush.bf16.msra.mxu0 %v2138
    %2147 = vmatpush.bf16.msra.mxu0 %v2127
    %2148 = vmatmul.bf16.gmra.mxu0 %v2132
    %v2149 = vpop.f32.mrf.mxu0
    %v2150 = vadd.f32 0.0, %v2149
    %v2151 = vpop.f32.mrf.mxu0
    %v2152 = vadd.f32 0.0, %v2151
    %2153 = vmatmul.bf16.gmra.mxu0 %v2135
    %v2154 = vpop.f32.mrf.mxu0
    %v2155 = vadd.f32 0.0, %v2154
    %v2156 = vpop.f32.mrf.mxu0
    %2157 = vdwg.mxu0
    %v2158 = vpack.c.bf16 %v2035, %v2035
    %2161 = vrot.lane.b32.xlu0 %v2053, 120
    %v2162 = vpop.permute.xlu0 %2161
    %2163 = vrot.lane.b32.xlu0 %v2054, 120
    %v2164 = vpop.permute.xlu0 %2163
    %v2166 = vsel %vm440, %v2162, 0
    %v2169 = vsel %vm440, %v2164, 0
    %v2172 = vsel %vm447, %v2158, 0
    %2174 = vmatpush.bf16.msra.mxu0 0
    %2175 = vmatpush.bf16.msra.mxu0 0
    %2176 = vmatpush.bf16.msra.mxu0 0
    %2177 = vmatpush.bf16.msra.mxu0 0
    %2178 = vmatpush.bf16.msra.mxu0 0
    %2179 = vmatpush.bf16.msra.mxu0 0
    %2180 = vmatpush.bf16.msra.mxu0 0
    %2181 = vmatpush.bf16.msra.mxu0 %v2172
    %2182 = vmatmul.bf16.gmra.mxu0 %v2166
    %v2183 = vpop.f32.mrf.mxu0
    %v2184 = vadd.f32 %v167, %v2183
    %v2185 = vpop.f32.mrf.mxu0
    %v2186 = vadd.f32 %v167, %v2185
    %2187 = vmatmul.bf16.gmra.mxu0 %v2169
    %v2188 = vpop.f32.mrf.mxu0
    %v2189 = vadd.f32 %v167, %v2188
    %v2190 = vpop.f32.mrf.mxu0
    %2191 = vdwg.mxu0
    %v2192 = vsel %vm469, %v2184, -inf
    %2193 = vmax.xlane.f32.xlu0 %v2192
    %v2194 = vpop.xlane.xlu0 %2193
    %v2195 = vsel %vm469, %v2186, -inf
    %2196 = vmax.xlane.f32.xlu0 %v2195
    %v2197 = vpop.xlane.xlu0 %2196
    %v2198 = vsel %vm469, %v2189, -inf
    %2199 = vmax.xlane.f32.xlu0 %v2198
    %v2200 = vpop.xlane.xlu0 %2199
    %v2201 = vsub.f32 %v2184, %v2194
    %v2202 = vsub.f32 %v2186, %v2197
    %v2203 = vsub.f32 %v2189, %v2200
    %v2204 = vmul.f32 %v2201, 1.442695
    %v2205 = vpow.pop %v2204
    %v2206 = vmul.f32 %v2202, 1.442695
    %v2207 = vpow.pop %v2206
    %v2208 = vmul.f32 %v2203, 1.442695
    %v2209 = vpow.pop %v2208
    %v2210 = vsel %vm469, %v2205, 0.0
    %2211 = vadd.xlane.f32.xlu0 %v2210
    %v2212 = vpop.xlane.xlu0 %2211
    %v2213 = vsel %vm469, %v2207, 0.0
    %2214 = vadd.xlane.f32.xlu0 %v2213
    %v2215 = vpop.xlane.xlu0 %2214
    %v2216 = vsel %vm469, %v2209, 0.0
    %2217 = vadd.xlane.f32.xlu0 %v2216
    %v2218 = vpop.xlane.xlu0 %2217
    %v2219 = vrcp.pop %v2212
    %v2220 = vrcp.pop %v2215
    %v2221 = vrcp.pop %v2218
    %v2222 = vmul.f32 %v2205, %v2219
    %v2223 = vmul.f32 %v2207, %v2220
    %v2224 = vmul.f32 %v2209, %v2221
    %v2225 = vpack.c.bf16 %v2223, %v2222
    %v2226 = vpack.c.bf16 %v2224, %v2224
    %2227 = vrot.lane.b32.xlu0 %v2124, 56
    %v2228 = vpop.permute.xlu0 %2227
    %2229 = vrot.lane.b32.xlu0 %v2125, 56
    %v2230 = vpop.permute.xlu0 %2229
    %v2233 = vsel %vm469, %v2225, 0
    %v2236 = vsel %vm469, %v2226, 0
    %v2239 = vsel %vm447, %v2230, 0
    %2241 = vmatpush.bf16.msra.mxu0 0
    %2242 = vmatpush.bf16.msra.mxu0 0
    %2243 = vmatpush.bf16.msra.mxu0 0
    %2244 = vmatpush.bf16.msra.mxu0 0
    %2245 = vmatpush.bf16.msra.mxu0 0
    %2246 = vmatpush.bf16.msra.mxu0 0
    %2247 = vmatpush.bf16.msra.mxu0 %v2239
    %2248 = vmatpush.bf16.msra.mxu0 %v2228
    %2249 = vmatmul.bf16.gmra.mxu0 %v2233
    %v2250 = vpop.f32.mrf.mxu0
    %v2251 = vadd.f32 0.0, %v2250
    %v2252 = vpop.f32.mrf.mxu0
    %v2253 = vadd.f32 0.0, %v2252
    %2254 = vmatmul.bf16.gmra.mxu0 %v2236
    %v2255 = vpop.f32.mrf.mxu0
    %v2256 = vadd.f32 0.0, %v2255
    %v2257 = vpop.f32.mrf.mxu0
    %2258 = vdwg.mxu0
    %v2259 = vpack.c.bf16 %v2036, %v2036
    %2260 = vrot.lane.b32.xlu0 %v2053, 112
    %v2261 = vpop.permute.xlu0 %2260
    %2262 = vrot.lane.b32.xlu0 %v2054, 112
    %v2263 = vpop.permute.xlu0 %2262
    %v2265 = vsel %vm440, %v2261, 0
    %v2268 = vsel %vm440, %v2263, 0
    %v2271 = vsel %vm447, %v2259, 0
    %2273 = vmatpush.bf16.msra.mxu0 0
    %2274 = vmatpush.bf16.msra.mxu0 0
    %2275 = vmatpush.bf16.msra.mxu0 0
    %2276 = vmatpush.bf16.msra.mxu0 0
    %2277 = vmatpush.bf16.msra.mxu0 0
    %2278 = vmatpush.bf16.msra.mxu0 0
    %2279 = vmatpush.bf16.msra.mxu0 0
    %2280 = vmatpush.bf16.msra.mxu0 %v2271
    %2281 = vmatmul.bf16.gmra.mxu0 %v2265
    %v2282 = vpop.f32.mrf.mxu0
    %v2283 = vadd.f32 %v167, %v2282
    %v2284 = vpop.f32.mrf.mxu0
    %v2285 = vadd.f32 %v167, %v2284
    %2286 = vmatmul.bf16.gmra.mxu0 %v2268
    %v2287 = vpop.f32.mrf.mxu0
    %v2288 = vadd.f32 %v167, %v2287
    %v2289 = vpop.f32.mrf.mxu0
    %2290 = vdwg.mxu0
    %v2291 = vsel %vm469, %v2283, -inf
    %2292 = vmax.xlane.f32.xlu0 %v2291
    %v2293 = vpop.xlane.xlu0 %2292
    %v2294 = vsel %vm469, %v2285, -inf
    %2295 = vmax.xlane.f32.xlu0 %v2294
    %v2296 = vpop.xlane.xlu0 %2295
    %v2297 = vsel %vm469, %v2288, -inf
    %2298 = vmax.xlane.f32.xlu0 %v2297
    %v2299 = vpop.xlane.xlu0 %2298
    %v2300 = vsub.f32 %v2283, %v2293
    %v2301 = vsub.f32 %v2285, %v2296
    %v2302 = vsub.f32 %v2288, %v2299
    %v2303 = vmul.f32 %v2300, 1.442695
    %v2304 = vpow.pop %v2303
    %v2305 = vmul.f32 %v2301, 1.442695
    %v2306 = vpow.pop %v2305
    %v2307 = vmul.f32 %v2302, 1.442695
    %v2308 = vpow.pop %v2307
    %v2309 = vsel %vm469, %v2304, 0.0
    %2310 = vadd.xlane.f32.xlu0 %v2309
    %v2311 = vpop.xlane.xlu0 %2310
    %v2312 = vsel %vm469, %v2306, 0.0
    %2313 = vadd.xlane.f32.xlu0 %v2312
    %v2314 = vpop.xlane.xlu0 %2313
    %v2315 = vsel %vm469, %v2308, 0.0
    %2316 = vadd.xlane.f32.xlu0 %v2315
    %v2317 = vpop.xlane.xlu0 %2316
    %v2318 = vrcp.pop %v2311
    %v2319 = vrcp.pop %v2314
    %v2320 = vrcp.pop %v2317
    %v2321 = vmul.f32 %v2304, %v2318
    %v2322 = vmul.f32 %v2306, %v2319
    %v2323 = vmul.f32 %v2308, %v2320
    %v2324 = vpack.c.bf16 %v2322, %v2321
    %v2325 = vpack.c.bf16 %v2323, %v2323
    %2326 = vrot.lane.b32.xlu0 %v2124, 48
    %v2327 = vpop.permute.xlu0 %2326
    %2328 = vrot.lane.b32.xlu0 %v2125, 48
    %v2329 = vpop.permute.xlu0 %2328
    %v2332 = vsel %vm469, %v2324, 0
    %v2335 = vsel %vm469, %v2325, 0
    %v2338 = vsel %vm447, %v2329, 0
    %2340 = vmatpush.bf16.msra.mxu0 0
    %2341 = vmatpush.bf16.msra.mxu0 0
    %2342 = vmatpush.bf16.msra.mxu0 0
    %2343 = vmatpush.bf16.msra.mxu0 0
    %2344 = vmatpush.bf16.msra.mxu0 0
    %2345 = vmatpush.bf16.msra.mxu0 0
    %2346 = vmatpush.bf16.msra.mxu0 %v2338
    %2347 = vmatpush.bf16.msra.mxu0 %v2327
    %2348 = vmatmul.bf16.gmra.mxu0 %v2332
    %v2349 = vpop.f32.mrf.mxu0
    %v2350 = vadd.f32 0.0, %v2349
    %v2351 = vpop.f32.mrf.mxu0
    %v2352 = vadd.f32 0.0, %v2351
    %2353 = vmatmul.bf16.gmra.mxu0 %v2335
    %v2354 = vpop.f32.mrf.mxu0
    %v2355 = vadd.f32 0.0, %v2354
    %v2356 = vpop.f32.mrf.mxu0
    %2357 = vdwg.mxu0
    %v2358 = vpack.c.bf16 %v2037, %v2037
    %2359 = vrot.lane.b32.xlu0 %v2053, 104
    %v2360 = vpop.permute.xlu0 %2359
    %2361 = vrot.lane.b32.xlu0 %v2054, 104
    %v2362 = vpop.permute.xlu0 %2361
    %v2364 = vsel %vm440, %v2360, 0
    %v2367 = vsel %vm440, %v2362, 0
    %v2370 = vsel %vm447, %v2358, 0
    %2372 = vmatpush.bf16.msra.mxu0 0
    %2373 = vmatpush.bf16.msra.mxu0 0
    %2374 = vmatpush.bf16.msra.mxu0 0
    %2375 = vmatpush.bf16.msra.mxu0 0
    %2376 = vmatpush.bf16.msra.mxu0 0
    %2377 = vmatpush.bf16.msra.mxu0 0
    %2378 = vmatpush.bf16.msra.mxu0 0
    %2379 = vmatpush.bf16.msra.mxu0 %v2370
    %2380 = vmatmul.bf16.gmra.mxu0 %v2364
    %v2381 = vpop.f32.mrf.mxu0
    %v2382 = vadd.f32 %v167, %v2381
    %v2383 = vpop.f32.mrf.mxu0
    %v2384 = vadd.f32 %v167, %v2383
    %2385 = vmatmul.bf16.gmra.mxu0 %v2367
    %v2386 = vpop.f32.mrf.mxu0
    %v2387 = vadd.f32 %v167, %v2386
    %v2388 = vpop.f32.mrf.mxu0
    %2389 = vdwg.mxu0
    %v2390 = vsel %vm469, %v2382, -inf
    %2391 = vmax.xlane.f32.xlu0 %v2390
    %v2392 = vpop.xlane.xlu0 %2391
    %v2393 = vsel %vm469, %v2384, -inf
    %2394 = vmax.xlane.f32.xlu0 %v2393
    %v2395 = vpop.xlane.xlu0 %2394
    %v2396 = vsel %vm469, %v2387, -inf
    %2397 = vmax.xlane.f32.xlu0 %v2396
    %v2398 = vpop.xlane.xlu0 %2397
    %v2399 = vsub.f32 %v2382, %v2392
    %v2400 = vsub.f32 %v2384, %v2395
    %v2401 = vsub.f32 %v2387, %v2398
    %v2402 = vmul.f32 %v2399, 1.442695
    %v2403 = vpow.pop %v2402
    %v2404 = vmul.f32 %v2400, 1.442695
    %v2405 = vpow.pop %v2404
    %v2406 = vmul.f32 %v2401, 1.442695
    %v2407 = vpow.pop %v2406
    %v2408 = vsel %vm469, %v2403, 0.0
    %2409 = vadd.xlane.f32.xlu0 %v2408
    %v2410 = vpop.xlane.xlu0 %2409
    %v2411 = vsel %vm469, %v2405, 0.0
    %2412 = vadd.xlane.f32.xlu0 %v2411
    %v2413 = vpop.xlane.xlu0 %2412
    %v2414 = vsel %vm469, %v2407, 0.0
    %2415 = vadd.xlane.f32.xlu0 %v2414
    %v2416 = vpop.xlane.xlu0 %2415
    %v2417 = vrcp.pop %v2410
    %v2418 = vrcp.pop %v2413
    %v2419 = vrcp.pop %v2416
    %v2420 = vmul.f32 %v2403, %v2417
    %v2421 = vmul.f32 %v2405, %v2418
    %v2422 = vmul.f32 %v2407, %v2419
    %v2423 = vpack.c.bf16 %v2421, %v2420
    %v2424 = vpack.c.bf16 %v2422, %v2422
    %2425 = vrot.lane.b32.xlu0 %v2124, 40
    %v2426 = vpop.permute.xlu0 %2425
    %2427 = vrot.lane.b32.xlu0 %v2125, 40
    %v2428 = vpop.permute.xlu0 %2427
    %v2431 = vsel %vm469, %v2423, 0
    %v2434 = vsel %vm469, %v2424, 0
    %v2437 = vsel %vm447, %v2428, 0
    %2439 = vmatpush.bf16.msra.mxu0 0
    %2440 = vmatpush.bf16.msra.mxu0 0
    %2441 = vmatpush.bf16.msra.mxu0 0
    %2442 = vmatpush.bf16.msra.mxu0 0
    %2443 = vmatpush.bf16.msra.mxu0 0
    %2444 = vmatpush.bf16.msra.mxu0 0
    %2445 = vmatpush.bf16.msra.mxu0 %v2437
    %2446 = vmatpush.bf16.msra.mxu0 %v2426
    %2447 = vmatmul.bf16.gmra.mxu0 %v2431
    %v2448 = vpop.f32.mrf.mxu0
    %v2449 = vadd.f32 0.0, %v2448
    %v2450 = vpop.f32.mrf.mxu0
    %v2451 = vadd.f32 0.0, %v2450
    %2452 = vmatmul.bf16.gmra.mxu0 %v2434
    %v2453 = vpop.f32.mrf.mxu0
    %v2454 = vadd.f32 0.0, %v2453
    %v2455 = vpop.f32.mrf.mxu0
    %2456 = vdwg.mxu0
    %2460 = vrot.lane.b32.xlu0 %v2251, 8
    %v2461 = vpop.permute.xlu0 %2460
    %2462 = vrot.lane.b32.xlu0 %v2253, 8
    %v2463 = vpop.permute.xlu0 %2462
    %2464 = vrot.lane.b32.xlu0 %v2256, 8
    %v2465 = vpop.permute.xlu0 %2464
    %2472 = vrot.lane.b32.xlu0 %v2350, 16
    %v2473 = vpop.permute.xlu0 %2472
    %2474 = vrot.lane.b32.xlu0 %v2352, 16
    %v2475 = vpop.permute.xlu0 %2474
    %2476 = vrot.lane.b32.xlu0 %v2355, 16
    %v2477 = vpop.permute.xlu0 %2476
    %2484 = vrot.lane.b32.xlu0 %v2449, 24
    %v2485 = vpop.permute.xlu0 %2484
    %2486 = vrot.lane.b32.xlu0 %v2451, 24
    %v2487 = vpop.permute.xlu0 %2486
    %2488 = vrot.lane.b32.xlu0 %v2454, 24
    %v2489 = vpop.permute.xlu0 %2488
    %v2493 = vsel %vm440, %v2150, %v2461
    %v2494 = vsel %vm440, %v2152, %v2463
    %v2495 = vsel %vm440, %v2155, %v2465
    %v2496 = vsel %vm883, %v2493, %v2473
    %v2497 = vsel %vm883, %v2494, %v2475
    %v2498 = vsel %vm883, %v2495, %v2477
    %v2499 = vsel %vm469, %v2496, %v2485
    %v2500 = vsel %vm469, %v2497, %v2487
    %v2501 = vsel %vm469, %v2498, %v2489
    %2505 = vrot.lane.b32.xlu0 %v1993, 96
    %v2506 = vpop.permute.xlu0 %2505
    %2507 = vrot.lane.b32.xlu0 %v1996, 96
    %v2508 = vpop.permute.xlu0 %2507
    %2509 = vrot.lane.b32.xlu0 %v1998, 96
    %v2510 = vpop.permute.xlu0 %2509
    %2514 = vxpose.xlu0.b32.start [1/16] %v2506, 128
    %2515 = vxpose.xlu0.b32.cont [2/16] %v2508, 128
    %2516 = vxpose.xlu0.b32.cont [3/16] %v2510, 128
    %2517 = vxpose.xlu0.b32.cont [4/16] 0.0, 128
    %2518 = vxpose.xlu0.b32.cont [5/16] 0.0, 128
    %2519 = vxpose.xlu0.b32.cont [6/16] 0.0, 128
    %2520 = vxpose.xlu0.b32.cont [7/16] 0.0, 128
    %2521 = vxpose.xlu0.b32.cont [8/16] 0.0, 128
    %2522 = vxpose.xlu0.b32.cont [9/16] 0.0, 128
    %2523 = vxpose.xlu0.b32.cont [10/16] 0.0, 128
    %2524 = vxpose.xlu0.b32.cont [11/16] 0.0, 128
    %2525 = vxpose.xlu0.b32.cont [12/16] 0.0, 128
    %2526 = vxpose.xlu0.b32.cont [13/16] 0.0, 128
    %2527 = vxpose.xlu0.b32.cont [14/16] 0.0, 128
    %2528 = vxpose.xlu0.b32.cont [15/16] 0.0, 128
    %2529 = vxpose.xlu0.b32.end [16/16] 0.0, 128
    %v2530 = vpop.trf.xlu0
    %v2531 = vpop.trf.xlu0
    %v2532 = vpop.trf.xlu0
    %v2533 = vpop.trf.xlu0
    %v2534 = vpop.trf.xlu0
    %v2535 = vpop.trf.xlu0
    %v2536 = vpop.trf.xlu0
    %v2537 = vpop.trf.xlu0
    %v2538 = vpop.trf.xlu0
    %v2539 = vpop.trf.xlu0
    %v2540 = vpop.trf.xlu0
    %v2541 = vpop.trf.xlu0
    %v2542 = vpop.trf.xlu0
    %v2543 = vpop.trf.xlu0
    %v2544 = vpop.trf.xlu0
    %v2545 = vpop.trf.xlu0
    %v2546 = vpack.c.bf16 %v1993, %v1993
    %v2547 = vpack.c.bf16 %v1996, %v1996
    %v2548 = vpack.c.bf16 %v1998, %v1998
    %v2549 = vpack.c.bf16 %v2004, %v2003
    %v2550 = vpack.c.bf16 %v2005, %v2005
    %v2551 = vpack.c.bf16 %v2530, %v2530
    %v2553 = vsel %vm440, %v2549, 0
    %v2556 = vsel %vm440, %v2550, 0
    %v2559 = vsel %vm447, %v2551, 0
    %2561 = vmatpush.bf16.msra.mxu0 0
    %2562 = vmatpush.bf16.msra.mxu0 0
    %2563 = vmatpush.bf16.msra.mxu0 0
    %2564 = vmatpush.bf16.msra.mxu0 0
    %2565 = vmatpush.bf16.msra.mxu0 0
    %2566 = vmatpush.bf16.msra.mxu0 0
    %2567 = vmatpush.bf16.msra.mxu0 0
    %2568 = vmatpush.bf16.msra.mxu0 %v2559
    %2569 = vmatmul.bf16.gmra.mxu0 %v2553
    %v2570 = vpop.f32.mrf.mxu0
    %v2571 = vadd.f32 %v167, %v2570
    %v2572 = vpop.f32.mrf.mxu0
    %v2573 = vadd.f32 %v167, %v2572
    %2574 = vmatmul.bf16.gmra.mxu0 %v2556
    %v2575 = vpop.f32.mrf.mxu0
    %v2576 = vadd.f32 %v167, %v2575
    %v2577 = vpop.f32.mrf.mxu0
    %2578 = vdwg.mxu0
    %v2579 = vsel %vm469, %v2571, -inf
    %2580 = vmax.xlane.f32.xlu0 %v2579
    %v2581 = vpop.xlane.xlu0 %2580
    %v2582 = vsel %vm469, %v2573, -inf
    %2583 = vmax.xlane.f32.xlu0 %v2582
    %v2584 = vpop.xlane.xlu0 %2583
    %v2585 = vsel %vm469, %v2576, -inf
    %2586 = vmax.xlane.f32.xlu0 %v2585
    %v2587 = vpop.xlane.xlu0 %2586
    %v2588 = vsub.f32 %v2571, %v2581
    %v2589 = vsub.f32 %v2573, %v2584
    %v2590 = vsub.f32 %v2576, %v2587
    %v2591 = vmul.f32 %v2588, 1.442695
    %v2592 = vpow.pop %v2591
    %v2593 = vmul.f32 %v2589, 1.442695
    %v2594 = vpow.pop %v2593
    %v2595 = vmul.f32 %v2590, 1.442695
    %v2596 = vpow.pop %v2595
    %v2597 = vsel %vm469, %v2592, 0.0
    %2598 = vadd.xlane.f32.xlu0 %v2597
    %v2599 = vpop.xlane.xlu0 %2598
    %v2600 = vsel %vm469, %v2594, 0.0
    %2601 = vadd.xlane.f32.xlu0 %v2600
    %v2602 = vpop.xlane.xlu0 %2601
    %v2603 = vsel %vm469, %v2596, 0.0
    %2604 = vadd.xlane.f32.xlu0 %v2603
    %v2605 = vpop.xlane.xlu0 %2604
    %v2606 = vrcp.pop %v2599
    %v2607 = vrcp.pop %v2602
    %v2608 = vrcp.pop %v2605
    %v2609 = vmul.f32 %v2592, %v2606
    %v2610 = vmul.f32 %v2594, %v2607
    %v2611 = vmul.f32 %v2596, %v2608
    %v2612 = vpack.c.bf16 %v2610, %v2609
    %v2613 = vpack.c.bf16 %v2611, %v2611
    %v2617 = vunpack.c.l.b16 %v2546
    %v2618 = vunpack.c.l.b16 %v2547
    %v2619 = vunpack.c.l.b16 %v2548
    %v2620 = vpack.c.b16 %v2618, %v2617
    %v2621 = vpack.c.b16 %v2619, %v2619
    %2622 = vrot.lane.b32.xlu0 %v2620, 64
    %v2623 = vpop.permute.xlu0 %2622
    %2624 = vrot.lane.b32.xlu0 %v2621, 64
    %v2625 = vpop.permute.xlu0 %2624
    %v2628 = vsel %vm469, %v2612, 0
    %v2631 = vsel %vm469, %v2613, 0
    %v2634 = vsel %vm447, %v2625, 0
    %2636 = vmatpush.bf16.msra.mxu0 0
    %2637 = vmatpush.bf16.msra.mxu0 0
    %2638 = vmatpush.bf16.msra.mxu0 0
    %2639 = vmatpush.bf16.msra.mxu0 0
    %2640 = vmatpush.bf16.msra.mxu0 0
    %2641 = vmatpush.bf16.msra.mxu0 0
    %2642 = vmatpush.bf16.msra.mxu0 %v2634
    %2643 = vmatpush.bf16.msra.mxu0 %v2623
    %2644 = vmatmul.bf16.gmra.mxu0 %v2628
    %v2645 = vpop.f32.mrf.mxu0
    %v2646 = vadd.f32 0.0, %v2645
    %v2647 = vpop.f32.mrf.mxu0
    %v2648 = vadd.f32 0.0, %v2647
    %2649 = vmatmul.bf16.gmra.mxu0 %v2631
    %v2650 = vpop.f32.mrf.mxu0
    %v2651 = vadd.f32 0.0, %v2650
    %v2652 = vpop.f32.mrf.mxu0
    %2653 = vdwg.mxu0
    %v2654 = vpack.c.bf16 %v2531, %v2531
    %2657 = vrot.lane.b32.xlu0 %v2549, 120
    %v2658 = vpop.permute.xlu0 %2657
    %2659 = vrot.lane.b32.xlu0 %v2550, 120
    %v2660 = vpop.permute.xlu0 %2659
    %v2662 = vsel %vm440, %v2658, 0
    %v2665 = vsel %vm440, %v2660, 0
    %v2668 = vsel %vm447, %v2654, 0
    %2670 = vmatpush.bf16.msra.mxu0 0
    %2671 = vmatpush.bf16.msra.mxu0 0
    %2672 = vmatpush.bf16.msra.mxu0 0
    %2673 = vmatpush.bf16.msra.mxu0 0
    %2674 = vmatpush.bf16.msra.mxu0 0
    %2675 = vmatpush.bf16.msra.mxu0 0
    %2676 = vmatpush.bf16.msra.mxu0 0
    %2677 = vmatpush.bf16.msra.mxu0 %v2668
    %2678 = vmatmul.bf16.gmra.mxu0 %v2662
    %v2679 = vpop.f32.mrf.mxu0
    %v2680 = vadd.f32 %v167, %v2679
    %v2681 = vpop.f32.mrf.mxu0
    %v2682 = vadd.f32 %v167, %v2681
    %2683 = vmatmul.bf16.gmra.mxu0 %v2665
    %v2684 = vpop.f32.mrf.mxu0
    %v2685 = vadd.f32 %v167, %v2684
    %v2686 = vpop.f32.mrf.mxu0
    %2687 = vdwg.mxu0
    %v2688 = vsel %vm469, %v2680, -inf
    %2689 = vmax.xlane.f32.xlu0 %v2688
    %v2690 = vpop.xlane.xlu0 %2689
    %v2691 = vsel %vm469, %v2682, -inf
    %2692 = vmax.xlane.f32.xlu0 %v2691
    %v2693 = vpop.xlane.xlu0 %2692
    %v2694 = vsel %vm469, %v2685, -inf
    %2695 = vmax.xlane.f32.xlu0 %v2694
    %v2696 = vpop.xlane.xlu0 %2695
    %v2697 = vsub.f32 %v2680, %v2690
    %v2698 = vsub.f32 %v2682, %v2693
    %v2699 = vsub.f32 %v2685, %v2696
    %v2700 = vmul.f32 %v2697, 1.442695
    %v2701 = vpow.pop %v2700
    %v2702 = vmul.f32 %v2698, 1.442695
    %v2703 = vpow.pop %v2702
    %v2704 = vmul.f32 %v2699, 1.442695
    %v2705 = vpow.pop %v2704
    %v2706 = vsel %vm469, %v2701, 0.0
    %2707 = vadd.xlane.f32.xlu0 %v2706
    %v2708 = vpop.xlane.xlu0 %2707
    %v2709 = vsel %vm469, %v2703, 0.0
    %2710 = vadd.xlane.f32.xlu0 %v2709
    %v2711 = vpop.xlane.xlu0 %2710
    %v2712 = vsel %vm469, %v2705, 0.0
    %2713 = vadd.xlane.f32.xlu0 %v2712
    %v2714 = vpop.xlane.xlu0 %2713
    %v2715 = vrcp.pop %v2708
    %v2716 = vrcp.pop %v2711
    %v2717 = vrcp.pop %v2714
    %v2718 = vmul.f32 %v2701, %v2715
    %v2719 = vmul.f32 %v2703, %v2716
    %v2720 = vmul.f32 %v2705, %v2717
    %v2721 = vpack.c.bf16 %v2719, %v2718
    %v2722 = vpack.c.bf16 %v2720, %v2720
    %2723 = vrot.lane.b32.xlu0 %v2620, 56
    %v2724 = vpop.permute.xlu0 %2723
    %2725 = vrot.lane.b32.xlu0 %v2621, 56
    %v2726 = vpop.permute.xlu0 %2725
    %v2729 = vsel %vm469, %v2721, 0
    %v2732 = vsel %vm469, %v2722, 0
    %v2735 = vsel %vm447, %v2726, 0
    %2737 = vmatpush.bf16.msra.mxu0 0
    %2738 = vmatpush.bf16.msra.mxu0 0
    %2739 = vmatpush.bf16.msra.mxu0 0
    %2740 = vmatpush.bf16.msra.mxu0 0
    %2741 = vmatpush.bf16.msra.mxu0 0
    %2742 = vmatpush.bf16.msra.mxu0 0
    %2743 = vmatpush.bf16.msra.mxu0 %v2735
    %2744 = vmatpush.bf16.msra.mxu0 %v2724
    %2745 = vmatmul.bf16.gmra.mxu0 %v2729
    %v2746 = vpop.f32.mrf.mxu0
    %v2747 = vadd.f32 0.0, %v2746
    %v2748 = vpop.f32.mrf.mxu0
    %v2749 = vadd.f32 0.0, %v2748
    %2750 = vmatmul.bf16.gmra.mxu0 %v2732
    %v2751 = vpop.f32.mrf.mxu0
    %v2752 = vadd.f32 0.0, %v2751
    %v2753 = vpop.f32.mrf.mxu0
    %2754 = vdwg.mxu0
    %v2755 = vpack.c.bf16 %v2532, %v2532
    %2756 = vrot.lane.b32.xlu0 %v2549, 112
    %v2757 = vpop.permute.xlu0 %2756
    %2758 = vrot.lane.b32.xlu0 %v2550, 112
    %v2759 = vpop.permute.xlu0 %2758
    %v2761 = vsel %vm440, %v2757, 0
    %v2764 = vsel %vm440, %v2759, 0
    %v2767 = vsel %vm447, %v2755, 0
    %2769 = vmatpush.bf16.msra.mxu0 0
    %2770 = vmatpush.bf16.msra.mxu0 0
    %2771 = vmatpush.bf16.msra.mxu0 0
    %2772 = vmatpush.bf16.msra.mxu0 0
    %2773 = vmatpush.bf16.msra.mxu0 0
    %2774 = vmatpush.bf16.msra.mxu0 0
    %2775 = vmatpush.bf16.msra.mxu0 0
    %2776 = vmatpush.bf16.msra.mxu0 %v2767
    %2777 = vmatmul.bf16.gmra.mxu0 %v2761
    %v2778 = vpop.f32.mrf.mxu0
    %v2779 = vadd.f32 %v167, %v2778
    %v2780 = vpop.f32.mrf.mxu0
    %v2781 = vadd.f32 %v167, %v2780
    %2782 = vmatmul.bf16.gmra.mxu0 %v2764
    %v2783 = vpop.f32.mrf.mxu0
    %v2784 = vadd.f32 %v167, %v2783
    %v2785 = vpop.f32.mrf.mxu0
    %2786 = vdwg.mxu0
    %v2787 = vsel %vm469, %v2779, -inf
    %2788 = vmax.xlane.f32.xlu0 %v2787
    %v2789 = vpop.xlane.xlu0 %2788
    %v2790 = vsel %vm469, %v2781, -inf
    %2791 = vmax.xlane.f32.xlu0 %v2790
    %v2792 = vpop.xlane.xlu0 %2791
    %v2793 = vsel %vm469, %v2784, -inf
    %2794 = vmax.xlane.f32.xlu0 %v2793
    %v2795 = vpop.xlane.xlu0 %2794
    %v2796 = vsub.f32 %v2779, %v2789
    %v2797 = vsub.f32 %v2781, %v2792
    %v2798 = vsub.f32 %v2784, %v2795
    %v2799 = vmul.f32 %v2796, 1.442695
    %v2800 = vpow.pop %v2799
    %v2801 = vmul.f32 %v2797, 1.442695
    %v2802 = vpow.pop %v2801
    %v2803 = vmul.f32 %v2798, 1.442695
    %v2804 = vpow.pop %v2803
    %v2805 = vsel %vm469, %v2800, 0.0
    %2806 = vadd.xlane.f32.xlu0 %v2805
    %v2807 = vpop.xlane.xlu0 %2806
    %v2808 = vsel %vm469, %v2802, 0.0
    %2809 = vadd.xlane.f32.xlu0 %v2808
    %v2810 = vpop.xlane.xlu0 %2809
    %v2811 = vsel %vm469, %v2804, 0.0
    %2812 = vadd.xlane.f32.xlu0 %v2811
    %v2813 = vpop.xlane.xlu0 %2812
    %v2814 = vrcp.pop %v2807
    %v2815 = vrcp.pop %v2810
    %v2816 = vrcp.pop %v2813
    %v2817 = vmul.f32 %v2800, %v2814
    %v2818 = vmul.f32 %v2802, %v2815
    %v2819 = vmul.f32 %v2804, %v2816
    %v2820 = vpack.c.bf16 %v2818, %v2817
    %v2821 = vpack.c.bf16 %v2819, %v2819
    %2822 = vrot.lane.b32.xlu0 %v2620, 48
    %v2823 = vpop.permute.xlu0 %2822
    %2824 = vrot.lane.b32.xlu0 %v2621, 48
    %v2825 = vpop.permute.xlu0 %2824
    %v2828 = vsel %vm469, %v2820, 0
    %v2831 = vsel %vm469, %v2821, 0
    %v2834 = vsel %vm447, %v2825, 0
    %2836 = vmatpush.bf16.msra.mxu0 0
    %2837 = vmatpush.bf16.msra.mxu0 0
    %2838 = vmatpush.bf16.msra.mxu0 0
    %2839 = vmatpush.bf16.msra.mxu0 0
    %2840 = vmatpush.bf16.msra.mxu0 0
    %2841 = vmatpush.bf16.msra.mxu0 0
    %2842 = vmatpush.bf16.msra.mxu0 %v2834
    %2843 = vmatpush.bf16.msra.mxu0 %v2823
    %2844 = vmatmul.bf16.gmra.mxu0 %v2828
    %v2845 = vpop.f32.mrf.mxu0
    %v2846 = vadd.f32 0.0, %v2845
    %v2847 = vpop.f32.mrf.mxu0
    %v2848 = vadd.f32 0.0, %v2847
    %2849 = vmatmul.bf16.gmra.mxu0 %v2831
    %v2850 = vpop.f32.mrf.mxu0
    %v2851 = vadd.f32 0.0, %v2850
    %v2852 = vpop.f32.mrf.mxu0
    %2853 = vdwg.mxu0
    %v2854 = vpack.c.bf16 %v2533, %v2533
    %2855 = vrot.lane.b32.xlu0 %v2549, 104
    %v2856 = vpop.permute.xlu0 %2855
    %2857 = vrot.lane.b32.xlu0 %v2550, 104
    %v2858 = vpop.permute.xlu0 %2857
    %v2860 = vsel %vm440, %v2856, 0
    %v2863 = vsel %vm440, %v2858, 0
    %v2866 = vsel %vm447, %v2854, 0
    %2868 = vmatpush.bf16.msra.mxu0 0
    %2869 = vmatpush.bf16.msra.mxu0 0
    %2870 = vmatpush.bf16.msra.mxu0 0
    %2871 = vmatpush.bf16.msra.mxu0 0
    %2872 = vmatpush.bf16.msra.mxu0 0
    %2873 = vmatpush.bf16.msra.mxu0 0
    %2874 = vmatpush.bf16.msra.mxu0 0
    %2875 = vmatpush.bf16.msra.mxu0 %v2866
    %2876 = vmatmul.bf16.gmra.mxu0 %v2860
    %v2877 = vpop.f32.mrf.mxu0
    %v2878 = vadd.f32 %v167, %v2877
    %v2879 = vpop.f32.mrf.mxu0
    %v2880 = vadd.f32 %v167, %v2879
    %2881 = vmatmul.bf16.gmra.mxu0 %v2863
    %v2882 = vpop.f32.mrf.mxu0
    %v2883 = vadd.f32 %v167, %v2882
    %v2884 = vpop.f32.mrf.mxu0
    %2885 = vdwg.mxu0
    %v2886 = vsel %vm469, %v2878, -inf
    %2887 = vmax.xlane.f32.xlu0 %v2886
    %v2888 = vpop.xlane.xlu0 %2887
    %v2889 = vsel %vm469, %v2880, -inf
    %2890 = vmax.xlane.f32.xlu0 %v2889
    %v2891 = vpop.xlane.xlu0 %2890
    %v2892 = vsel %vm469, %v2883, -inf
    %2893 = vmax.xlane.f32.xlu0 %v2892
    %v2894 = vpop.xlane.xlu0 %2893
    %v2895 = vsub.f32 %v2878, %v2888
    %v2896 = vsub.f32 %v2880, %v2891
    %v2897 = vsub.f32 %v2883, %v2894
    %v2898 = vmul.f32 %v2895, 1.442695
    %v2899 = vpow.pop %v2898
    %v2900 = vmul.f32 %v2896, 1.442695
    %v2901 = vpow.pop %v2900
    %v2902 = vmul.f32 %v2897, 1.442695
    %v2903 = vpow.pop %v2902
    %v2904 = vsel %vm469, %v2899, 0.0
    %2905 = vadd.xlane.f32.xlu0 %v2904
    %v2906 = vpop.xlane.xlu0 %2905
    %v2907 = vsel %vm469, %v2901, 0.0
    %2908 = vadd.xlane.f32.xlu0 %v2907
    %v2909 = vpop.xlane.xlu0 %2908
    %v2910 = vsel %vm469, %v2903, 0.0
    %2911 = vadd.xlane.f32.xlu0 %v2910
    %v2912 = vpop.xlane.xlu0 %2911
    %v2913 = vrcp.pop %v2906
    %v2914 = vrcp.pop %v2909
    %v2915 = vrcp.pop %v2912
    %v2916 = vmul.f32 %v2899, %v2913
    %v2917 = vmul.f32 %v2901, %v2914
    %v2918 = vmul.f32 %v2903, %v2915
    %v2919 = vpack.c.bf16 %v2917, %v2916
    %v2920 = vpack.c.bf16 %v2918, %v2918
    %2921 = vrot.lane.b32.xlu0 %v2620, 40
    %v2922 = vpop.permute.xlu0 %2921
    %2923 = vrot.lane.b32.xlu0 %v2621, 40
    %v2924 = vpop.permute.xlu0 %2923
    %v2927 = vsel %vm469, %v2919, 0
    %v2930 = vsel %vm469, %v2920, 0
    %v2933 = vsel %vm447, %v2924, 0
    %2935 = vmatpush.bf16.msra.mxu0 0
    %2936 = vmatpush.bf16.msra.mxu0 0
    %2937 = vmatpush.bf16.msra.mxu0 0
    %2938 = vmatpush.bf16.msra.mxu0 0
    %2939 = vmatpush.bf16.msra.mxu0 0
    %2940 = vmatpush.bf16.msra.mxu0 0
    %2941 = vmatpush.bf16.msra.mxu0 %v2933
    %2942 = vmatpush.bf16.msra.mxu0 %v2922
    %2943 = vmatmul.bf16.gmra.mxu0 %v2927
    %v2944 = vpop.f32.mrf.mxu0
    %v2945 = vadd.f32 0.0, %v2944
    %v2946 = vpop.f32.mrf.mxu0
    %v2947 = vadd.f32 0.0, %v2946
    %2948 = vmatmul.bf16.gmra.mxu0 %v2930
    %v2949 = vpop.f32.mrf.mxu0
    %v2950 = vadd.f32 0.0, %v2949
    %v2951 = vpop.f32.mrf.mxu0
    %2952 = vdwg.mxu0
    %2956 = vrot.lane.b32.xlu0 %v2747, 8
    %v2957 = vpop.permute.xlu0 %2956
    %2958 = vrot.lane.b32.xlu0 %v2749, 8
    %v2959 = vpop.permute.xlu0 %2958
    %2960 = vrot.lane.b32.xlu0 %v2752, 8
    %v2961 = vpop.permute.xlu0 %2960
    %2968 = vrot.lane.b32.xlu0 %v2846, 16
    %v2969 = vpop.permute.xlu0 %2968
    %2970 = vrot.lane.b32.xlu0 %v2848, 16
    %v2971 = vpop.permute.xlu0 %2970
    %2972 = vrot.lane.b32.xlu0 %v2851, 16
    %v2973 = vpop.permute.xlu0 %2972
    %2980 = vrot.lane.b32.xlu0 %v2945, 24
    %v2981 = vpop.permute.xlu0 %2980
    %2982 = vrot.lane.b32.xlu0 %v2947, 24
    %v2983 = vpop.permute.xlu0 %2982
    %2984 = vrot.lane.b32.xlu0 %v2950, 24
    %v2985 = vpop.permute.xlu0 %2984
    %v2989 = vsel %vm440, %v2646, %v2957
    %v2990 = vsel %vm440, %v2648, %v2959
    %v2991 = vsel %vm440, %v2651, %v2961
    %v2992 = vsel %vm883, %v2989, %v2969
    %v2993 = vsel %vm883, %v2990, %v2971
    %v2994 = vsel %vm883, %v2991, %v2973
    %v2995 = vsel %vm469, %v2992, %v2981
    %v2996 = vsel %vm469, %v2993, %v2983
    %v2997 = vsel %vm469, %v2994, %v2985
    %s2998 = scalar_lea.vmem %s8, 16
    %v2999 = vld [vmem:[%s2998] sm:$0xf]
    %v3000 = vld [vmem:[%s2998 + $0x4] sm:$0xf]
    %v3001 = vld [vmem:[%s2998 + $0x8] sm:$0xf]
    %v3002 = vld [vmem:[%s2998 + $0xc] sm:$0xf]
    %s3003 = scalar_lea.vmem %s9, 1
    %v3004 = vld [vmem:[%s3003] sm:$0x1]
    %v3005 = vpack.c.bf16 %v2500, %v2499
    %v3006 = vpack.c.bf16 %v2995, %v2501
    %v3007 = vpack.c.bf16 %v2997, %v2996
    %v3009 = vperm.slane %v3004, 0
    %v3015 = vunpack.c.l.b16 %v2999
    %v3016 = vunpack.c.l.b16 %v3000
    %v3017 = vunpack.c.l.b16 %v3001
    %v3018 = vunpack.c.l.b16 %v3002
    %v3019 = vpack.c.b16 %v3016, %v3015
    %v3020 = vpack.c.b16 %v3018, %v3017
    %v3024 = vsel %vm170, %v3005, 0
    %v3027 = vsel %vm170, %v3006, 0
    %v3030 = vsel %vm170, %v3007, 0
    %3032 = vmatpush.bf16.msra.mxu0 0
    %3033 = vmatpush.bf16.msra.mxu0 0
    %3034 = vmatpush.bf16.msra.mxu0 0
    %3035 = vmatpush.bf16.msra.mxu0 0
    %3036 = vmatpush.bf16.msra.mxu0 0
    %3037 = vmatpush.bf16.msra.mxu0 0
    %3038 = vmatpush.bf16.msra.mxu0 %v3020
    %3039 = vmatpush.bf16.msra.mxu0 %v3019
    %3040 = vmatmul.bf16.gmra.mxu0 %v3024
    %v3041 = vpop.f32.mrf.mxu0
    %v3042 = vadd.f32 %v3009, %v3041
    %v3043 = vpop.f32.mrf.mxu0
    %v3044 = vadd.f32 %v3009, %v3043
    %3045 = vmatmul.bf16.gmra.mxu0 %v3027
    %v3046 = vpop.f32.mrf.mxu0
    %v3047 = vadd.f32 %v3009, %v3046
    %v3048 = vpop.f32.mrf.mxu0
    %v3049 = vadd.f32 %v3009, %v3048
    %3050 = vmatmul.bf16.gmra.mxu0 %v3030
    %v3051 = vpop.f32.mrf.mxu0
    %v3052 = vadd.f32 %v3009, %v3051
    %v3053 = vpop.f32.mrf.mxu0
    %v3054 = vadd.f32 %v3009, %v3053
    %3055 = vdwg.mxu0
    %v3056 = vadd.f32 %v1782, %v3042
    %v3057 = vadd.f32 %v1783, %v3044
    %v3058 = vadd.f32 %v1784, %v3047
    %v3059 = vadd.f32 %v1785, %v3049
    %v3060 = vadd.f32 %v1786, %v3052
    %v3061 = vadd.f32 %v1787, %v3054
    %s3062 = scalar_lea.vmem %s10, 1
    %v3063 = vld [vmem:[%s3062] sm:$0x1]
    %s3064 = scalar_lea.vmem %s11, 1
    %v3065 = vld [vmem:[%s3064] sm:$0x1]
    %v3066 = vsel %vm170, %v3056, 0.0
    %3067 = vadd.xlane.f32.xlu0 %v3066
    %v3068 = vpop.xlane.xlu0 %3067
    %v3069 = vsel %vm170, %v3057, 0.0
    %3070 = vadd.xlane.f32.xlu0 %v3069
    %v3071 = vpop.xlane.xlu0 %3070
    %v3072 = vsel %vm170, %v3058, 0.0
    %3073 = vadd.xlane.f32.xlu0 %v3072
    %v3074 = vpop.xlane.xlu0 %3073
    %v3075 = vsel %vm170, %v3059, 0.0
    %3076 = vadd.xlane.f32.xlu0 %v3075
    %v3077 = vpop.xlane.xlu0 %3076
    %v3078 = vsel %vm170, %v3060, 0.0
    %3079 = vadd.xlane.f32.xlu0 %v3078
    %v3080 = vpop.xlane.xlu0 %3079
    %v3081 = vsel %vm170, %v3061, 0.0
    %3082 = vadd.xlane.f32.xlu0 %v3081
    %v3083 = vpop.xlane.xlu0 %3082
    %v3084 = vmul.f32 %v3068, %v195
    %v3085 = vmul.f32 %v3071, %v195
    %v3086 = vmul.f32 %v3074, %v195
    %v3087 = vmul.f32 %v3077, %v195
    %v3088 = vmul.f32 %v3080, %v195
    %v3089 = vmul.f32 %v3083, %v195
    %v3090 = vsub.f32 %v3056, %v3084
    %v3091 = vsub.f32 %v3057, %v3085
    %v3092 = vsub.f32 %v3058, %v3086
    %v3093 = vsub.f32 %v3059, %v3087
    %v3094 = vsub.f32 %v3060, %v3088
    %v3095 = vsub.f32 %v3061, %v3089
    %v3096 = vmul.f32 %v3090, %v3090
    %v3097 = vmul.f32 %v3091, %v3091
    %v3098 = vmul.f32 %v3092, %v3092
    %v3099 = vmul.f32 %v3093, %v3093
    %v3100 = vmul.f32 %v3094, %v3094
    %v3101 = vmul.f32 %v3095, %v3095
    %v3102 = vsel %vm170, %v3096, 0.0
    %3103 = vadd.xlane.f32.xlu0 %v3102
    %v3104 = vpop.xlane.xlu0 %3103
    %v3105 = vsel %vm170, %v3097, 0.0
    %3106 = vadd.xlane.f32.xlu0 %v3105
    %v3107 = vpop.xlane.xlu0 %3106
    %v3108 = vsel %vm170, %v3098, 0.0
    %3109 = vadd.xlane.f32.xlu0 %v3108
    %v3110 = vpop.xlane.xlu0 %3109
    %v3111 = vsel %vm170, %v3099, 0.0
    %3112 = vadd.xlane.f32.xlu0 %v3111
    %v3113 = vpop.xlane.xlu0 %3112
    %v3114 = vsel %vm170, %v3100, 0.0
    %3115 = vadd.xlane.f32.xlu0 %v3114
    %v3116 = vpop.xlane.xlu0 %3115
    %v3117 = vsel %vm170, %v3101, 0.0
    %3118 = vadd.xlane.f32.xlu0 %v3117
    %v3119 = vpop.xlane.xlu0 %3118
    %v3120 = vmul.f32 %v3104, %v195
    %v3121 = vmul.f32 %v3107, %v195
    %v3122 = vmul.f32 %v3110, %v195
    %v3123 = vmul.f32 %v3113, %v195
    %v3124 = vmul.f32 %v3116, %v195
    %v3125 = vmul.f32 %v3119, %v195
    %v3126 = vadd.f32 %v3120, 1e-05
    %v3127 = vadd.f32 %v3121, 1e-05
    %v3128 = vadd.f32 %v3122, 1e-05
    %v3129 = vadd.f32 %v3123, 1e-05
    %v3130 = vadd.f32 %v3124, 1e-05
    %v3131 = vadd.f32 %v3125, 1e-05
    %v3132 = vrsqrt.pop %v3126
    %v3133 = vmul.f32 %v3132, %v3126
    %v3134 = vmul.f32 %v3133, %v3132
    %v3135 = vmul.f32 0.5, %v3134
    %v3136 = vsub.f32 1.5, %v3135
    %v3137 = vmul.f32 %v3132, %v3136
    %vm3138 = vweird.f32 %v3126
    %vm3139 = vweird.f32 %v3132
    %vm3140 = vmor %vm3138, %vm3139
    %v3141 = vsel %vm3140, %v3132, %v3137
    %v3142 = vrsqrt.pop %v3127
    %v3143 = vmul.f32 %v3142, %v3127
    %v3144 = vmul.f32 %v3143, %v3142
    %v3145 = vmul.f32 0.5, %v3144
    %v3146 = vsub.f32 1.5, %v3145
    %v3147 = vmul.f32 %v3142, %v3146
    %vm3148 = vweird.f32 %v3127
    %vm3149 = vweird.f32 %v3142
    %vm3150 = vmor %vm3148, %vm3149
    %v3151 = vsel %vm3150, %v3142, %v3147
    %v3152 = vrsqrt.pop %v3128
    %v3153 = vmul.f32 %v3152, %v3128
    %v3154 = vmul.f32 %v3153, %v3152
    %v3155 = vmul.f32 0.5, %v3154
    %v3156 = vsub.f32 1.5, %v3155
    %v3157 = vmul.f32 %v3152, %v3156
    %vm3158 = vweird.f32 %v3128
    %vm3159 = vweird.f32 %v3152
    %vm3160 = vmor %vm3158, %vm3159
    %v3161 = vsel %vm3160, %v3152, %v3157
    %v3162 = vrsqrt.pop %v3129
    %v3163 = vmul.f32 %v3162, %v3129
    %v3164 = vmul.f32 %v3163, %v3162
    %v3165 = vmul.f32 0.5, %v3164
    %v3166 = vsub.f32 1.5, %v3165
    %v3167 = vmul.f32 %v3162, %v3166
    %vm3168 = vweird.f32 %v3129
    %vm3169 = vweird.f32 %v3162
    %vm3170 = vmor %vm3168, %vm3169
    %v3171 = vsel %vm3170, %v3162, %v3167
    %v3172 = vrsqrt.pop %v3130
    %v3173 = vmul.f32 %v3172, %v3130
    %v3174 = vmul.f32 %v3173, %v3172
    %v3175 = vmul.f32 0.5, %v3174
    %v3176 = vsub.f32 1.5, %v3175
    %v3177 = vmul.f32 %v3172, %v3176
    %vm3178 = vweird.f32 %v3130
    %vm3179 = vweird.f32 %v3172
    %vm3180 = vmor %vm3178, %vm3179
    %v3181 = vsel %vm3180, %v3172, %v3177
    %v3182 = vrsqrt.pop %v3131
    %v3183 = vmul.f32 %v3182, %v3131
    %v3184 = vmul.f32 %v3183, %v3182
    %v3185 = vmul.f32 0.5, %v3184
    %v3186 = vsub.f32 1.5, %v3185
    %v3187 = vmul.f32 %v3182, %v3186
    %vm3188 = vweird.f32 %v3131
    %vm3189 = vweird.f32 %v3182
    %vm3190 = vmor %vm3188, %vm3189
    %v3191 = vsel %vm3190, %v3182, %v3187
    %v3192 = vmul.f32 %v3090, %v3141
    %v3193 = vmul.f32 %v3091, %v3151
    %v3194 = vmul.f32 %v3092, %v3161
    %v3195 = vmul.f32 %v3093, %v3171
    %v3196 = vmul.f32 %v3094, %v3181
    %v3197 = vmul.f32 %v3095, %v3191
    %v3199 = vperm.slane %v3063, 0
    %v3201 = vmul.f32 %v3192, %v3199
    %v3202 = vmul.f32 %v3193, %v3199
    %v3203 = vmul.f32 %v3194, %v3199
    %v3204 = vmul.f32 %v3195, %v3199
    %v3205 = vmul.f32 %v3196, %v3199
    %v3206 = vmul.f32 %v3197, %v3199
    %v3208 = vperm.slane %v3065, 0
    %v3210 = vadd.f32 %v3201, %v3208
    %v3211 = vadd.f32 %v3202, %v3208
    %v3212 = vadd.f32 %v3203, %v3208
    %v3213 = vadd.f32 %v3204, %v3208
    %v3214 = vadd.f32 %v3205, %v3208
    %v3215 = vadd.f32 %v3206, %v3208
    %s3216 = scalar_lea.vmem %s12, 16
    %v3217 = vld [vmem:[%s3216] sm:$0xf]
    %v3218 = vld [vmem:[%s3216 + $0x4] sm:$0xf]
    %v3219 = vld [vmem:[%s3216 + $0x8] sm:$0xf]
    %v3220 = vld [vmem:[%s3216 + $0xc] sm:$0xf]
    %s3221 = scalar_lea.vmem %s13, 1
    %v3222 = vld [vmem:[%s3221] sm:$0x1]
    %v3223 = vpack.c.bf16 %v3211, %v3210
    %v3224 = vpack.c.bf16 %v3213, %v3212
    %v3225 = vpack.c.bf16 %v3215, %v3214
    %v3227 = vperm.slane %v3222, 0
    %v3233 = vunpack.c.l.b16 %v3217
    %v3234 = vunpack.c.l.b16 %v3218
    %v3235 = vunpack.c.l.b16 %v3219
    %v3236 = vunpack.c.l.b16 %v3220
    %v3237 = vpack.c.b16 %v3234, %v3233
    %v3238 = vpack.c.b16 %v3236, %v3235
    %v3242 = vsel %vm170, %v3223, 0
    %v3245 = vsel %vm170, %v3224, 0
    %v3248 = vsel %vm170, %v3225, 0
    %3250 = vmatpush.bf16.msra.mxu0 0
    %3251 = vmatpush.bf16.msra.mxu0 0
    %3252 = vmatpush.bf16.msra.mxu0 0
    %3253 = vmatpush.bf16.msra.mxu0 0
    %3254 = vmatpush.bf16.msra.mxu0 0
    %3255 = vmatpush.bf16.msra.mxu0 0
    %3256 = vmatpush.bf16.msra.mxu0 %v3238
    %3257 = vmatpush.bf16.msra.mxu0 %v3237
    %3258 = vmatmul.bf16.gmra.mxu0 %v3242
    %v3259 = vpop.f32.mrf.mxu0
    %v3260 = vadd.f32 %v3227, %v3259
    %v3261 = vpop.f32.mrf.mxu0
    %v3262 = vadd.f32 %v3227, %v3261
    %3263 = vmatmul.bf16.gmra.mxu0 %v3245
    %v3264 = vpop.f32.mrf.mxu0
    %v3265 = vadd.f32 %v3227, %v3264
    %v3266 = vpop.f32.mrf.mxu0
    %v3267 = vadd.f32 %v3227, %v3266
    %3268 = vmatmul.bf16.gmra.mxu0 %v3248
    %v3269 = vpop.f32.mrf.mxu0
    %v3270 = vadd.f32 %v3227, %v3269
    %v3271 = vpop.f32.mrf.mxu0
    %v3272 = vadd.f32 %v3227, %v3271
    %3273 = vdwg.mxu0
    %v3274 = vmul.f32 %v3260, %v3260
    %v3275 = vmul.f32 %v3262, %v3262
    %v3276 = vmul.f32 %v3265, %v3265
    %v3277 = vmul.f32 %v3267, %v3267
    %v3278 = vmul.f32 %v3270, %v3270
    %v3279 = vmul.f32 %v3272, %v3272
    %v3280 = vmul.f32 %v3260, 0.5
    %v3281 = vmul.f32 %v3262, 0.5
    %v3282 = vmul.f32 %v3265, 0.5
    %v3283 = vmul.f32 %v3267, 0.5
    %v3284 = vmul.f32 %v3270, 0.5
    %v3285 = vmul.f32 %v3272, 0.5
    %v3286 = vmul.f32 %v3260, 0.7978846
    %v3287 = vmul.f32 %v3262, 0.7978846
    %v3288 = vmul.f32 %v3265, 0.7978846
    %v3289 = vmul.f32 %v3267, 0.7978846
    %v3290 = vmul.f32 %v3270, 0.7978846
    %v3291 = vmul.f32 %v3272, 0.7978846
    %v3292 = vmul.f32 %v3274, 0.044715
    %v3293 = vmul.f32 %v3275, 0.044715
    %v3294 = vmul.f32 %v3276, 0.044715
    %v3295 = vmul.f32 %v3277, 0.044715
    %v3296 = vmul.f32 %v3278, 0.044715
    %v3297 = vmul.f32 %v3279, 0.044715
    %v3298 = vadd.f32 %v3292, 1.0
    %v3299 = vadd.f32 %v3293, 1.0
    %v3300 = vadd.f32 %v3294, 1.0
    %v3301 = vadd.f32 %v3295, 1.0
    %v3302 = vadd.f32 %v3296, 1.0
    %v3303 = vadd.f32 %v3297, 1.0
    %v3304 = vmul.f32 %v3286, %v3298
    %v3305 = vmul.f32 %v3287, %v3299
    %v3306 = vmul.f32 %v3288, %v3300
    %v3307 = vmul.f32 %v3289, %v3301
    %v3308 = vmul.f32 %v3290, %v3302
    %v3309 = vmul.f32 %v3291, %v3303
    %v3310 = vtanh.pop %v3304
    %v3311 = vtanh.pop %v3305
    %v3312 = vtanh.pop %v3306
    %v3313 = vtanh.pop %v3307
    %v3314 = vtanh.pop %v3308
    %v3315 = vtanh.pop %v3309
    %v3316 = vadd.f32 %v3310, 1.0
    %v3317 = vadd.f32 %v3311, 1.0
    %v3318 = vadd.f32 %v3312, 1.0
    %v3319 = vadd.f32 %v3313, 1.0
    %v3320 = vadd.f32 %v3314, 1.0
    %v3321 = vadd.f32 %v3315, 1.0
    %v3322 = vmul.f32 %v3280, %v3316
    %v3323 = vmul.f32 %v3281, %v3317
    %v3324 = vmul.f32 %v3282, %v3318
    %v3325 = vmul.f32 %v3283, %v3319
    %v3326 = vmul.f32 %v3284, %v3320
    %v3327 = vmul.f32 %v3285, %v3321
    %s3328 = scalar_lea.vmem %s14, 32
    %v3329 = vld [vmem:[%s3328] sm:$0xf]
    %v3330 = vld [vmem:[%s3328 + $0x4] sm:$0xf]
    %v3331 = vld [vmem:[%s3328 + $0x8] sm:$0xf]
    %v3332 = vld [vmem:[%s3328 + $0xc] sm:$0xf]
    %v3333 = vld [vmem:[%s3328 + $0x10] sm:$0xf]
    %v3334 = vld [vmem:[%s3328 + $0x14] sm:$0xf]
    %v3335 = vld [vmem:[%s3328 + $0x18] sm:$0xf]
    %v3336 = vld [vmem:[%s3328 + $0x1c] sm:$0xf]
    %s3337 = scalar_lea.vmem %s15, 1
    %v3338 = vld [vmem:[%s3337] sm:$0x1]
    %v3339 = vpack.c.bf16 %v3323, %v3322
    %v3340 = vpack.c.bf16 %v3325, %v3324
    %v3341 = vpack.c.bf16 %v3327, %v3326
    %v3343 = vperm.slane %v3338, 0
    %v3353 = vunpack.c.l.b16 %v3329
    %v3354 = vunpack.c.l.b16 %v3330
    %v3355 = vunpack.c.l.b16 %v3331
    %v3356 = vunpack.c.l.b16 %v3332
    %v3357 = vunpack.c.l.b16 %v3333
    %v3358 = vunpack.c.l.b16 %v3334
    %v3359 = vunpack.c.l.b16 %v3335
    %v3360 = vunpack.c.l.b16 %v3336
    %v3361 = vpack.c.b16 %v3354, %v3353
    %v3362 = vpack.c.b16 %v3356, %v3355
    %v3363 = vpack.c.b16 %v3358, %v3357
    %v3364 = vpack.c.b16 %v3360, %v3359
    %v3370 = vsel %vm118, %v3339, 0
    %v3373 = vsel %vm118, %v3340, 0
    %v3376 = vsel %vm118, %v3341, 0
    %3378 = vmatpush.bf16.msra.mxu0 0
    %3379 = vmatpush.bf16.msra.mxu0 0
    %3380 = vmatpush.bf16.msra.mxu0 0
    %3381 = vmatpush.bf16.msra.mxu0 0
    %3382 = vmatpush.bf16.msra.mxu0 %v3364
    %3383 = vmatpush.bf16.msra.mxu0 %v3363
    %3384 = vmatpush.bf16.msra.mxu0 %v3362
    %3385 = vmatpush.bf16.msra.mxu0 %v3361
    %3386 = vmatmul.bf16.gmra.mxu0 %v3370
    %v3387 = vpop.f32.mrf.mxu0
    %v3388 = vadd.f32 %v3343, %v3387
    %v3389 = vpop.f32.mrf.mxu0
    %3390 = vmatmul.bf16.gmra.mxu0 %v3373
    %v3391 = vpop.f32.mrf.mxu0
    %v3392 = vpop.f32.mrf.mxu0
    %v3393 = vadd.f32 %v3343, %v3392
    %3394 = vmatmul.bf16.gmra.mxu0 %v3376
    %v3395 = vpop.f32.mrf.mxu0
    %v3396 = vpop.f32.mrf.mxu0
    %3397 = vdwg.mxu0
    %v3398 = vadd.f32 %v3056, %v3388
    %v3399 = vadd.f32 %v3059, %v3393
    %v3401 = vrot.slane %v3399, 7
    %vm3403 = vcmask 1040384
    %v3404 = vsel %vm3403, %v3398, %v3401
    %v3405 = vld [vmem:[%s16] sm:$0x1]
    %v3406 = vld [vmem:[%s17] sm:$0x1]
    %vm3407 = vcmask 254976
    %v3408 = vsel %vm3407, %v3404, 0.0
    %3409 = vadd.xlane.f32.xlu0 %v3408
    %v3410 = vpop.xlane.xlu0 %3409
    %v3411 = vmul.f32 %v3410, %v195
    %v3412 = vsub.f32 %v3404, %v3411
    %v3413 = vmul.f32 %v3412, %v3412
    %v3414 = vsel %vm3407, %v3413, 0.0
    %3415 = vadd.xlane.f32.xlu0 %v3414
    %v3416 = vpop.xlane.xlu0 %3415
    %v3417 = vmul.f32 %v3416, %v195
    %v3418 = vadd.f32 %v3417, 1e-05
    %v3419 = vrsqrt.pop %v3418
    %v3420 = vmul.f32 %v3419, %v3418
    %v3421 = vmul.f32 %v3420, %v3419
    %v3422 = vmul.f32 0.5, %v3421
    %v3423 = vsub.f32 1.5, %v3422
    %v3424 = vmul.f32 %v3419, %v3423
    %vm3425 = vweird.f32 %v3418
    %vm3426 = vweird.f32 %v3419
    %vm3427 = vmor %vm3425, %vm3426
    %v3428 = vsel %vm3427, %v3419, %v3424
    %v3429 = vmul.f32 %v3412, %v3428
    %v3431 = vperm.slane %v3405, 0
    %v3433 = vmul.f32 %v3429, %v3431
    %v3435 = vperm.slane %v3406, 0
    %v3437 = vadd.f32 %v3433, %v3435
    %v3438 = vld [vmem:[%s18] sm:$0xf]
    %v3439 = vld [vmem:[%s18 + $0x4] sm:$0xf]
    %v3440 = vld [vmem:[%s18 + $0x8] sm:$0xf]
    %v3441 = vld [vmem:[%s18 + $0xc] sm:$0xf]
    %v3442 = vld [vmem:[%s19] sm:$0x1]
    %v3443 = vpack.c.bf16 %v3437, %v3437
    %v3445 = vperm.slane %v3442, 0
    %v3451 = vunpack.c.l.b16 %v3438
    %v3452 = vunpack.c.l.b16 %v3439
    %v3453 = vunpack.c.l.b16 %v3440
    %v3454 = vunpack.c.l.b16 %v3441
    %v3455 = vpack.c.b16 %v3452, %v3451
    %v3456 = vpack.c.b16 %v3454, %v3453
    %v3460 = vsel %vm170, %v3443, 0
    %3462 = vmatpush.bf16.msra.mxu0 0
    %3463 = vmatpush.bf16.msra.mxu0 0
    %3464 = vmatpush.bf16.msra.mxu0 0
    %3465 = vmatpush.bf16.msra.mxu0 0
    %3466 = vmatpush.bf16.msra.mxu0 0
    %3467 = vmatpush.bf16.msra.mxu0 0
    %3468 = vmatpush.bf16.msra.mxu0 %v3456
    %3469 = vmatpush.bf16.msra.mxu0 %v3455
    %3470 = vmatmul.bf16.gmra.mxu0 %v3460
    %v3471 = vpop.f32.mrf.mxu0
    %v3472 = vadd.f32 %v3445, %v3471
    %v3473 = vpop.f32.mrf.mxu0
    %3474 = vdwg.mxu0
    %v3475 = vmul.f32 %v3472, %v3472
    %v3476 = vmul.f32 %v3472, 0.5
    %v3477 = vmul.f32 %v3472, 0.7978846
    %v3478 = vmul.f32 %v3475, 0.044715
    %v3479 = vadd.f32 %v3478, 1.0
    %v3480 = vmul.f32 %v3477, %v3479
    %v3481 = vtanh.pop %v3480
    %v3482 = vadd.f32 %v3481, 1.0
    %v3483 = vmul.f32 %v3476, %v3482
    %v3484 = vld [vmem:[%s20] sm:$0xf]
    %v3485 = vld [vmem:[%s20 + $0x4] sm:$0xf]
    %v3486 = vld [vmem:[%s20 + $0x8] sm:$0xf]
    %v3487 = vld [vmem:[%s20 + $0xc] sm:$0xf]
    %v3488 = vld [vmem:[%s20 + $0x10] sm:$0xf]
    %v3489 = vld [vmem:[%s20 + $0x14] sm:$0xf]
    %v3490 = vld [vmem:[%s20 + $0x18] sm:$0xf]
    %v3491 = vld [vmem:[%s20 + $0x1c] sm:$0xf]
    %v3492 = vld [vmem:[%s21] sm:$0x1]
    %v3493 = vpack.c.bf16 %v3483, %v3483
    %v3495 = vperm.slane %v3492, 0
    %v3505 = vunpack.c.l.b16 %v3484
    %v3506 = vunpack.c.l.b16 %v3485
    %v3507 = vunpack.c.l.b16 %v3486
    %v3508 = vunpack.c.l.b16 %v3487
    %v3509 = vunpack.c.l.b16 %v3488
    %v3510 = vunpack.c.l.b16 %v3489
    %v3511 = vunpack.c.l.b16 %v3490
    %v3512 = vunpack.c.l.b16 %v3491
    %v3513 = vpack.c.b16 %v3506, %v3505
    %v3514 = vpack.c.b16 %v3508, %v3507
    %v3515 = vpack.c.b16 %v3510, %v3509
    %v3516 = vpack.c.b16 %v3512, %v3511
    %v3522 = vsel %vm118, %v3493, 0
    %3524 = vmatpush.bf16.msra.mxu0 0
    %3525 = vmatpush.bf16.msra.mxu0 0
    %3526 = vmatpush.bf16.msra.mxu0 0
    %3527 = vmatpush.bf16.msra.mxu0 0
    %3528 = vmatpush.bf16.msra.mxu0 %v3516
    %3529 = vmatpush.bf16.msra.mxu0 %v3515
    %3530 = vmatpush.bf16.msra.mxu0 %v3514
    %3531 = vmatpush.bf16.msra.mxu0 %v3513
    %3532 = vmatmul.bf16.gmra.mxu0 %v3522
    %v3533 = vpop.f32.mrf.mxu0
    %v3534 = vadd.f32 %v3495, %v3533
    %v3535 = vpop.f32.mrf.mxu0
    %3536 = vdwg.mxu0
    %3538 = vrot.lane.b32.xlu0 %v3534, 64
    %v3539 = vpop.permute.xlu0 %3538
    %v3541 = vsel %vm118, %v3483, %v3539
    %vm3542 = vcmask 654336
    %v3543 = vsel %vm3542, %v3541, 0.0
    %3544 = vst [vmem:[#allocation2] sm:$0x3] %v3543
    // Predicated region
    $region90: #{tpu_custom_call.1} parent=1 // pred_check
      _
    $region91: #{tpu_custom_call.1} parent=1 // pred_check_branch
      %3546 = sbr.rel (0) target = $region93
    $region92: #{tpu_custom_call.1} parent=1 // pred_region
      %3548 = vsyncadd [#allocation3], 0
      %s3550 = sshll.u32 [#allocation2], 4
      %s3551 = int_to_ptr.vmem [resolvable:$true] %s3550
      %s3552 = sshll.u32 %s22, 4
      %s3553 = int_to_ptr.hbm [resolvable:$true] %s3552
      %3555 = dma.vmem_to_hbm [thread:$0]  %s3551, 32, %s3553, [#allocation3]
    $region93: #{tpu_custom_call.1} parent=1 // pred_fallthru
      _
    // Predicated region
    $region94: #{tpu_custom_call.1} parent=1 // pred_check
      _
    $region95: #{tpu_custom_call.1} parent=1 // pred_check_branch
      %3557 = sbr.rel (0) target = $region97
    $region96: #{tpu_custom_call.1} parent=1 // pred_region
      %3559 = dma.done [#allocation3], 32
    $region97: #{tpu_custom_call.1} parent=1 // pred_fallthru
      _
    %3560 = vsyncpa [#allocation3], 1

</llo_original>
